<compile_context>
chip_gen: v7x
topology: tpu7x:2x2x1
jax: 0.10.0
libtpu: 0.0.40
codegen_flags: <defaults>
</compile_context>

<pallas_src>
import functools

import jax
import jax.numpy as jnp
import numpy as np
from jax.experimental import pallas as pl
from jax.experimental.pallas import tpu as pltpu


# ------------------------------ fused kernel ---------------------------------

def _fused_decoder_kernel(*refs, num_layers, seq_len, batch_pad):
    """One invocation computes the whole Decoder forward.

    refs layout:
      x_ref (S*BP, H) time-major, batch-padded, flattened input,
      [w_ih_t (H,4H), w_hh_t (H,4H), b (1,4H)] * num_layers   (gate order i,f,o,g),
      wo_t (H,H), bo (1,H), gamma (1,H), beta (1,H), wf_t (H,O), bf (1,O),
      out_ref (S*BP, O),
      gp_ref (S*BP, 4H) scratch (layer-0 batched gate pre-activations),
      act_ref (S*BP, H) scratch (last-layer hidden states, feeds the head).
    """
    L, S, BP = num_layers, seq_len, batch_pad
    x_ref = refs[0]
    layer_refs = refs[1:1 + 3 * L]
    (wo_ref, bo_ref, gam_ref, beta_ref, wf_ref, bf_ref) = \
        refs[1 + 3 * L: 7 + 3 * L]
    out_ref = refs[7 + 3 * L]
    gp_ref = refs[8 + 3 * L]
    act_ref = refs[9 + 3 * L]

    H = x_ref.shape[1]

    # Gates are packed (i, f, o, g): sigmoid on the first 3H lanes, tanh on the
    # last H lanes -> two full-width EUP ops per step; slices come afterwards.
    sig_mask = jax.lax.broadcasted_iota(jnp.int32, (BP, 4 * H), 1) < 3 * H

    def lstm_cell(gates, c_prev):
        sg = jax.nn.sigmoid(gates)                 # full (BP, 4H) vreg
        tg = jnp.tanh(gates)                       # full (BP, 4H) vreg
        act = jnp.where(sig_mask, sg, tg)
        i_g = act[:, 0 * H:1 * H]
        f_g = act[:, 1 * H:2 * H]
        o_g = act[:, 2 * H:3 * H]
        g_g = act[:, 3 * H:4 * H]
        c = f_g * c_prev + i_g * g_g
        h = o_g * jnp.tanh(c)
        return h, c

    # Layer 0: batched input projection for ALL timesteps, off the serial path.
    gp_ref[...] = (jnp.dot(x_ref[...], layer_refs[0][...],
                           preferred_element_type=jnp.float32)
                   + layer_refs[2][...])

    h = [jnp.zeros((BP, H), jnp.float32) for _ in range(L)]
    c = [jnp.zeros((BP, H), jnp.float32) for _ in range(L)]
    # prev_out[l]: layer l's output at the timestep it processed last wave step.
    prev_out = [None] * L

    # Wavefront over (layer, time): at wave step k, layer l handles t = k - l.
    # Layer l at t only needs layer l-1's output at t, which was produced at
    # wave step k-1, so all layers' work inside one k is data-independent and
    # the scheduler can overlap the matmul + EUP chains.
    for k in range(S + L - 1):
        cur_out = list(prev_out)
        for l in range(L):
            t = k - l
            if not (0 <= t < S):
                continue
            if l == 0:
                gates = (gp_ref[t * BP:(t + 1) * BP, :]
                         + jnp.dot(h[0], layer_refs[1][...],
                                   preferred_element_type=jnp.float32))
            else:
                gates = (jnp.dot(prev_out[l - 1], layer_refs[3 * l][...],
                                 preferred_element_type=jnp.float32)
                         + jnp.dot(h[l], layer_refs[3 * l + 1][...],
                                   preferred_element_type=jnp.float32)
                         + layer_refs[3 * l + 2][...])
            h[l], c[l] = lstm_cell(gates, c[l])
            cur_out[l] = h[l]
            if l == L - 1:
                act_ref[t * BP:(t + 1) * BP, :] = h[l]   # stays in VMEM
        prev_out = cur_out

    # Head: output_lstm Linear -> LayerNorm -> fc, on the whole VMEM slab.
    # Padded batch rows flow through (bounded values); wrapper strips them.
    z = (jnp.dot(act_ref[...], wo_ref[...],
                 preferred_element_type=jnp.float32) + bo_ref[...])
    mean = jnp.mean(z, axis=-1, keepdims=True)
    var = jnp.mean(jnp.square(z - mean), axis=-1, keepdims=True)
    zn = (z - mean) * jax.lax.rsqrt(var + 1e-5)
    zn = zn * gam_ref[...] + beta_ref[...]
    y = (jnp.dot(zn, wf_ref[...],
                 preferred_element_type=jnp.float32) + bf_ref[...])  # (S*BP, O)

    out_ref[...] = y                       # single contiguous slab store


# ------------------------------ wrapper ---------------------------------------

def _reorder_ifog(m):
    """Reorder last-axis gate blocks (i, f, g, o) -> (i, f, o, g)."""
    H = m.shape[-1] // 4
    return jnp.concatenate([m[..., :2 * H], m[..., 3 * H:], m[..., 2 * H:3 * H]],
                           axis=-1)


def pack_params(params):
    """PyTorch-layout params -> flat kernel-layout list (transposed, gate-
    reordered, fused bias).  Done once, outside the jitted forward."""
    flat = []
    for lp in params["lstm"]:
        flat.append(_reorder_ifog(jnp.transpose(lp["w_ih"])))              # (in, 4H)
        flat.append(_reorder_ifog(jnp.transpose(lp["w_hh"])))              # (H, 4H)
        flat.append(_reorder_ifog((lp["b_ih"] + lp["b_hh"]).reshape(1, -1)))  # (1, 4H)
    flat += [jnp.transpose(params["out_lstm_w"]),                          # (H, H)
             params["out_lstm_b"].reshape(1, -1),
             params["ln_gamma"].reshape(1, -1),
             params["ln_beta"].reshape(1, -1),
             jnp.transpose(params["fc_w"]),                                # (H, O)
             params["fc_b"].reshape(1, -1)]
    return flat


@jax.jit
def decoder_forward(packed, decoder_input):
    """decoder_input: (B, S, H) batch-first (PyTorch convention)."""
    B, S, H = decoder_input.shape
    num_layers = (len(packed) - 6) // 3
    O = packed[-2].shape[1]
    BP = ((B + 7) // 8) * 8             # pad batch to a sublane multiple

    # Cheap wrapper-side layout plumbing: time-major, zero-pad batch, flatten.
    x_tm = jnp.transpose(decoder_input.astype(jnp.float32), (1, 0, 2))  # (S,B,H)
    x_pad = jnp.pad(x_tm, ((0, 0), (0, BP - B), (0, 0)))                # (S,BP,H)
    x_flat = x_pad.reshape(S * BP, H)

    vmem = pl.BlockSpec(memory_space=pltpu.MemorySpace.VMEM)
    kernel = functools.partial(_fused_decoder_kernel, num_layers=num_layers,
                               seq_len=S, batch_pad=BP)
    y_flat = pl.pallas_call(
        kernel,
        out_shape=jax.ShapeDtypeStruct((S * BP, O), jnp.float32),
        in_specs=[vmem] * (1 + len(packed)),
        out_specs=vmem,
        scratch_shapes=[pltpu.VMEM((S * BP, 4 * H), jnp.float32),   # layer-0 gates
                        pltpu.VMEM((S * BP, H), jnp.float32)],      # last-layer h
        compiler_params=pltpu.CompilerParams(
            vmem_limit_bytes=32 * 1024 * 1024),   # explicit guardrail (v7x: 64 MiB VMEM)
    )(x_flat, *packed)

    y = y_flat.reshape(S, BP, O)[:, :B, :]        # strip batch padding
    return jnp.transpose(y, (1, 0, 2))            # (B, S, O)


# ------------------------- parameters (deterministic) -------------------------

def init_params(key, hidden_size, num_layers, output_size):
    ki = iter(jax.random.split(key, 8 * num_layers + 16))

    def uni(shape, fan_in):
        k = 1.0 / np.sqrt(fan_in)
        return jax.random.uniform(next(ki), shape, jnp.float32, -k, k)

    lstm = []
    for _ in range(num_layers):
        lstm.append(dict(
            w_ih=uni((4 * hidden_size, hidden_size), hidden_size),
            w_hh=uni((4 * hidden_size, hidden_size), hidden_size),
            b_ih=uni((4 * hidden_size,), hidden_size),
            b_hh=uni((4 * hidden_size,), hidden_size)))

    return dict(
        # input_decoder exists in the module but its output is discarded in
        # forward (dead code); its params are kept for fidelity but unused.
        in_dec_w=uni((hidden_size, hidden_size), hidden_size),
        in_dec_b=uni((hidden_size,), hidden_size),
        lstm=lstm,
        out_lstm_w=uni((hidden_size, hidden_size), hidden_size),
        out_lstm_b=uni((hidden_size,), hidden_size),
        ln_gamma=jnp.ones((hidden_size,), jnp.float32),
        ln_beta=jnp.zeros((hidden_size,), jnp.float32),
        fc_w=uni((output_size, hidden_size), hidden_size),
        fc_b=uni((output_size,), hidden_size),
    )


# --------------------------- pure-JAX reference -------------------------------

_PREC = jax.lax.Precision.HIGHEST   # true-f32 reference math


def _lstm_ref(x_bt, layers):
    h_seq = x_bt
    for lp in layers:
        B = h_seq.shape[0]
        H = lp["w_hh"].shape[1]

        def step(carry, x_t, lp=lp):
            hp, cp = carry
            gates = (jnp.dot(x_t, lp["w_ih"].T, precision=_PREC)
                     + jnp.dot(hp, lp["w_hh"].T, precision=_PREC)
                     + lp["b_ih"] + lp["b_hh"])
            i, f, g, o = jnp.split(gates, 4, axis=-1)
            c = jax.nn.sigmoid(f) * cp + jax.nn.sigmoid(i) * jnp.tanh(g)
            hn = jax.nn.sigmoid(o) * jnp.tanh(c)
            return (hn, c), hn

        init = (jnp.zeros((B, H)), jnp.zeros((B, H)))
        _, ys = jax.lax.scan(step, init, jnp.swapaxes(h_seq, 0, 1))
        h_seq = jnp.swapaxes(ys, 0, 1)
    return h_seq


def _forward_ref(params, decoder_input):
    # NOTE: input_decoder(decoder_input) is dead code in the PyTorch forward
    # (its result is immediately overwritten), so it is skipped here too.
    h = _lstm_ref(decoder_input, params["lstm"])
    z = jnp.dot(h, params["out_lstm_w"].T, precision=_PREC) + params["out_lstm_b"]
    mean = jnp.mean(z, axis=-1, keepdims=True)
    var = jnp.mean(jnp.square(z - mean), axis=-1, keepdims=True)
    zn = (z - mean) / jnp.sqrt(var + 1e-5)
    zn = zn * params["ln_gamma"] + params["ln_beta"]
    return jnp.dot(zn, params["fc_w"].T, precision=_PREC) + params["fc_b"]


# ----------------------------------- main --------------------------------------

if __name__ == "__main__":
    batch, seq_len = 2, 8
    hidden_size, num_layers, output_size = 32, 2, 24

    key = jax.random.PRNGKey(0)
    kp, kx = jax.random.split(key)
    params = init_params(kp, hidden_size, num_layers, output_size)
    decoder_input = jax.random.normal(kx, (batch, seq_len, hidden_size),
                                      jnp.float32)

    packed = pack_params(params)
    out = decoder_forward(packed, decoder_input)
    out = jax.block_until_ready(out)
    assert out.shape == (batch, seq_len, output_size), out.shape

    ref = jax.block_until_ready(_forward_ref(params, decoder_input))
    np.testing.assert_allclose(np.asarray(out), np.asarray(ref),
                               rtol=2e-3, atol=2e-3)
    print("KERNEL_OK")
</pallas_src>

<mosaic_0001>
module attributes {stable_mosaic.version = 11 : i64} {
  func.func @_fused_decoder_kernel(%arg0: memref<64x32xf32, #tpu.memory_space<vmem>>, %arg1: memref<32x128xf32, #tpu.memory_space<vmem>>, %arg2: memref<32x128xf32, #tpu.memory_space<vmem>>, %arg3: memref<1x128xf32, #tpu.memory_space<vmem>>, %arg4: memref<32x128xf32, #tpu.memory_space<vmem>>, %arg5: memref<32x128xf32, #tpu.memory_space<vmem>>, %arg6: memref<1x128xf32, #tpu.memory_space<vmem>>, %arg7: memref<32x32xf32, #tpu.memory_space<vmem>>, %arg8: memref<1x32xf32, #tpu.memory_space<vmem>>, %arg9: memref<1x32xf32, #tpu.memory_space<vmem>>, %arg10: memref<1x32xf32, #tpu.memory_space<vmem>>, %arg11: memref<32x24xf32, #tpu.memory_space<vmem>>, %arg12: memref<1x24xf32, #tpu.memory_space<vmem>>, %arg13: memref<64x24xf32, #tpu.memory_space<vmem>>, %arg14: memref<64x128xf32, #tpu.memory_space<vmem>>, %arg15: memref<64x32xf32, #tpu.memory_space<vmem>>) attributes {dimension_semantics = [], scalar_prefetch = 0 : i64, scratch_operands = 2 : i64, tpu.core_type = #tpu.core_type<tc>} {
    %0 = tpu.iota {dimensions = array<i32: 1>} : vector<8x128xi32>
    %c96_i32 = arith.constant 96 : i32
    %1 = vector.broadcast %c96_i32 : i32 to vector<8x128xi32>
    %2 = arith.cmpi slt, %0, %1 : vector<8x128xi32>
    %c0 = arith.constant 0 : index
    %c0_0 = arith.constant 0 : index
    %3 = vector.load %arg0[%c0, %c0_0] : memref<64x32xf32, #tpu.memory_space<vmem>>, vector<64x32xf32>
    %c0_1 = arith.constant 0 : index
    %c0_2 = arith.constant 0 : index
    %4 = vector.load %arg1[%c0_1, %c0_2] : memref<32x128xf32, #tpu.memory_space<vmem>>, vector<32x128xf32>
    %cst = arith.constant dense<0.000000e+00> : vector<64x128xf32>
    %5 = tpu.matmul %3, %4, %cst {dimension_numbers = #tpu.dot_dimension_numbers<[1], [0], [0], [1], [0, 0, 1, 1], [], []>} : vector<64x32xf32>, vector<32x128xf32>, vector<64x128xf32> -> vector<64x128xf32>
    %c0_3 = arith.constant 0 : index
    %c0_4 = arith.constant 0 : index
    %6 = vector.load %arg3[%c0_3, %c0_4] : memref<1x128xf32, #tpu.memory_space<vmem>>, vector<1x128xf32>
    %7 = vector.broadcast %6 : vector<1x128xf32> to vector<64x128xf32>
    %8 = arith.addf %5, %7 : vector<64x128xf32>
    %c0_5 = arith.constant 0 : index
    %c0_6 = arith.constant 0 : index
    %9 = vector.load %arg14[%c0_5, %c0_6] : memref<64x128xf32, #tpu.memory_space<vmem>>, vector<64x128xf32>
    tpu.vector_store %arg14[%c0_5, %c0_6], %8 {strides = array<i32>} : memref<64x128xf32, #tpu.memory_space<vmem>>, vector<64x128xf32>,
    %cst_7 = arith.constant 0.000000e+00 : f32
    %10 = vector.broadcast %cst_7 : f32 to vector<8x32xf32>
    %cst_8 = arith.constant 0.000000e+00 : f32
    %11 = vector.broadcast %cst_8 : f32 to vector<8x32xf32>
    %cst_9 = arith.constant 0.000000e+00 : f32
    %12 = vector.broadcast %cst_9 : f32 to vector<8x32xf32>
    %cst_10 = arith.constant 0.000000e+00 : f32
    %13 = vector.broadcast %cst_10 : f32 to vector<8x32xf32>
    %c0_11 = arith.constant 0 : index
    %c0_12 = arith.constant 0 : index
    %14 = vector.load %arg14[%c0_11, %c0_12] : memref<64x128xf32, #tpu.memory_space<vmem>>, vector<8x128xf32>
    %c0_13 = arith.constant 0 : index
    %c0_14 = arith.constant 0 : index
    %15 = vector.load %arg2[%c0_13, %c0_14] : memref<32x128xf32, #tpu.memory_space<vmem>>, vector<32x128xf32>
    %cst_15 = arith.constant dense<0.000000e+00> : vector<8x128xf32>
    %16 = tpu.matmul %10, %15, %cst_15 {dimension_numbers = #tpu.dot_dimension_numbers<[1], [0], [0], [1], [0, 0, 1, 1], [], []>} : vector<8x32xf32>, vector<32x128xf32>, vector<8x128xf32> -> vector<8x128xf32>
    %17 = arith.addf %14, %16 : vector<8x128xf32>
    %18 = arith.negf %17 : vector<8x128xf32>
    %19 = math.exp %18 : vector<8x128xf32>
    %cst_16 = arith.constant 1.000000e+00 : f32
    %20 = vector.broadcast %cst_16 : f32 to vector<8x128xf32>
    %21 = arith.addf %20, %19 : vector<8x128xf32>
    %22 = arith.divf %20, %21 : vector<8x128xf32>
    %23 = math.tanh %17 : vector<8x128xf32>
    %24 = arith.select %2, %22, %23 : vector<8x128xi1>, vector<8x128xf32>
    %25 = vector.extract_strided_slice %24 {offsets = [0, 0], sizes = [8, 32], strides = [1, 1]} : vector<8x128xf32> to vector<8x32xf32>
    %26 = vector.extract_strided_slice %24 {offsets = [0, 32], sizes = [8, 32], strides = [1, 1]} : vector<8x128xf32> to vector<8x32xf32>
    %27 = vector.extract_strided_slice %24 {offsets = [0, 64], sizes = [8, 32], strides = [1, 1]} : vector<8x128xf32> to vector<8x32xf32>
    %28 = vector.extract_strided_slice %24 {offsets = [0, 96], sizes = [8, 32], strides = [1, 1]} : vector<8x128xf32> to vector<8x32xf32>
    %29 = arith.mulf %26, %12 : vector<8x32xf32>
    %30 = arith.mulf %25, %28 : vector<8x32xf32>
    %31 = arith.addf %29, %30 : vector<8x32xf32>
    %32 = math.tanh %31 : vector<8x32xf32>
    %33 = arith.mulf %27, %32 : vector<8x32xf32>
    %c8 = arith.constant 8 : index
    %c0_17 = arith.constant 0 : index
    %34 = vector.load %arg14[%c8, %c0_17] : memref<64x128xf32, #tpu.memory_space<vmem>>, vector<8x128xf32>
    %c0_18 = arith.constant 0 : index
    %c0_19 = arith.constant 0 : index
    %35 = vector.load %arg2[%c0_18, %c0_19] : memref<32x128xf32, #tpu.memory_space<vmem>>, vector<32x128xf32>
    %cst_20 = arith.constant dense<0.000000e+00> : vector<8x128xf32>
    %36 = tpu.matmul %33, %35, %cst_20 {dimension_numbers = #tpu.dot_dimension_numbers<[1], [0], [0], [1], [0, 0, 1, 1], [], []>} : vector<8x32xf32>, vector<32x128xf32>, vector<8x128xf32> -> vector<8x128xf32>
    %37 = arith.addf %34, %36 : vector<8x128xf32>
    %38 = arith.negf %37 : vector<8x128xf32>
    %39 = math.exp %38 : vector<8x128xf32>
    %cst_21 = arith.constant 1.000000e+00 : f32
    %40 = vector.broadcast %cst_21 : f32 to vector<8x128xf32>
    %41 = arith.addf %40, %39 : vector<8x128xf32>
    %42 = arith.divf %40, %41 : vector<8x128xf32>
    %43 = math.tanh %37 : vector<8x128xf32>
    %44 = arith.select %2, %42, %43 : vector<8x128xi1>, vector<8x128xf32>
    %45 = vector.extract_strided_slice %44 {offsets = [0, 0], sizes = [8, 32], strides = [1, 1]} : vector<8x128xf32> to vector<8x32xf32>
    %46 = vector.extract_strided_slice %44 {offsets = [0, 32], sizes = [8, 32], strides = [1, 1]} : vector<8x128xf32> to vector<8x32xf32>
    %47 = vector.extract_strided_slice %44 {offsets = [0, 64], sizes = [8, 32], strides = [1, 1]} : vector<8x128xf32> to vector<8x32xf32>
    %48 = vector.extract_strided_slice %44 {offsets = [0, 96], sizes = [8, 32], strides = [1, 1]} : vector<8x128xf32> to vector<8x32xf32>
    %49 = arith.mulf %46, %31 : vector<8x32xf32>
    %50 = arith.mulf %45, %48 : vector<8x32xf32>
    %51 = arith.addf %49, %50 : vector<8x32xf32>
    %52 = math.tanh %51 : vector<8x32xf32>
    %53 = arith.mulf %47, %52 : vector<8x32xf32>
    %c0_22 = arith.constant 0 : index
    %c0_23 = arith.constant 0 : index
    %54 = vector.load %arg4[%c0_22, %c0_23] : memref<32x128xf32, #tpu.memory_space<vmem>>, vector<32x128xf32>
    %cst_24 = arith.constant dense<0.000000e+00> : vector<8x128xf32>
    %55 = tpu.matmul %33, %54, %cst_24 {dimension_numbers = #tpu.dot_dimension_numbers<[1], [0], [0], [1], [0, 0, 1, 1], [], []>} : vector<8x32xf32>, vector<32x128xf32>, vector<8x128xf32> -> vector<8x128xf32>
    %c0_25 = arith.constant 0 : index
    %c0_26 = arith.constant 0 : index
    %56 = vector.load %arg5[%c0_25, %c0_26] : memref<32x128xf32, #tpu.memory_space<vmem>>, vector<32x128xf32>
    %cst_27 = arith.constant dense<0.000000e+00> : vector<8x128xf32>
    %57 = tpu.matmul %11, %56, %cst_27 {dimension_numbers = #tpu.dot_dimension_numbers<[1], [0], [0], [1], [0, 0, 1, 1], [], []>} : vector<8x32xf32>, vector<32x128xf32>, vector<8x128xf32> -> vector<8x128xf32>
    %58 = arith.addf %55, %57 : vector<8x128xf32>
    %c0_28 = arith.constant 0 : index
    %c0_29 = arith.constant 0 : index
    %59 = vector.load %arg6[%c0_28, %c0_29] : memref<1x128xf32, #tpu.memory_space<vmem>>, vector<1x128xf32>
    %60 = vector.broadcast %59 : vector<1x128xf32> to vector<8x128xf32>
    %61 = arith.addf %58, %60 : vector<8x128xf32>
    %62 = arith.negf %61 : vector<8x128xf32>
    %63 = math.exp %62 : vector<8x128xf32>
    %cst_30 = arith.constant 1.000000e+00 : f32
    %64 = vector.broadcast %cst_30 : f32 to vector<8x128xf32>
    %65 = arith.addf %64, %63 : vector<8x128xf32>
    %66 = arith.divf %64, %65 : vector<8x128xf32>
    %67 = math.tanh %61 : vector<8x128xf32>
    %68 = arith.select %2, %66, %67 : vector<8x128xi1>, vector<8x128xf32>
    %69 = vector.extract_strided_slice %68 {offsets = [0, 0], sizes = [8, 32], strides = [1, 1]} : vector<8x128xf32> to vector<8x32xf32>
    %70 = vector.extract_strided_slice %68 {offsets = [0, 32], sizes = [8, 32], strides = [1, 1]} : vector<8x128xf32> to vector<8x32xf32>
    %71 = vector.extract_strided_slice %68 {offsets = [0, 64], sizes = [8, 32], strides = [1, 1]} : vector<8x128xf32> to vector<8x32xf32>
    %72 = vector.extract_strided_slice %68 {offsets = [0, 96], sizes = [8, 32], strides = [1, 1]} : vector<8x128xf32> to vector<8x32xf32>
    %73 = arith.mulf %70, %13 : vector<8x32xf32>
    %74 = arith.mulf %69, %72 : vector<8x32xf32>
    %75 = arith.addf %73, %74 : vector<8x32xf32>
    %76 = math.tanh %75 : vector<8x32xf32>
    %77 = arith.mulf %71, %76 : vector<8x32xf32>
    %c0_31 = arith.constant 0 : index
    %c0_32 = arith.constant 0 : index
    %78 = vector.load %arg15[%c0_31, %c0_32] : memref<64x32xf32, #tpu.memory_space<vmem>>, vector<8x32xf32>
    tpu.vector_store %arg15[%c0_31, %c0_32], %77 {strides = array<i32>} : memref<64x32xf32, #tpu.memory_space<vmem>>, vector<8x32xf32>,
    %c16 = arith.constant 16 : index
    %c0_33 = arith.constant 0 : index
    %79 = vector.load %arg14[%c16, %c0_33] : memref<64x128xf32, #tpu.memory_space<vmem>>, vector<8x128xf32>
    %c0_34 = arith.constant 0 : index
    %c0_35 = arith.constant 0 : index
    %80 = vector.load %arg2[%c0_34, %c0_35] : memref<32x128xf32, #tpu.memory_space<vmem>>, vector<32x128xf32>
    %cst_36 = arith.constant dense<0.000000e+00> : vector<8x128xf32>
    %81 = tpu.matmul %53, %80, %cst_36 {dimension_numbers = #tpu.dot_dimension_numbers<[1], [0], [0], [1], [0, 0, 1, 1], [], []>} : vector<8x32xf32>, vector<32x128xf32>, vector<8x128xf32> -> vector<8x128xf32>
    %82 = arith.addf %79, %81 : vector<8x128xf32>
    %83 = arith.negf %82 : vector<8x128xf32>
    %84 = math.exp %83 : vector<8x128xf32>
    %cst_37 = arith.constant 1.000000e+00 : f32
    %85 = vector.broadcast %cst_37 : f32 to vector<8x128xf32>
    %86 = arith.addf %85, %84 : vector<8x128xf32>
    %87 = arith.divf %85, %86 : vector<8x128xf32>
    %88 = math.tanh %82 : vector<8x128xf32>
    %89 = arith.select %2, %87, %88 : vector<8x128xi1>, vector<8x128xf32>
    %90 = vector.extract_strided_slice %89 {offsets = [0, 0], sizes = [8, 32], strides = [1, 1]} : vector<8x128xf32> to vector<8x32xf32>
    %91 = vector.extract_strided_slice %89 {offsets = [0, 32], sizes = [8, 32], strides = [1, 1]} : vector<8x128xf32> to vector<8x32xf32>
    %92 = vector.extract_strided_slice %89 {offsets = [0, 64], sizes = [8, 32], strides = [1, 1]} : vector<8x128xf32> to vector<8x32xf32>
    %93 = vector.extract_strided_slice %89 {offsets = [0, 96], sizes = [8, 32], strides = [1, 1]} : vector<8x128xf32> to vector<8x32xf32>
    %94 = arith.mulf %91, %51 : vector<8x32xf32>
    %95 = arith.mulf %90, %93 : vector<8x32xf32>
    %96 = arith.addf %94, %95 : vector<8x32xf32>
    %97 = math.tanh %96 : vector<8x32xf32>
    %98 = arith.mulf %92, %97 : vector<8x32xf32>
    %c0_38 = arith.constant 0 : index
    %c0_39 = arith.constant 0 : index
    %99 = vector.load %arg4[%c0_38, %c0_39] : memref<32x128xf32, #tpu.memory_space<vmem>>, vector<32x128xf32>
    %cst_40 = arith.constant dense<0.000000e+00> : vector<8x128xf32>
    %100 = tpu.matmul %53, %99, %cst_40 {dimension_numbers = #tpu.dot_dimension_numbers<[1], [0], [0], [1], [0, 0, 1, 1], [], []>} : vector<8x32xf32>, vector<32x128xf32>, vector<8x128xf32> -> vector<8x128xf32>
    %c0_41 = arith.constant 0 : index
    %c0_42 = arith.constant 0 : index
    %101 = vector.load %arg5[%c0_41, %c0_42] : memref<32x128xf32, #tpu.memory_space<vmem>>, vector<32x128xf32>
    %cst_43 = arith.constant dense<0.000000e+00> : vector<8x128xf32>
    %102 = tpu.matmul %77, %101, %cst_43 {dimension_numbers = #tpu.dot_dimension_numbers<[1], [0], [0], [1], [0, 0, 1, 1], [], []>} : vector<8x32xf32>, vector<32x128xf32>, vector<8x128xf32> -> vector<8x128xf32>
    %103 = arith.addf %100, %102 : vector<8x128xf32>
    %c0_44 = arith.constant 0 : index
    %c0_45 = arith.constant 0 : index
    %104 = vector.load %arg6[%c0_44, %c0_45] : memref<1x128xf32, #tpu.memory_space<vmem>>, vector<1x128xf32>
    %105 = vector.broadcast %104 : vector<1x128xf32> to vector<8x128xf32>
    %106 = arith.addf %103, %105 : vector<8x128xf32>
    %107 = arith.negf %106 : vector<8x128xf32>
    %108 = math.exp %107 : vector<8x128xf32>
    %cst_46 = arith.constant 1.000000e+00 : f32
    %109 = vector.broadcast %cst_46 : f32 to vector<8x128xf32>
    %110 = arith.addf %109, %108 : vector<8x128xf32>
    %111 = arith.divf %109, %110 : vector<8x128xf32>
    %112 = math.tanh %106 : vector<8x128xf32>
    %113 = arith.select %2, %111, %112 : vector<8x128xi1>, vector<8x128xf32>
    %114 = vector.extract_strided_slice %113 {offsets = [0, 0], sizes = [8, 32], strides = [1, 1]} : vector<8x128xf32> to vector<8x32xf32>
    %115 = vector.extract_strided_slice %113 {offsets = [0, 32], sizes = [8, 32], strides = [1, 1]} : vector<8x128xf32> to vector<8x32xf32>
    %116 = vector.extract_strided_slice %113 {offsets = [0, 64], sizes = [8, 32], strides = [1, 1]} : vector<8x128xf32> to vector<8x32xf32>
    %117 = vector.extract_strided_slice %113 {offsets = [0, 96], sizes = [8, 32], strides = [1, 1]} : vector<8x128xf32> to vector<8x32xf32>
    %118 = arith.mulf %115, %75 : vector<8x32xf32>
    %119 = arith.mulf %114, %117 : vector<8x32xf32>
    %120 = arith.addf %118, %119 : vector<8x32xf32>
    %121 = math.tanh %120 : vector<8x32xf32>
    %122 = arith.mulf %116, %121 : vector<8x32xf32>
    %c8_47 = arith.constant 8 : index
    %c0_48 = arith.constant 0 : index
    %123 = vector.load %arg15[%c8_47, %c0_48] : memref<64x32xf32, #tpu.memory_space<vmem>>, vector<8x32xf32>
    tpu.vector_store %arg15[%c8_47, %c0_48], %122 {strides = array<i32>} : memref<64x32xf32, #tpu.memory_space<vmem>>, vector<8x32xf32>,
    %c24 = arith.constant 24 : index
    %c0_49 = arith.constant 0 : index
    %124 = vector.load %arg14[%c24, %c0_49] : memref<64x128xf32, #tpu.memory_space<vmem>>, vector<8x128xf32>
    %c0_50 = arith.constant 0 : index
    %c0_51 = arith.constant 0 : index
    %125 = vector.load %arg2[%c0_50, %c0_51] : memref<32x128xf32, #tpu.memory_space<vmem>>, vector<32x128xf32>
    %cst_52 = arith.constant dense<0.000000e+00> : vector<8x128xf32>
    %126 = tpu.matmul %98, %125, %cst_52 {dimension_numbers = #tpu.dot_dimension_numbers<[1], [0], [0], [1], [0, 0, 1, 1], [], []>} : vector<8x32xf32>, vector<32x128xf32>, vector<8x128xf32> -> vector<8x128xf32>
    %127 = arith.addf %124, %126 : vector<8x128xf32>
    %128 = arith.negf %127 : vector<8x128xf32>
    %129 = math.exp %128 : vector<8x128xf32>
    %cst_53 = arith.constant 1.000000e+00 : f32
    %130 = vector.broadcast %cst_53 : f32 to vector<8x128xf32>
    %131 = arith.addf %130, %129 : vector<8x128xf32>
    %132 = arith.divf %130, %131 : vector<8x128xf32>
    %133 = math.tanh %127 : vector<8x128xf32>
    %134 = arith.select %2, %132, %133 : vector<8x128xi1>, vector<8x128xf32>
    %135 = vector.extract_strided_slice %134 {offsets = [0, 0], sizes = [8, 32], strides = [1, 1]} : vector<8x128xf32> to vector<8x32xf32>
    %136 = vector.extract_strided_slice %134 {offsets = [0, 32], sizes = [8, 32], strides = [1, 1]} : vector<8x128xf32> to vector<8x32xf32>
    %137 = vector.extract_strided_slice %134 {offsets = [0, 64], sizes = [8, 32], strides = [1, 1]} : vector<8x128xf32> to vector<8x32xf32>
    %138 = vector.extract_strided_slice %134 {offsets = [0, 96], sizes = [8, 32], strides = [1, 1]} : vector<8x128xf32> to vector<8x32xf32>
    %139 = arith.mulf %136, %96 : vector<8x32xf32>
    %140 = arith.mulf %135, %138 : vector<8x32xf32>
    %141 = arith.addf %139, %140 : vector<8x32xf32>
    %142 = math.tanh %141 : vector<8x32xf32>
    %143 = arith.mulf %137, %142 : vector<8x32xf32>
    %c0_54 = arith.constant 0 : index
    %c0_55 = arith.constant 0 : index
    %144 = vector.load %arg4[%c0_54, %c0_55] : memref<32x128xf32, #tpu.memory_space<vmem>>, vector<32x128xf32>
    %cst_56 = arith.constant dense<0.000000e+00> : vector<8x128xf32>
    %145 = tpu.matmul %98, %144, %cst_56 {dimension_numbers = #tpu.dot_dimension_numbers<[1], [0], [0], [1], [0, 0, 1, 1], [], []>} : vector<8x32xf32>, vector<32x128xf32>, vector<8x128xf32> -> vector<8x128xf32>
    %c0_57 = arith.constant 0 : index
    %c0_58 = arith.constant 0 : index
    %146 = vector.load %arg5[%c0_57, %c0_58] : memref<32x128xf32, #tpu.memory_space<vmem>>, vector<32x128xf32>
    %cst_59 = arith.constant dense<0.000000e+00> : vector<8x128xf32>
    %147 = tpu.matmul %122, %146, %cst_59 {dimension_numbers = #tpu.dot_dimension_numbers<[1], [0], [0], [1], [0, 0, 1, 1], [], []>} : vector<8x32xf32>, vector<32x128xf32>, vector<8x128xf32> -> vector<8x128xf32>
    %148 = arith.addf %145, %147 : vector<8x128xf32>
    %c0_60 = arith.constant 0 : index
    %c0_61 = arith.constant 0 : index
    %149 = vector.load %arg6[%c0_60, %c0_61] : memref<1x128xf32, #tpu.memory_space<vmem>>, vector<1x128xf32>
    %150 = vector.broadcast %149 : vector<1x128xf32> to vector<8x128xf32>
    %151 = arith.addf %148, %150 : vector<8x128xf32>
    %152 = arith.negf %151 : vector<8x128xf32>
    %153 = math.exp %152 : vector<8x128xf32>
    %cst_62 = arith.constant 1.000000e+00 : f32
    %154 = vector.broadcast %cst_62 : f32 to vector<8x128xf32>
    %155 = arith.addf %154, %153 : vector<8x128xf32>
    %156 = arith.divf %154, %155 : vector<8x128xf32>
    %157 = math.tanh %151 : vector<8x128xf32>
    %158 = arith.select %2, %156, %157 : vector<8x128xi1>, vector<8x128xf32>
    %159 = vector.extract_strided_slice %158 {offsets = [0, 0], sizes = [8, 32], strides = [1, 1]} : vector<8x128xf32> to vector<8x32xf32>
    %160 = vector.extract_strided_slice %158 {offsets = [0, 32], sizes = [8, 32], strides = [1, 1]} : vector<8x128xf32> to vector<8x32xf32>
    %161 = vector.extract_strided_slice %158 {offsets = [0, 64], sizes = [8, 32], strides = [1, 1]} : vector<8x128xf32> to vector<8x32xf32>
    %162 = vector.extract_strided_slice %158 {offsets = [0, 96], sizes = [8, 32], strides = [1, 1]} : vector<8x128xf32> to vector<8x32xf32>
    %163 = arith.mulf %160, %120 : vector<8x32xf32>
    %164 = arith.mulf %159, %162 : vector<8x32xf32>
    %165 = arith.addf %163, %164 : vector<8x32xf32>
    %166 = math.tanh %165 : vector<8x32xf32>
    %167 = arith.mulf %161, %166 : vector<8x32xf32>
    %c16_63 = arith.constant 16 : index
    %c0_64 = arith.constant 0 : index
    %168 = vector.load %arg15[%c16_63, %c0_64] : memref<64x32xf32, #tpu.memory_space<vmem>>, vector<8x32xf32>
    tpu.vector_store %arg15[%c16_63, %c0_64], %167 {strides = array<i32>} : memref<64x32xf32, #tpu.memory_space<vmem>>, vector<8x32xf32>,
    %c32 = arith.constant 32 : index
    %c0_65 = arith.constant 0 : index
    %169 = vector.load %arg14[%c32, %c0_65] : memref<64x128xf32, #tpu.memory_space<vmem>>, vector<8x128xf32>
    %c0_66 = arith.constant 0 : index
    %c0_67 = arith.constant 0 : index
    %170 = vector.load %arg2[%c0_66, %c0_67] : memref<32x128xf32, #tpu.memory_space<vmem>>, vector<32x128xf32>
    %cst_68 = arith.constant dense<0.000000e+00> : vector<8x128xf32>
    %171 = tpu.matmul %143, %170, %cst_68 {dimension_numbers = #tpu.dot_dimension_numbers<[1], [0], [0], [1], [0, 0, 1, 1], [], []>} : vector<8x32xf32>, vector<32x128xf32>, vector<8x128xf32> -> vector<8x128xf32>
    %172 = arith.addf %169, %171 : vector<8x128xf32>
    %173 = arith.negf %172 : vector<8x128xf32>
    %174 = math.exp %173 : vector<8x128xf32>
    %cst_69 = arith.constant 1.000000e+00 : f32
    %175 = vector.broadcast %cst_69 : f32 to vector<8x128xf32>
    %176 = arith.addf %175, %174 : vector<8x128xf32>
    %177 = arith.divf %175, %176 : vector<8x128xf32>
    %178 = math.tanh %172 : vector<8x128xf32>
    %179 = arith.select %2, %177, %178 : vector<8x128xi1>, vector<8x128xf32>
    %180 = vector.extract_strided_slice %179 {offsets = [0, 0], sizes = [8, 32], strides = [1, 1]} : vector<8x128xf32> to vector<8x32xf32>
    %181 = vector.extract_strided_slice %179 {offsets = [0, 32], sizes = [8, 32], strides = [1, 1]} : vector<8x128xf32> to vector<8x32xf32>
    %182 = vector.extract_strided_slice %179 {offsets = [0, 64], sizes = [8, 32], strides = [1, 1]} : vector<8x128xf32> to vector<8x32xf32>
    %183 = vector.extract_strided_slice %179 {offsets = [0, 96], sizes = [8, 32], strides = [1, 1]} : vector<8x128xf32> to vector<8x32xf32>
    %184 = arith.mulf %181, %141 : vector<8x32xf32>
    %185 = arith.mulf %180, %183 : vector<8x32xf32>
    %186 = arith.addf %184, %185 : vector<8x32xf32>
    %187 = math.tanh %186 : vector<8x32xf32>
    %188 = arith.mulf %182, %187 : vector<8x32xf32>
    %c0_70 = arith.constant 0 : index
    %c0_71 = arith.constant 0 : index
    %189 = vector.load %arg4[%c0_70, %c0_71] : memref<32x128xf32, #tpu.memory_space<vmem>>, vector<32x128xf32>
    %cst_72 = arith.constant dense<0.000000e+00> : vector<8x128xf32>
    %190 = tpu.matmul %143, %189, %cst_72 {dimension_numbers = #tpu.dot_dimension_numbers<[1], [0], [0], [1], [0, 0, 1, 1], [], []>} : vector<8x32xf32>, vector<32x128xf32>, vector<8x128xf32> -> vector<8x128xf32>
    %c0_73 = arith.constant 0 : index
    %c0_74 = arith.constant 0 : index
    %191 = vector.load %arg5[%c0_73, %c0_74] : memref<32x128xf32, #tpu.memory_space<vmem>>, vector<32x128xf32>
    %cst_75 = arith.constant dense<0.000000e+00> : vector<8x128xf32>
    %192 = tpu.matmul %167, %191, %cst_75 {dimension_numbers = #tpu.dot_dimension_numbers<[1], [0], [0], [1], [0, 0, 1, 1], [], []>} : vector<8x32xf32>, vector<32x128xf32>, vector<8x128xf32> -> vector<8x128xf32>
    %193 = arith.addf %190, %192 : vector<8x128xf32>
    %c0_76 = arith.constant 0 : index
    %c0_77 = arith.constant 0 : index
    %194 = vector.load %arg6[%c0_76, %c0_77] : memref<1x128xf32, #tpu.memory_space<vmem>>, vector<1x128xf32>
    %195 = vector.broadcast %194 : vector<1x128xf32> to vector<8x128xf32>
    %196 = arith.addf %193, %195 : vector<8x128xf32>
    %197 = arith.negf %196 : vector<8x128xf32>
    %198 = math.exp %197 : vector<8x128xf32>
    %cst_78 = arith.constant 1.000000e+00 : f32
    %199 = vector.broadcast %cst_78 : f32 to vector<8x128xf32>
    %200 = arith.addf %199, %198 : vector<8x128xf32>
    %201 = arith.divf %199, %200 : vector<8x128xf32>
    %202 = math.tanh %196 : vector<8x128xf32>
    %203 = arith.select %2, %201, %202 : vector<8x128xi1>, vector<8x128xf32>
    %204 = vector.extract_strided_slice %203 {offsets = [0, 0], sizes = [8, 32], strides = [1, 1]} : vector<8x128xf32> to vector<8x32xf32>
    %205 = vector.extract_strided_slice %203 {offsets = [0, 32], sizes = [8, 32], strides = [1, 1]} : vector<8x128xf32> to vector<8x32xf32>
    %206 = vector.extract_strided_slice %203 {offsets = [0, 64], sizes = [8, 32], strides = [1, 1]} : vector<8x128xf32> to vector<8x32xf32>
    %207 = vector.extract_strided_slice %203 {offsets = [0, 96], sizes = [8, 32], strides = [1, 1]} : vector<8x128xf32> to vector<8x32xf32>
    %208 = arith.mulf %205, %165 : vector<8x32xf32>
    %209 = arith.mulf %204, %207 : vector<8x32xf32>
    %210 = arith.addf %208, %209 : vector<8x32xf32>
    %211 = math.tanh %210 : vector<8x32xf32>
    %212 = arith.mulf %206, %211 : vector<8x32xf32>
    %c24_79 = arith.constant 24 : index
    %c0_80 = arith.constant 0 : index
    %213 = vector.load %arg15[%c24_79, %c0_80] : memref<64x32xf32, #tpu.memory_space<vmem>>, vector<8x32xf32>
    tpu.vector_store %arg15[%c24_79, %c0_80], %212 {strides = array<i32>} : memref<64x32xf32, #tpu.memory_space<vmem>>, vector<8x32xf32>,
    %c40 = arith.constant 40 : index
    %c0_81 = arith.constant 0 : index
    %214 = vector.load %arg14[%c40, %c0_81] : memref<64x128xf32, #tpu.memory_space<vmem>>, vector<8x128xf32>
    %c0_82 = arith.constant 0 : index
    %c0_83 = arith.constant 0 : index
    %215 = vector.load %arg2[%c0_82, %c0_83] : memref<32x128xf32, #tpu.memory_space<vmem>>, vector<32x128xf32>
    %cst_84 = arith.constant dense<0.000000e+00> : vector<8x128xf32>
    %216 = tpu.matmul %188, %215, %cst_84 {dimension_numbers = #tpu.dot_dimension_numbers<[1], [0], [0], [1], [0, 0, 1, 1], [], []>} : vector<8x32xf32>, vector<32x128xf32>, vector<8x128xf32> -> vector<8x128xf32>
    %217 = arith.addf %214, %216 : vector<8x128xf32>
    %218 = arith.negf %217 : vector<8x128xf32>
    %219 = math.exp %218 : vector<8x128xf32>
    %cst_85 = arith.constant 1.000000e+00 : f32
    %220 = vector.broadcast %cst_85 : f32 to vector<8x128xf32>
    %221 = arith.addf %220, %219 : vector<8x128xf32>
    %222 = arith.divf %220, %221 : vector<8x128xf32>
    %223 = math.tanh %217 : vector<8x128xf32>
    %224 = arith.select %2, %222, %223 : vector<8x128xi1>, vector<8x128xf32>
    %225 = vector.extract_strided_slice %224 {offsets = [0, 0], sizes = [8, 32], strides = [1, 1]} : vector<8x128xf32> to vector<8x32xf32>
    %226 = vector.extract_strided_slice %224 {offsets = [0, 32], sizes = [8, 32], strides = [1, 1]} : vector<8x128xf32> to vector<8x32xf32>
    %227 = vector.extract_strided_slice %224 {offsets = [0, 64], sizes = [8, 32], strides = [1, 1]} : vector<8x128xf32> to vector<8x32xf32>
    %228 = vector.extract_strided_slice %224 {offsets = [0, 96], sizes = [8, 32], strides = [1, 1]} : vector<8x128xf32> to vector<8x32xf32>
    %229 = arith.mulf %226, %186 : vector<8x32xf32>
    %230 = arith.mulf %225, %228 : vector<8x32xf32>
    %231 = arith.addf %229, %230 : vector<8x32xf32>
    %232 = math.tanh %231 : vector<8x32xf32>
    %233 = arith.mulf %227, %232 : vector<8x32xf32>
    %c0_86 = arith.constant 0 : index
    %c0_87 = arith.constant 0 : index
    %234 = vector.load %arg4[%c0_86, %c0_87] : memref<32x128xf32, #tpu.memory_space<vmem>>, vector<32x128xf32>
    %cst_88 = arith.constant dense<0.000000e+00> : vector<8x128xf32>
    %235 = tpu.matmul %188, %234, %cst_88 {dimension_numbers = #tpu.dot_dimension_numbers<[1], [0], [0], [1], [0, 0, 1, 1], [], []>} : vector<8x32xf32>, vector<32x128xf32>, vector<8x128xf32> -> vector<8x128xf32>
    %c0_89 = arith.constant 0 : index
    %c0_90 = arith.constant 0 : index
    %236 = vector.load %arg5[%c0_89, %c0_90] : memref<32x128xf32, #tpu.memory_space<vmem>>, vector<32x128xf32>
    %cst_91 = arith.constant dense<0.000000e+00> : vector<8x128xf32>
    %237 = tpu.matmul %212, %236, %cst_91 {dimension_numbers = #tpu.dot_dimension_numbers<[1], [0], [0], [1], [0, 0, 1, 1], [], []>} : vector<8x32xf32>, vector<32x128xf32>, vector<8x128xf32> -> vector<8x128xf32>
    %238 = arith.addf %235, %237 : vector<8x128xf32>
    %c0_92 = arith.constant 0 : index
    %c0_93 = arith.constant 0 : index
    %239 = vector.load %arg6[%c0_92, %c0_93] : memref<1x128xf32, #tpu.memory_space<vmem>>, vector<1x128xf32>
    %240 = vector.broadcast %239 : vector<1x128xf32> to vector<8x128xf32>
    %241 = arith.addf %238, %240 : vector<8x128xf32>
    %242 = arith.negf %241 : vector<8x128xf32>
    %243 = math.exp %242 : vector<8x128xf32>
    %cst_94 = arith.constant 1.000000e+00 : f32
    %244 = vector.broadcast %cst_94 : f32 to vector<8x128xf32>
    %245 = arith.addf %244, %243 : vector<8x128xf32>
    %246 = arith.divf %244, %245 : vector<8x128xf32>
    %247 = math.tanh %241 : vector<8x128xf32>
    %248 = arith.select %2, %246, %247 : vector<8x128xi1>, vector<8x128xf32>
    %249 = vector.extract_strided_slice %248 {offsets = [0, 0], sizes = [8, 32], strides = [1, 1]} : vector<8x128xf32> to vector<8x32xf32>
    %250 = vector.extract_strided_slice %248 {offsets = [0, 32], sizes = [8, 32], strides = [1, 1]} : vector<8x128xf32> to vector<8x32xf32>
    %251 = vector.extract_strided_slice %248 {offsets = [0, 64], sizes = [8, 32], strides = [1, 1]} : vector<8x128xf32> to vector<8x32xf32>
    %252 = vector.extract_strided_slice %248 {offsets = [0, 96], sizes = [8, 32], strides = [1, 1]} : vector<8x128xf32> to vector<8x32xf32>
    %253 = arith.mulf %250, %210 : vector<8x32xf32>
    %254 = arith.mulf %249, %252 : vector<8x32xf32>
    %255 = arith.addf %253, %254 : vector<8x32xf32>
    %256 = math.tanh %255 : vector<8x32xf32>
    %257 = arith.mulf %251, %256 : vector<8x32xf32>
    %c32_95 = arith.constant 32 : index
    %c0_96 = arith.constant 0 : index
    %258 = vector.load %arg15[%c32_95, %c0_96] : memref<64x32xf32, #tpu.memory_space<vmem>>, vector<8x32xf32>
    tpu.vector_store %arg15[%c32_95, %c0_96], %257 {strides = array<i32>} : memref<64x32xf32, #tpu.memory_space<vmem>>, vector<8x32xf32>,
    %c48 = arith.constant 48 : index
    %c0_97 = arith.constant 0 : index
    %259 = vector.load %arg14[%c48, %c0_97] : memref<64x128xf32, #tpu.memory_space<vmem>>, vector<8x128xf32>
    %c0_98 = arith.constant 0 : index
    %c0_99 = arith.constant 0 : index
    %260 = vector.load %arg2[%c0_98, %c0_99] : memref<32x128xf32, #tpu.memory_space<vmem>>, vector<32x128xf32>
    %cst_100 = arith.constant dense<0.000000e+00> : vector<8x128xf32>
    %261 = tpu.matmul %233, %260, %cst_100 {dimension_numbers = #tpu.dot_dimension_numbers<[1], [0], [0], [1], [0, 0, 1, 1], [], []>} : vector<8x32xf32>, vector<32x128xf32>, vector<8x128xf32> -> vector<8x128xf32>
    %262 = arith.addf %259, %261 : vector<8x128xf32>
    %263 = arith.negf %262 : vector<8x128xf32>
    %264 = math.exp %263 : vector<8x128xf32>
    %cst_101 = arith.constant 1.000000e+00 : f32
    %265 = vector.broadcast %cst_101 : f32 to vector<8x128xf32>
    %266 = arith.addf %265, %264 : vector<8x128xf32>
    %267 = arith.divf %265, %266 : vector<8x128xf32>
    %268 = math.tanh %262 : vector<8x128xf32>
    %269 = arith.select %2, %267, %268 : vector<8x128xi1>, vector<8x128xf32>
    %270 = vector.extract_strided_slice %269 {offsets = [0, 0], sizes = [8, 32], strides = [1, 1]} : vector<8x128xf32> to vector<8x32xf32>
    %271 = vector.extract_strided_slice %269 {offsets = [0, 32], sizes = [8, 32], strides = [1, 1]} : vector<8x128xf32> to vector<8x32xf32>
    %272 = vector.extract_strided_slice %269 {offsets = [0, 64], sizes = [8, 32], strides = [1, 1]} : vector<8x128xf32> to vector<8x32xf32>
    %273 = vector.extract_strided_slice %269 {offsets = [0, 96], sizes = [8, 32], strides = [1, 1]} : vector<8x128xf32> to vector<8x32xf32>
    %274 = arith.mulf %271, %231 : vector<8x32xf32>
    %275 = arith.mulf %270, %273 : vector<8x32xf32>
    %276 = arith.addf %274, %275 : vector<8x32xf32>
    %277 = math.tanh %276 : vector<8x32xf32>
    %278 = arith.mulf %272, %277 : vector<8x32xf32>
    %c0_102 = arith.constant 0 : index
    %c0_103 = arith.constant 0 : index
    %279 = vector.load %arg4[%c0_102, %c0_103] : memref<32x128xf32, #tpu.memory_space<vmem>>, vector<32x128xf32>
    %cst_104 = arith.constant dense<0.000000e+00> : vector<8x128xf32>
    %280 = tpu.matmul %233, %279, %cst_104 {dimension_numbers = #tpu.dot_dimension_numbers<[1], [0], [0], [1], [0, 0, 1, 1], [], []>} : vector<8x32xf32>, vector<32x128xf32>, vector<8x128xf32> -> vector<8x128xf32>
    %c0_105 = arith.constant 0 : index
    %c0_106 = arith.constant 0 : index
    %281 = vector.load %arg5[%c0_105, %c0_106] : memref<32x128xf32, #tpu.memory_space<vmem>>, vector<32x128xf32>
    %cst_107 = arith.constant dense<0.000000e+00> : vector<8x128xf32>
    %282 = tpu.matmul %257, %281, %cst_107 {dimension_numbers = #tpu.dot_dimension_numbers<[1], [0], [0], [1], [0, 0, 1, 1], [], []>} : vector<8x32xf32>, vector<32x128xf32>, vector<8x128xf32> -> vector<8x128xf32>
    %283 = arith.addf %280, %282 : vector<8x128xf32>
    %c0_108 = arith.constant 0 : index
    %c0_109 = arith.constant 0 : index
    %284 = vector.load %arg6[%c0_108, %c0_109] : memref<1x128xf32, #tpu.memory_space<vmem>>, vector<1x128xf32>
    %285 = vector.broadcast %284 : vector<1x128xf32> to vector<8x128xf32>
    %286 = arith.addf %283, %285 : vector<8x128xf32>
    %287 = arith.negf %286 : vector<8x128xf32>
    %288 = math.exp %287 : vector<8x128xf32>
    %cst_110 = arith.constant 1.000000e+00 : f32
    %289 = vector.broadcast %cst_110 : f32 to vector<8x128xf32>
    %290 = arith.addf %289, %288 : vector<8x128xf32>
    %291 = arith.divf %289, %290 : vector<8x128xf32>
    %292 = math.tanh %286 : vector<8x128xf32>
    %293 = arith.select %2, %291, %292 : vector<8x128xi1>, vector<8x128xf32>
    %294 = vector.extract_strided_slice %293 {offsets = [0, 0], sizes = [8, 32], strides = [1, 1]} : vector<8x128xf32> to vector<8x32xf32>
    %295 = vector.extract_strided_slice %293 {offsets = [0, 32], sizes = [8, 32], strides = [1, 1]} : vector<8x128xf32> to vector<8x32xf32>
    %296 = vector.extract_strided_slice %293 {offsets = [0, 64], sizes = [8, 32], strides = [1, 1]} : vector<8x128xf32> to vector<8x32xf32>
    %297 = vector.extract_strided_slice %293 {offsets = [0, 96], sizes = [8, 32], strides = [1, 1]} : vector<8x128xf32> to vector<8x32xf32>
    %298 = arith.mulf %295, %255 : vector<8x32xf32>
    %299 = arith.mulf %294, %297 : vector<8x32xf32>
    %300 = arith.addf %298, %299 : vector<8x32xf32>
    %301 = math.tanh %300 : vector<8x32xf32>
    %302 = arith.mulf %296, %301 : vector<8x32xf32>
    %c40_111 = arith.constant 40 : index
    %c0_112 = arith.constant 0 : index
    %303 = vector.load %arg15[%c40_111, %c0_112] : memref<64x32xf32, #tpu.memory_space<vmem>>, vector<8x32xf32>
    tpu.vector_store %arg15[%c40_111, %c0_112], %302 {strides = array<i32>} : memref<64x32xf32, #tpu.memory_space<vmem>>, vector<8x32xf32>,
    %c56 = arith.constant 56 : index
    %c0_113 = arith.constant 0 : index
    %304 = vector.load %arg14[%c56, %c0_113] : memref<64x128xf32, #tpu.memory_space<vmem>>, vector<8x128xf32>
    %c0_114 = arith.constant 0 : index
    %c0_115 = arith.constant 0 : index
    %305 = vector.load %arg2[%c0_114, %c0_115] : memref<32x128xf32, #tpu.memory_space<vmem>>, vector<32x128xf32>
    %cst_116 = arith.constant dense<0.000000e+00> : vector<8x128xf32>
    %306 = tpu.matmul %278, %305, %cst_116 {dimension_numbers = #tpu.dot_dimension_numbers<[1], [0], [0], [1], [0, 0, 1, 1], [], []>} : vector<8x32xf32>, vector<32x128xf32>, vector<8x128xf32> -> vector<8x128xf32>
    %307 = arith.addf %304, %306 : vector<8x128xf32>
    %308 = arith.negf %307 : vector<8x128xf32>
    %309 = math.exp %308 : vector<8x128xf32>
    %cst_117 = arith.constant 1.000000e+00 : f32
    %310 = vector.broadcast %cst_117 : f32 to vector<8x128xf32>
    %311 = arith.addf %310, %309 : vector<8x128xf32>
    %312 = arith.divf %310, %311 : vector<8x128xf32>
    %313 = math.tanh %307 : vector<8x128xf32>
    %314 = arith.select %2, %312, %313 : vector<8x128xi1>, vector<8x128xf32>
    %315 = vector.extract_strided_slice %314 {offsets = [0, 0], sizes = [8, 32], strides = [1, 1]} : vector<8x128xf32> to vector<8x32xf32>
    %316 = vector.extract_strided_slice %314 {offsets = [0, 32], sizes = [8, 32], strides = [1, 1]} : vector<8x128xf32> to vector<8x32xf32>
    %317 = vector.extract_strided_slice %314 {offsets = [0, 64], sizes = [8, 32], strides = [1, 1]} : vector<8x128xf32> to vector<8x32xf32>
    %318 = vector.extract_strided_slice %314 {offsets = [0, 96], sizes = [8, 32], strides = [1, 1]} : vector<8x128xf32> to vector<8x32xf32>
    %319 = arith.mulf %316, %276 : vector<8x32xf32>
    %320 = arith.mulf %315, %318 : vector<8x32xf32>
    %321 = arith.addf %319, %320 : vector<8x32xf32>
    %322 = math.tanh %321 : vector<8x32xf32>
    %323 = arith.mulf %317, %322 : vector<8x32xf32>
    %c0_118 = arith.constant 0 : index
    %c0_119 = arith.constant 0 : index
    %324 = vector.load %arg4[%c0_118, %c0_119] : memref<32x128xf32, #tpu.memory_space<vmem>>, vector<32x128xf32>
    %cst_120 = arith.constant dense<0.000000e+00> : vector<8x128xf32>
    %325 = tpu.matmul %278, %324, %cst_120 {dimension_numbers = #tpu.dot_dimension_numbers<[1], [0], [0], [1], [0, 0, 1, 1], [], []>} : vector<8x32xf32>, vector<32x128xf32>, vector<8x128xf32> -> vector<8x128xf32>
    %c0_121 = arith.constant 0 : index
    %c0_122 = arith.constant 0 : index
    %326 = vector.load %arg5[%c0_121, %c0_122] : memref<32x128xf32, #tpu.memory_space<vmem>>, vector<32x128xf32>
    %cst_123 = arith.constant dense<0.000000e+00> : vector<8x128xf32>
    %327 = tpu.matmul %302, %326, %cst_123 {dimension_numbers = #tpu.dot_dimension_numbers<[1], [0], [0], [1], [0, 0, 1, 1], [], []>} : vector<8x32xf32>, vector<32x128xf32>, vector<8x128xf32> -> vector<8x128xf32>
    %328 = arith.addf %325, %327 : vector<8x128xf32>
    %c0_124 = arith.constant 0 : index
    %c0_125 = arith.constant 0 : index
    %329 = vector.load %arg6[%c0_124, %c0_125] : memref<1x128xf32, #tpu.memory_space<vmem>>, vector<1x128xf32>
    %330 = vector.broadcast %329 : vector<1x128xf32> to vector<8x128xf32>
    %331 = arith.addf %328, %330 : vector<8x128xf32>
    %332 = arith.negf %331 : vector<8x128xf32>
    %333 = math.exp %332 : vector<8x128xf32>
    %cst_126 = arith.constant 1.000000e+00 : f32
    %334 = vector.broadcast %cst_126 : f32 to vector<8x128xf32>
    %335 = arith.addf %334, %333 : vector<8x128xf32>
    %336 = arith.divf %334, %335 : vector<8x128xf32>
    %337 = math.tanh %331 : vector<8x128xf32>
    %338 = arith.select %2, %336, %337 : vector<8x128xi1>, vector<8x128xf32>
    %339 = vector.extract_strided_slice %338 {offsets = [0, 0], sizes = [8, 32], strides = [1, 1]} : vector<8x128xf32> to vector<8x32xf32>
    %340 = vector.extract_strided_slice %338 {offsets = [0, 32], sizes = [8, 32], strides = [1, 1]} : vector<8x128xf32> to vector<8x32xf32>
    %341 = vector.extract_strided_slice %338 {offsets = [0, 64], sizes = [8, 32], strides = [1, 1]} : vector<8x128xf32> to vector<8x32xf32>
    %342 = vector.extract_strided_slice %338 {offsets = [0, 96], sizes = [8, 32], strides = [1, 1]} : vector<8x128xf32> to vector<8x32xf32>
    %343 = arith.mulf %340, %300 : vector<8x32xf32>
    %344 = arith.mulf %339, %342 : vector<8x32xf32>
    %345 = arith.addf %343, %344 : vector<8x32xf32>
    %346 = math.tanh %345 : vector<8x32xf32>
    %347 = arith.mulf %341, %346 : vector<8x32xf32>
    %c48_127 = arith.constant 48 : index
    %c0_128 = arith.constant 0 : index
    %348 = vector.load %arg15[%c48_127, %c0_128] : memref<64x32xf32, #tpu.memory_space<vmem>>, vector<8x32xf32>
    tpu.vector_store %arg15[%c48_127, %c0_128], %347 {strides = array<i32>} : memref<64x32xf32, #tpu.memory_space<vmem>>, vector<8x32xf32>,
    %c0_129 = arith.constant 0 : index
    %c0_130 = arith.constant 0 : index
    %349 = vector.load %arg4[%c0_129, %c0_130] : memref<32x128xf32, #tpu.memory_space<vmem>>, vector<32x128xf32>
    %cst_131 = arith.constant dense<0.000000e+00> : vector<8x128xf32>
    %350 = tpu.matmul %323, %349, %cst_131 {dimension_numbers = #tpu.dot_dimension_numbers<[1], [0], [0], [1], [0, 0, 1, 1], [], []>} : vector<8x32xf32>, vector<32x128xf32>, vector<8x128xf32> -> vector<8x128xf32>
    %c0_132 = arith.constant 0 : index
    %c0_133 = arith.constant 0 : index
    %351 = vector.load %arg5[%c0_132, %c0_133] : memref<32x128xf32, #tpu.memory_space<vmem>>, vector<32x128xf32>
    %cst_134 = arith.constant dense<0.000000e+00> : vector<8x128xf32>
    %352 = tpu.matmul %347, %351, %cst_134 {dimension_numbers = #tpu.dot_dimension_numbers<[1], [0], [0], [1], [0, 0, 1, 1], [], []>} : vector<8x32xf32>, vector<32x128xf32>, vector<8x128xf32> -> vector<8x128xf32>
    %353 = arith.addf %350, %352 : vector<8x128xf32>
    %c0_135 = arith.constant 0 : index
    %c0_136 = arith.constant 0 : index
    %354 = vector.load %arg6[%c0_135, %c0_136] : memref<1x128xf32, #tpu.memory_space<vmem>>, vector<1x128xf32>
    %355 = vector.broadcast %354 : vector<1x128xf32> to vector<8x128xf32>
    %356 = arith.addf %353, %355 : vector<8x128xf32>
    %357 = arith.negf %356 : vector<8x128xf32>
    %358 = math.exp %357 : vector<8x128xf32>
    %cst_137 = arith.constant 1.000000e+00 : f32
    %359 = vector.broadcast %cst_137 : f32 to vector<8x128xf32>
    %360 = arith.addf %359, %358 : vector<8x128xf32>
    %361 = arith.divf %359, %360 : vector<8x128xf32>
    %362 = math.tanh %356 : vector<8x128xf32>
    %363 = arith.select %2, %361, %362 : vector<8x128xi1>, vector<8x128xf32>
    %364 = vector.extract_strided_slice %363 {offsets = [0, 0], sizes = [8, 32], strides = [1, 1]} : vector<8x128xf32> to vector<8x32xf32>
    %365 = vector.extract_strided_slice %363 {offsets = [0, 32], sizes = [8, 32], strides = [1, 1]} : vector<8x128xf32> to vector<8x32xf32>
    %366 = vector.extract_strided_slice %363 {offsets = [0, 64], sizes = [8, 32], strides = [1, 1]} : vector<8x128xf32> to vector<8x32xf32>
    %367 = vector.extract_strided_slice %363 {offsets = [0, 96], sizes = [8, 32], strides = [1, 1]} : vector<8x128xf32> to vector<8x32xf32>
    %368 = arith.mulf %365, %345 : vector<8x32xf32>
    %369 = arith.mulf %364, %367 : vector<8x32xf32>
    %370 = arith.addf %368, %369 : vector<8x32xf32>
    %371 = math.tanh %370 : vector<8x32xf32>
    %372 = arith.mulf %366, %371 : vector<8x32xf32>
    %c56_138 = arith.constant 56 : index
    %c0_139 = arith.constant 0 : index
    %373 = vector.load %arg15[%c56_138, %c0_139] : memref<64x32xf32, #tpu.memory_space<vmem>>, vector<8x32xf32>
    tpu.vector_store %arg15[%c56_138, %c0_139], %372 {strides = array<i32>} : memref<64x32xf32, #tpu.memory_space<vmem>>, vector<8x32xf32>,
    %c0_140 = arith.constant 0 : index
    %c0_141 = arith.constant 0 : index
    %374 = vector.load %arg15[%c0_140, %c0_141] : memref<64x32xf32, #tpu.memory_space<vmem>>, vector<64x32xf32>
    %c0_142 = arith.constant 0 : index
    %c0_143 = arith.constant 0 : index
    %375 = vector.load %arg7[%c0_142, %c0_143] : memref<32x32xf32, #tpu.memory_space<vmem>>, vector<32x32xf32>
    %cst_144 = arith.constant dense<0.000000e+00> : vector<64x32xf32>
    %376 = tpu.matmul %374, %375, %cst_144 {dimension_numbers = #tpu.dot_dimension_numbers<[1], [0], [0], [1], [0, 0, 1, 1], [], []>} : vector<64x32xf32>, vector<32x32xf32>, vector<64x32xf32> -> vector<64x32xf32>
    %c0_145 = arith.constant 0 : index
    %c0_146 = arith.constant 0 : index
    %377 = vector.load %arg8[%c0_145, %c0_146] : memref<1x32xf32, #tpu.memory_space<vmem>>, vector<1x32xf32>
    %378 = vector.broadcast %377 : vector<1x32xf32> to vector<64x32xf32>
    %379 = arith.addf %376, %378 : vector<64x32xf32>
    %cst_147 = arith.constant dense<0.000000e+00> : vector<64xf32>
    %380 = vector.multi_reduction <add>, %379, %cst_147 [1] : vector<64x32xf32> to vector<64xf32>
    %381 = vector.shape_cast %380 : vector<64xf32> to vector<64x1xf32>
    %cst_148 = arith.constant 3.200000e+01 : f32
    %382 = vector.broadcast %cst_148 : f32 to vector<64x1xf32>
    %383 = arith.divf %381, %382 : vector<64x1xf32>
    %384 = vector.broadcast %383 : vector<64x1xf32> to vector<64x32xf32>
    %385 = arith.subf %379, %384 : vector<64x32xf32>
    %386 = arith.mulf %385, %385 : vector<64x32xf32>
    %cst_149 = arith.constant dense<0.000000e+00> : vector<64xf32>
    %387 = vector.multi_reduction <add>, %386, %cst_149 [1] : vector<64x32xf32> to vector<64xf32>
    %388 = vector.shape_cast %387 : vector<64xf32> to vector<64x1xf32>
    %cst_150 = arith.constant 3.200000e+01 : f32
    %389 = vector.broadcast %cst_150 : f32 to vector<64x1xf32>
    %390 = arith.divf %388, %389 : vector<64x1xf32>
    %391 = vector.broadcast %383 : vector<64x1xf32> to vector<64x32xf32>
    %392 = arith.subf %379, %391 : vector<64x32xf32>
    %cst_151 = arith.constant 9.99999974E-6 : f32
    %393 = vector.broadcast %cst_151 : f32 to vector<64x1xf32>
    %394 = arith.addf %390, %393 : vector<64x1xf32>
    %395 = math.rsqrt %394 : vector<64x1xf32>
    %396 = vector.broadcast %395 : vector<64x1xf32> to vector<64x32xf32>
    %397 = arith.mulf %392, %396 : vector<64x32xf32>
    %c0_152 = arith.constant 0 : index
    %c0_153 = arith.constant 0 : index
    %398 = vector.load %arg9[%c0_152, %c0_153] : memref<1x32xf32, #tpu.memory_space<vmem>>, vector<1x32xf32>
    %399 = vector.broadcast %398 : vector<1x32xf32> to vector<64x32xf32>
    %400 = arith.mulf %397, %399 : vector<64x32xf32>
    %c0_154 = arith.constant 0 : index
    %c0_155 = arith.constant 0 : index
    %401 = vector.load %arg10[%c0_154, %c0_155] : memref<1x32xf32, #tpu.memory_space<vmem>>, vector<1x32xf32>
    %402 = vector.broadcast %401 : vector<1x32xf32> to vector<64x32xf32>
    %403 = arith.addf %400, %402 : vector<64x32xf32>
    %c0_156 = arith.constant 0 : index
    %c0_157 = arith.constant 0 : index
    %404 = vector.load %arg11[%c0_156, %c0_157] : memref<32x24xf32, #tpu.memory_space<vmem>>, vector<32x24xf32>
    %cst_158 = arith.constant dense<0.000000e+00> : vector<64x24xf32>
    %405 = tpu.matmul %403, %404, %cst_158 {dimension_numbers = #tpu.dot_dimension_numbers<[1], [0], [0], [1], [0, 0, 1, 1], [], []>} : vector<64x32xf32>, vector<32x24xf32>, vector<64x24xf32> -> vector<64x24xf32>
    %c0_159 = arith.constant 0 : index
    %c0_160 = arith.constant 0 : index
    %406 = vector.load %arg12[%c0_159, %c0_160] : memref<1x24xf32, #tpu.memory_space<vmem>>, vector<1x24xf32>
    %407 = vector.broadcast %406 : vector<1x24xf32> to vector<64x24xf32>
    %408 = arith.addf %405, %407 : vector<64x24xf32>
    %c0_161 = arith.constant 0 : index
    %c0_162 = arith.constant 0 : index
    %409 = vector.load %arg13[%c0_161, %c0_162] : memref<64x24xf32, #tpu.memory_space<vmem>>, vector<64x24xf32>
    tpu.vector_store %arg13[%c0_161, %c0_162], %408 {strides = array<i32>} : memref<64x24xf32, #tpu.memory_space<vmem>>, vector<64x24xf32>,
    return
  }
}

</mosaic_0001>

<llo_original>
// kernel: decoder_forward.1
$region0: #{decoder_forward.1}
  #allocation0 [shape = 'u32[]', space=smem, size = 0x4, offset = 0x4, fixed_abs, tag = 'smem constant byte address 0x4 - core index']
  #allocation1 [shape = 'u32[144,128]{1,0:T(1,128)}', space=vmem, size = 0x12000, scoped, tag = 'internal scratch']
  #allocation2 [shape = 'f32[64,128]{1,0:T(8,128)}', space=vmem, size = 0x8000, scoped, tag = 'scratch operand']
  #allocation3 [shape = 'f32[64,32]{1,0:T(8,128)}', space=vmem, size = 0x8000, scoped, tag = 'scratch operand']
  %s0 = inlined_call_operand.vmem [shape: f32[64,32], index: 0, kind: input, shape index: {}]
  %s1 = inlined_call_operand.vmem [shape: f32[32,128], index: 1, kind: input, shape index: {}]
  %s2 = inlined_call_operand.vmem [shape: f32[32,128], index: 2, kind: input, shape index: {}]
  %s3 = inlined_call_operand.vmem [shape: f32[1,128], index: 3, kind: input, shape index: {}]
  %s4 = inlined_call_operand.vmem [shape: f32[32,128], index: 4, kind: input, shape index: {}]
  %s5 = inlined_call_operand.vmem [shape: f32[32,128], index: 5, kind: input, shape index: {}]
  %s6 = inlined_call_operand.vmem [shape: f32[1,128], index: 6, kind: input, shape index: {}]
  %s7 = inlined_call_operand.vmem [shape: f32[32,32], index: 7, kind: input, shape index: {}]
  %s8 = inlined_call_operand.hbm [shape: f32[1,32], index: 8, kind: input, shape index: {}]
  %s9 = inlined_call_operand.hbm [shape: f32[1,32], index: 9, kind: input, shape index: {}]
  %s10 = inlined_call_operand.vmem [shape: f32[1,32], index: 10, kind: input, shape index: {}]
  %s11 = inlined_call_operand.vmem [shape: f32[32,24], index: 11, kind: input, shape index: {}]
  %s12 = inlined_call_operand.vmem [shape: f32[1,24], index: 12, kind: input, shape index: {}]
  %s13 = inlined_call_operand.vmem [shape: f32[64,24], index: 13, kind: output, shape index: {}]
  %s14 = sld [smem:[#allocation0]]
  $region70: #{decoder_forward.1} parent=0
    _
  %s16 = ssub.s32 1, %s14
  %s17 = scalar_select 0, %s16, %s14
  $region1: #{decoder_forward.1} parent=0
    #allocation4 [shape = 'u8[512]{0}', space=vmem, size = 0x400, scoped, tag = 'input window, operand 8, single buffered']
    #allocation5 [shape = 's32[1]{0}', space=sflag, size = 0x4, scoped, tag = 'scoped memory for decoder_forward.1']
    #allocation6 [shape = 'u8[512]{0}', space=vmem, size = 0x400, scoped, tag = 'input window, operand 9, single buffered']
    #allocation7 [shape = 's32[1]{0}', space=sflag, size = 0x4, scoped, tag = 'scoped memory for decoder_forward.1']
    %18 = vsyncpa [#allocation5], 0
    %19 = vsyncpa [#allocation7], 0
    // Predicated region
    $region2: #{decoder_forward.1} parent=1 // pred_check
      _
    $region3: #{decoder_forward.1} parent=1 // pred_check_branch
      %21 = sbr.rel (0) target = $region5
    $region4: #{decoder_forward.1} parent=1 // pred_region
      _
    $region5: #{decoder_forward.1} parent=1 // pred_fallthru
      _
    // Predicated region
    $region6: #{decoder_forward.1} parent=1 // pred_check
      _
    $region7: #{decoder_forward.1} parent=1 // pred_check_branch
      %23 = sbr.rel (0) target = $region9
    $region8: #{decoder_forward.1} parent=1 // pred_region
      _
    $region9: #{decoder_forward.1} parent=1 // pred_fallthru
      _
    // Predicated region
    $region10: #{decoder_forward.1} parent=1 // pred_check
      _
    $region11: #{decoder_forward.1} parent=1 // pred_check_branch
      %25 = sbr.rel (0) target = $region13
    $region12: #{decoder_forward.1} parent=1 // pred_region
      _
    $region13: #{decoder_forward.1} parent=1 // pred_fallthru
      _
    // Predicated region
    $region14: #{decoder_forward.1} parent=1 // pred_check
      _
    $region15: #{decoder_forward.1} parent=1 // pred_check_branch
      %27 = sbr.rel (0) target = $region17
    $region16: #{decoder_forward.1} parent=1 // pred_region
      _
    $region17: #{decoder_forward.1} parent=1 // pred_fallthru
      _
    // Predicated region
    $region18: #{decoder_forward.1} parent=1 // pred_check
      _
    $region19: #{decoder_forward.1} parent=1 // pred_check_branch
      %29 = sbr.rel (0) target = $region21
    $region20: #{decoder_forward.1} parent=1 // pred_region
      _
    $region21: #{decoder_forward.1} parent=1 // pred_fallthru
      _
    // Predicated region
    $region22: #{decoder_forward.1} parent=1 // pred_check
      _
    $region23: #{decoder_forward.1} parent=1 // pred_check_branch
      %31 = sbr.rel (0) target = $region25
    $region24: #{decoder_forward.1} parent=1 // pred_region
      _
    $region25: #{decoder_forward.1} parent=1 // pred_fallthru
      _
    // Predicated region
    $region26: #{decoder_forward.1} parent=1 // pred_check
      _
    $region27: #{decoder_forward.1} parent=1 // pred_check_branch
      %33 = sbr.rel (0) target = $region29
    $region28: #{decoder_forward.1} parent=1 // pred_region
      _
    $region29: #{decoder_forward.1} parent=1 // pred_fallthru
      _
    // Predicated region
    $region30: #{decoder_forward.1} parent=1 // pred_check
      _
    $region31: #{decoder_forward.1} parent=1 // pred_check_branch
      %35 = sbr.rel (0) target = $region33
    $region32: #{decoder_forward.1} parent=1 // pred_region
      _
    $region33: #{decoder_forward.1} parent=1 // pred_fallthru
      _
    // Predicated region
    $region34: #{decoder_forward.1} parent=1 // pred_check
      _
    $region35: #{decoder_forward.1} parent=1 // pred_check_branch
      %37 = sbr.rel (0) target = $region37
    $region36: #{decoder_forward.1} parent=1 // pred_region
      %s39 = ssub.s32 16, 16
      %40 = vsyncadd [#allocation5], %s39
      %s42 = sshll.u32 [#allocation4], 4
      %s43 = int_to_ptr.vmem [resolvable:$true] %s42
      %45 = dma.hbm_to_vmem [thread:$0]  %s8, 16, %s43, [#allocation5]
    $region37: #{decoder_forward.1} parent=1 // pred_fallthru
      _
    // Predicated region
    $region38: #{decoder_forward.1} parent=1 // pred_check
      _
    $region39: #{decoder_forward.1} parent=1 // pred_check_branch
      %47 = sbr.rel (0) target = $region41
    $region40: #{decoder_forward.1} parent=1 // pred_region
      %s49 = ssub.s32 16, 16
      %50 = vsyncadd [#allocation7], %s49
      %s52 = sshll.u32 [#allocation6], 4
      %s53 = int_to_ptr.vmem [resolvable:$true] %s52
      %55 = dma.hbm_to_vmem [thread:$0]  %s9, 16, %s53, [#allocation7]
    $region41: #{decoder_forward.1} parent=1 // pred_fallthru
      _
    // Predicated region
    $region42: #{decoder_forward.1} parent=1 // pred_check
      _
    $region43: #{decoder_forward.1} parent=1 // pred_check_branch
      %57 = sbr.rel (0) target = $region45
    $region44: #{decoder_forward.1} parent=1 // pred_region
      _
    $region45: #{decoder_forward.1} parent=1 // pred_fallthru
      _
    // Predicated region
    $region46: #{decoder_forward.1} parent=1 // pred_check
      _
    $region47: #{decoder_forward.1} parent=1 // pred_check_branch
      %59 = sbr.rel (0) target = $region49
    $region48: #{decoder_forward.1} parent=1 // pred_region
      _
    $region49: #{decoder_forward.1} parent=1 // pred_fallthru
      _
    // Predicated region
    $region50: #{decoder_forward.1} parent=1 // pred_check
      _
    $region51: #{decoder_forward.1} parent=1 // pred_check_branch
      %61 = sbr.rel (0) target = $region53
    $region52: #{decoder_forward.1} parent=1 // pred_region
      _
    $region53: #{decoder_forward.1} parent=1 // pred_fallthru
      _
    // Predicated region
    $region54: #{decoder_forward.1} parent=1 // pred_check
      _
    $region55: #{decoder_forward.1} parent=1 // pred_check_branch
      %63 = sbr.rel (0) target = $region57
    $region56: #{decoder_forward.1} parent=1 // pred_region
      %64 = dma.done [#allocation5], 16
    $region57: #{decoder_forward.1} parent=1 // pred_fallthru
      _
    // Predicated region
    $region58: #{decoder_forward.1} parent=1 // pred_check
      _
    $region59: #{decoder_forward.1} parent=1 // pred_check_branch
      %66 = sbr.rel (0) target = $region61
    $region60: #{decoder_forward.1} parent=1 // pred_region
      %67 = dma.done [#allocation7], 16
    $region61: #{decoder_forward.1} parent=1 // pred_fallthru
      _
    %v68 = vlaneseq
    %v69 = vand.u32 %v68, 127
    %vm70 = vcmp.lt.s32.totalorder %v69, 96
    %v71 = vld [vmem:[%s0] sm:$0xff]
    %v72 = vld [vmem:[%s0 + $0x8] sm:$0xff]
    %v73 = vld [vmem:[%s0 + $0x10] sm:$0xff]
    %v74 = vld [vmem:[%s0 + $0x18] sm:$0xff]
    %v75 = vld [vmem:[%s0 + $0x20] sm:$0xff]
    %v76 = vld [vmem:[%s0 + $0x28] sm:$0xff]
    %v77 = vld [vmem:[%s0 + $0x30] sm:$0xff]
    %v78 = vld [vmem:[%s0 + $0x38] sm:$0xff]
    %v79 = vld [vmem:[%s1] sm:$0xff]
    %v80 = vld [vmem:[%s1 + $0x8] sm:$0xff]
    %v81 = vld [vmem:[%s1 + $0x10] sm:$0xff]
    %v82 = vld [vmem:[%s1 + $0x18] sm:$0xff]
    %v83 = vld [vmem:[%s3] sm:$0x1]
    %v85 = vlaneseq
    %v86 = vshrl.u32 %v85, 7
    %v87 = vsub.s32 0, %v86
    %v88 = vrot.slane %v83, %v87
    %vm90 = vcmask 261120
    %v92 = vsel %vm90, %v71, 0
    %v95 = vsel %vm90, %v72, 0
    %v98 = vsel %vm90, %v73, 0
    %v101 = vsel %vm90, %v74, 0
    %v104 = vsel %vm90, %v75, 0
    %v107 = vsel %vm90, %v76, 0
    %v110 = vsel %vm90, %v77, 0
    %v113 = vsel %vm90, %v78, 0
    %115 = vmatprep.subr.mxu0 0.0
    %116 = vmatpush1.msra.mxu0 %v79
    %117 = vmatprep.subr.mxu0 0.0
    %118 = vmatpush1.msra.mxu0 %v80
    %119 = vmatprep.subr.mxu0 0.0
    %120 = vmatpush1.msra.mxu0 %v81
    %121 = vmatprep.subr.mxu0 0.0
    %122 = vmatpush1.msra.mxu0 %v82
    %123 = vmatprep.subr.mxu0 0.0
    %124 = vmatpush1.msra.mxu0 0.0
    %125 = vmatprep.subr.mxu0 0.0
    %126 = vmatpush1.msra.mxu0 0.0
    %127 = vmatprep.subr.mxu0 0.0
    %128 = vmatpush1.msra.mxu0 0.0
    %129 = vmatprep.subr.mxu0 0.0
    %130 = vmatpush1.msra.mxu0 0.0
    %131 = vmatprep.subr.mxu0 0.0
    %132 = vmatpush1.msra.mxu0 0.0
    %133 = vmatprep.subr.mxu0 0.0
    %134 = vmatpush1.msra.mxu0 0.0
    %135 = vmatprep.subr.mxu0 0.0
    %136 = vmatpush1.msra.mxu0 0.0
    %137 = vmatprep.subr.mxu0 0.0
    %138 = vmatpush1.msra.mxu0 0.0
    %139 = vmatprep.subr.mxu0 0.0
    %140 = vmatpush1.msra.mxu0 0.0
    %141 = vmatprep.subr.mxu0 0.0
    %142 = vmatpush1.msra.mxu0 0.0
    %143 = vmatprep.subr.mxu0 0.0
    %144 = vmatpush1.msra.mxu0 0.0
    %145 = vmatprep.subr.mxu0 0.0
    %146 = vmatpush1.msra.mxu0 0.0
    %147 = vmatprep.subr.mxu0 0.0
    %148 = vmatpush1.msra.mxu0 0.0
    %149 = vmatprep.subr.mxu0 0.0
    %150 = vmatpush1.msra.mxu0 0.0
    %151 = vmatprep.subr.mxu0 0.0
    %152 = vmatpush1.msra.mxu0 0.0
    %153 = vmatprep.subr.mxu0 0.0
    %154 = vmatpush1.msra.mxu0 0.0
    %155 = vmatprep.subr.mxu0 0.0
    %156 = vmatpush1.msra.mxu0 0.0
    %157 = vmatprep.subr.mxu0 0.0
    %158 = vmatpush1.msra.mxu0 0.0
    %159 = vmatprep.subr.mxu0 0.0
    %160 = vmatpush1.msra.mxu0 0.0
    %161 = vmatprep.subr.mxu0 0.0
    %162 = vmatpush1.msra.mxu0 0.0
    %163 = vmatprep.subr.mxu0 0.0
    %164 = vmatpush1.msra.mxu0 0.0
    %165 = vmatprep.subr.mxu0 0.0
    %166 = vmatpush1.msra.mxu0 0.0
    %167 = vmatprep.subr.mxu0 0.0
    %168 = vmatpush1.msra.mxu0 0.0
    %169 = vmatprep.subr.mxu0 0.0
    %170 = vmatpush1.msra.mxu0 0.0
    %171 = vmatprep.subr.mxu0 0.0
    %172 = vmatpush1.msra.mxu0 0.0
    %173 = vmatprep.subr.mxu0 0.0
    %174 = vmatpush1.msra.mxu0 0.0
    %175 = vmatprep.subr.mxu0 0.0
    %176 = vmatpush1.msra.mxu0 0.0
    %177 = vmatprep.subr.mxu0 0.0
    %178 = vmatpush1.msra.mxu0 0.0
    %179 = vmatprep.mubr.f32.mxu0 0.0
    %180 = vmatmul.mubr.f32.gmra.mrb[0].mxu0 %v92
    %v181 = vpop.f32.mrb[0].mxu0
    %v182 = vadd.f32 %v88, %v181
    %v183 = vpop.f32.mrb[0].mxu0
    %184 = vmatprep.mubr.f32.mxu0 0.0
    %185 = vmatmul.mubr.f32.gmra.mrb[0].mxu0 %v95
    %v186 = vpop.f32.mrb[0].mxu0
    %v187 = vadd.f32 %v88, %v186
    %v188 = vpop.f32.mrb[0].mxu0
    %189 = vmatprep.mubr.f32.mxu0 0.0
    %190 = vmatmul.mubr.f32.gmra.mrb[0].mxu0 %v98
    %v191 = vpop.f32.mrb[0].mxu0
    %v192 = vadd.f32 %v88, %v191
    %v193 = vpop.f32.mrb[0].mxu0
    %194 = vmatprep.mubr.f32.mxu0 0.0
    %195 = vmatmul.mubr.f32.gmra.mrb[0].mxu0 %v101
    %v196 = vpop.f32.mrb[0].mxu0
    %v197 = vadd.f32 %v88, %v196
    %v198 = vpop.f32.mrb[0].mxu0
    %199 = vmatprep.mubr.f32.mxu0 0.0
    %200 = vmatmul.mubr.f32.gmra.mrb[0].mxu0 %v104
    %v201 = vpop.f32.mrb[0].mxu0
    %v202 = vadd.f32 %v88, %v201
    %v203 = vpop.f32.mrb[0].mxu0
    %204 = vmatprep.mubr.f32.mxu0 0.0
    %205 = vmatmul.mubr.f32.gmra.mrb[0].mxu0 %v107
    %v206 = vpop.f32.mrb[0].mxu0
    %v207 = vadd.f32 %v88, %v206
    %v208 = vpop.f32.mrb[0].mxu0
    %209 = vmatprep.mubr.f32.mxu0 0.0
    %210 = vmatmul.mubr.f32.gmra.mrb[0].mxu0 %v110
    %v211 = vpop.f32.mrb[0].mxu0
    %v212 = vadd.f32 %v88, %v211
    %v213 = vpop.f32.mrb[0].mxu0
    %214 = vmatprep.mubr.f32.mxu0 0.0
    %215 = vmatmul.mubr.f32.gmra.mrb[0].mxu0 %v113
    %v216 = vpop.f32.mrb[0].mxu0
    %v217 = vadd.f32 %v88, %v216
    %v218 = vpop.f32.mrb[0].mxu0
    %219 = vdwg.mxu0
    %220 = vst [vmem:[#allocation2] sm:$0xff] %v182
    %221 = vst [vmem:[#allocation2 + $0x8] sm:$0xff] %v187
    %222 = vst [vmem:[#allocation2 + $0x10] sm:$0xff] %v192
    %223 = vst [vmem:[#allocation2 + $0x18] sm:$0xff] %v197
    %224 = vst [vmem:[#allocation2 + $0x20] sm:$0xff] %v202
    %225 = vst [vmem:[#allocation2 + $0x28] sm:$0xff] %v207
    %226 = vst [vmem:[#allocation2 + $0x30] sm:$0xff] %v212
    %227 = vst [vmem:[#allocation2 + $0x38] sm:$0xff] %v217
    %v228 = vld [vmem:[#allocation2] sm:$0xff]
    %v229 = vld [vmem:[%s2] sm:$0xff]
    %v230 = vld [vmem:[%s2 + $0x8] sm:$0xff]
    %v231 = vld [vmem:[%s2 + $0x10] sm:$0xff]
    %v232 = vld [vmem:[%s2 + $0x18] sm:$0xff]
    %v234 = vsel %vm90, 0.0, 0
    %236 = vmatprep.subr.mxu0 0.0
    %237 = vmatpush1.msra.mxu0 %v229
    %238 = vmatprep.subr.mxu0 0.0
    %239 = vmatpush1.msra.mxu0 %v230
    %240 = vmatprep.subr.mxu0 0.0
    %241 = vmatpush1.msra.mxu0 %v231
    %242 = vmatprep.subr.mxu0 0.0
    %243 = vmatpush1.msra.mxu0 %v232
    %244 = vmatprep.subr.mxu0 0.0
    %245 = vmatpush1.msra.mxu0 0.0
    %246 = vmatprep.subr.mxu0 0.0
    %247 = vmatpush1.msra.mxu0 0.0
    %248 = vmatprep.subr.mxu0 0.0
    %249 = vmatpush1.msra.mxu0 0.0
    %250 = vmatprep.subr.mxu0 0.0
    %251 = vmatpush1.msra.mxu0 0.0
    %252 = vmatprep.subr.mxu0 0.0
    %253 = vmatpush1.msra.mxu0 0.0
    %254 = vmatprep.subr.mxu0 0.0
    %255 = vmatpush1.msra.mxu0 0.0
    %256 = vmatprep.subr.mxu0 0.0
    %257 = vmatpush1.msra.mxu0 0.0
    %258 = vmatprep.subr.mxu0 0.0
    %259 = vmatpush1.msra.mxu0 0.0
    %260 = vmatprep.subr.mxu0 0.0
    %261 = vmatpush1.msra.mxu0 0.0
    %262 = vmatprep.subr.mxu0 0.0
    %263 = vmatpush1.msra.mxu0 0.0
    %264 = vmatprep.subr.mxu0 0.0
    %265 = vmatpush1.msra.mxu0 0.0
    %266 = vmatprep.subr.mxu0 0.0
    %267 = vmatpush1.msra.mxu0 0.0
    %268 = vmatprep.subr.mxu0 0.0
    %269 = vmatpush1.msra.mxu0 0.0
    %270 = vmatprep.subr.mxu0 0.0
    %271 = vmatpush1.msra.mxu0 0.0
    %272 = vmatprep.subr.mxu0 0.0
    %273 = vmatpush1.msra.mxu0 0.0
    %274 = vmatprep.subr.mxu0 0.0
    %275 = vmatpush1.msra.mxu0 0.0
    %276 = vmatprep.subr.mxu0 0.0
    %277 = vmatpush1.msra.mxu0 0.0
    %278 = vmatprep.subr.mxu0 0.0
    %279 = vmatpush1.msra.mxu0 0.0
    %280 = vmatprep.subr.mxu0 0.0
    %281 = vmatpush1.msra.mxu0 0.0
    %282 = vmatprep.subr.mxu0 0.0
    %283 = vmatpush1.msra.mxu0 0.0
    %284 = vmatprep.subr.mxu0 0.0
    %285 = vmatpush1.msra.mxu0 0.0
    %286 = vmatprep.subr.mxu0 0.0
    %287 = vmatpush1.msra.mxu0 0.0
    %288 = vmatprep.subr.mxu0 0.0
    %289 = vmatpush1.msra.mxu0 0.0
    %290 = vmatprep.subr.mxu0 0.0
    %291 = vmatpush1.msra.mxu0 0.0
    %292 = vmatprep.subr.mxu0 0.0
    %293 = vmatpush1.msra.mxu0 0.0
    %294 = vmatprep.subr.mxu0 0.0
    %295 = vmatpush1.msra.mxu0 0.0
    %296 = vmatprep.subr.mxu0 0.0
    %297 = vmatpush1.msra.mxu0 0.0
    %298 = vmatprep.subr.mxu0 0.0
    %299 = vmatpush1.msra.mxu0 0.0
    %300 = vmatprep.mubr.f32.mxu0 0.0
    %301 = vmatmul.mubr.f32.gmra.mrb[0].mxu0 %v234
    %v302 = vpop.f32.mrb[0].mxu0
    %v303 = vadd.f32 0.0, %v302
    %v304 = vpop.f32.mrb[0].mxu0
    %305 = vdwg.mxu0
    %v306 = vadd.f32 %v228, %v303
    %v307 = vxor.u32 %v306, 2147483648
    %v308 = vmul.f32 %v307, 1.442695
    %v309 = vpow.pop %v308
    %v310 = vadd.f32 %v309, 1.0
    %v311 = vrcp.pop %v310
    %v312 = vmul.f32 1.0, %v311
    %v313 = vtanh.pop %v306
    %v314 = vsel %vm70, %v312, %v313
    %v315 = vmul.f32 %v314, 0.0
    %317 = vrot.lane.b32.xlu0 %v314, 32
    %v318 = vpop.permute.xlu0 %317
    %v320 = vmul.f32 %v314, %v318
    %322 = vrot.lane.b32.xlu0 %v320, 32
    %v323 = vpop.permute.xlu0 %322
    %v325 = vadd.f32 %v315, %v323
    %v326 = vtanh.pop %v325
    %328 = vrot.lane.b32.xlu0 %v326, 32
    %v329 = vpop.permute.xlu0 %328
    %v331 = vmul.f32 %v314, %v329
    %v332 = vld [vmem:[#allocation2 + $0x8] sm:$0xff]
    %334 = vrot.lane.b32.xlu0 %v331, 64
    %v335 = vpop.permute.xlu0 %334
    %v336 = vsel %vm90, %v335, 0
    %338 = vmatprep.subr.mxu0 0.0
    %339 = vmatpush1.msra.mxu0 %v229
    %340 = vmatprep.subr.mxu0 0.0
    %341 = vmatpush1.msra.mxu0 %v230
    %342 = vmatprep.subr.mxu0 0.0
    %343 = vmatpush1.msra.mxu0 %v231
    %344 = vmatprep.subr.mxu0 0.0
    %345 = vmatpush1.msra.mxu0 %v232
    %346 = vmatprep.subr.mxu0 0.0
    %347 = vmatpush1.msra.mxu0 0.0
    %348 = vmatprep.subr.mxu0 0.0
    %349 = vmatpush1.msra.mxu0 0.0
    %350 = vmatprep.subr.mxu0 0.0
    %351 = vmatpush1.msra.mxu0 0.0
    %352 = vmatprep.subr.mxu0 0.0
    %353 = vmatpush1.msra.mxu0 0.0
    %354 = vmatprep.subr.mxu0 0.0
    %355 = vmatpush1.msra.mxu0 0.0
    %356 = vmatprep.subr.mxu0 0.0
    %357 = vmatpush1.msra.mxu0 0.0
    %358 = vmatprep.subr.mxu0 0.0
    %359 = vmatpush1.msra.mxu0 0.0
    %360 = vmatprep.subr.mxu0 0.0
    %361 = vmatpush1.msra.mxu0 0.0
    %362 = vmatprep.subr.mxu0 0.0
    %363 = vmatpush1.msra.mxu0 0.0
    %364 = vmatprep.subr.mxu0 0.0
    %365 = vmatpush1.msra.mxu0 0.0
    %366 = vmatprep.subr.mxu0 0.0
    %367 = vmatpush1.msra.mxu0 0.0
    %368 = vmatprep.subr.mxu0 0.0
    %369 = vmatpush1.msra.mxu0 0.0
    %370 = vmatprep.subr.mxu0 0.0
    %371 = vmatpush1.msra.mxu0 0.0
    %372 = vmatprep.subr.mxu0 0.0
    %373 = vmatpush1.msra.mxu0 0.0
    %374 = vmatprep.subr.mxu0 0.0
    %375 = vmatpush1.msra.mxu0 0.0
    %376 = vmatprep.subr.mxu0 0.0
    %377 = vmatpush1.msra.mxu0 0.0
    %378 = vmatprep.subr.mxu0 0.0
    %379 = vmatpush1.msra.mxu0 0.0
    %380 = vmatprep.subr.mxu0 0.0
    %381 = vmatpush1.msra.mxu0 0.0
    %382 = vmatprep.subr.mxu0 0.0
    %383 = vmatpush1.msra.mxu0 0.0
    %384 = vmatprep.subr.mxu0 0.0
    %385 = vmatpush1.msra.mxu0 0.0
    %386 = vmatprep.subr.mxu0 0.0
    %387 = vmatpush1.msra.mxu0 0.0
    %388 = vmatprep.subr.mxu0 0.0
    %389 = vmatpush1.msra.mxu0 0.0
    %390 = vmatprep.subr.mxu0 0.0
    %391 = vmatpush1.msra.mxu0 0.0
    %392 = vmatprep.subr.mxu0 0.0
    %393 = vmatpush1.msra.mxu0 0.0
    %394 = vmatprep.subr.mxu0 0.0
    %395 = vmatpush1.msra.mxu0 0.0
    %396 = vmatprep.subr.mxu0 0.0
    %397 = vmatpush1.msra.mxu0 0.0
    %398 = vmatprep.subr.mxu0 0.0
    %399 = vmatpush1.msra.mxu0 0.0
    %400 = vmatprep.subr.mxu0 0.0
    %401 = vmatpush1.msra.mxu0 0.0
    %402 = vmatprep.mubr.f32.mxu0 0.0
    %403 = vmatmul.mubr.f32.gmra.mrb[0].mxu0 %v336
    %v404 = vpop.f32.mrb[0].mxu0
    %v405 = vadd.f32 0.0, %v404
    %v406 = vpop.f32.mrb[0].mxu0
    %407 = vdwg.mxu0
    %v408 = vadd.f32 %v332, %v405
    %v409 = vxor.u32 %v408, 2147483648
    %v410 = vmul.f32 %v409, 1.442695
    %v411 = vpow.pop %v410
    %v412 = vadd.f32 %v411, 1.0
    %v413 = vrcp.pop %v412
    %v414 = vmul.f32 1.0, %v413
    %v415 = vtanh.pop %v408
    %v416 = vsel %vm70, %v414, %v415
    %v417 = vmul.f32 %v416, %v325
    %419 = vrot.lane.b32.xlu0 %v416, 32
    %v420 = vpop.permute.xlu0 %419
    %v422 = vmul.f32 %v416, %v420
    %424 = vrot.lane.b32.xlu0 %v422, 32
    %v425 = vpop.permute.xlu0 %424
    %v427 = vadd.f32 %v417, %v425
    %v428 = vtanh.pop %v427
    %430 = vrot.lane.b32.xlu0 %v428, 32
    %v431 = vpop.permute.xlu0 %430
    %v433 = vmul.f32 %v416, %v431
    %v434 = vld [vmem:[%s4] sm:$0xff]
    %v435 = vld [vmem:[%s4 + $0x8] sm:$0xff]
    %v436 = vld [vmem:[%s4 + $0x10] sm:$0xff]
    %v437 = vld [vmem:[%s4 + $0x18] sm:$0xff]
    %v438 = vld [vmem:[%s5] sm:$0xff]
    %v439 = vld [vmem:[%s5 + $0x8] sm:$0xff]
    %v440 = vld [vmem:[%s5 + $0x10] sm:$0xff]
    %v441 = vld [vmem:[%s5 + $0x18] sm:$0xff]
    %442 = vmatprep.subr.mxu0 0.0
    %443 = vmatpush1.msra.mxu0 %v438
    %444 = vmatprep.subr.mxu0 0.0
    %445 = vmatpush1.msra.mxu0 %v439
    %446 = vmatprep.subr.mxu0 0.0
    %447 = vmatpush1.msra.mxu0 %v440
    %448 = vmatprep.subr.mxu0 0.0
    %449 = vmatpush1.msra.mxu0 %v441
    %450 = vmatprep.subr.mxu0 0.0
    %451 = vmatpush1.msra.mxu0 0.0
    %452 = vmatprep.subr.mxu0 0.0
    %453 = vmatpush1.msra.mxu0 0.0
    %454 = vmatprep.subr.mxu0 0.0
    %455 = vmatpush1.msra.mxu0 0.0
    %456 = vmatprep.subr.mxu0 0.0
    %457 = vmatpush1.msra.mxu0 0.0
    %458 = vmatprep.subr.mxu0 0.0
    %459 = vmatpush1.msra.mxu0 0.0
    %460 = vmatprep.subr.mxu0 0.0
    %461 = vmatpush1.msra.mxu0 0.0
    %462 = vmatprep.subr.mxu0 0.0
    %463 = vmatpush1.msra.mxu0 0.0
    %464 = vmatprep.subr.mxu0 0.0
    %465 = vmatpush1.msra.mxu0 0.0
    %466 = vmatprep.subr.mxu0 0.0
    %467 = vmatpush1.msra.mxu0 0.0
    %468 = vmatprep.subr.mxu0 0.0
    %469 = vmatpush1.msra.mxu0 0.0
    %470 = vmatprep.subr.mxu0 0.0
    %471 = vmatpush1.msra.mxu0 0.0
    %472 = vmatprep.subr.mxu0 0.0
    %473 = vmatpush1.msra.mxu0 0.0
    %474 = vmatprep.subr.mxu0 0.0
    %475 = vmatpush1.msra.mxu0 0.0
    %476 = vmatprep.subr.mxu0 0.0
    %477 = vmatpush1.msra.mxu0 0.0
    %478 = vmatprep.subr.mxu0 0.0
    %479 = vmatpush1.msra.mxu0 0.0
    %480 = vmatprep.subr.mxu0 0.0
    %481 = vmatpush1.msra.mxu0 0.0
    %482 = vmatprep.subr.mxu0 0.0
    %483 = vmatpush1.msra.mxu0 0.0
    %484 = vmatprep.subr.mxu0 0.0
    %485 = vmatpush1.msra.mxu0 0.0
    %486 = vmatprep.subr.mxu0 0.0
    %487 = vmatpush1.msra.mxu0 0.0
    %488 = vmatprep.subr.mxu0 0.0
    %489 = vmatpush1.msra.mxu0 0.0
    %490 = vmatprep.subr.mxu0 0.0
    %491 = vmatpush1.msra.mxu0 0.0
    %492 = vmatprep.subr.mxu0 0.0
    %493 = vmatpush1.msra.mxu0 0.0
    %494 = vmatprep.subr.mxu0 0.0
    %495 = vmatpush1.msra.mxu0 0.0
    %496 = vmatprep.subr.mxu0 0.0
    %497 = vmatpush1.msra.mxu0 0.0
    %498 = vmatprep.subr.mxu0 0.0
    %499 = vmatpush1.msra.mxu0 0.0
    %500 = vmatprep.subr.mxu0 0.0
    %501 = vmatpush1.msra.mxu0 0.0
    %502 = vmatprep.subr.mxu0 0.0
    %503 = vmatpush1.msra.mxu0 0.0
    %504 = vmatprep.subr.mxu0 0.0
    %505 = vmatpush1.msra.mxu0 0.0
    %506 = vmatprep.mubr.f32.mxu0 0.0
    %507 = vmatmul.mubr.f32.gmra.mrb[0].mxu0 %v234
    %v508 = vpop.f32.mrb[0].mxu0
    %v509 = vadd.f32 0.0, %v508
    %v510 = vpop.f32.mrb[0].mxu0
    %511 = vdwg.mxu0
    %512 = vmatprep.subr.mxu0 0.0
    %513 = vmatpush1.msra.mxu0 %v434
    %514 = vmatprep.subr.mxu0 0.0
    %515 = vmatpush1.msra.mxu0 %v435
    %516 = vmatprep.subr.mxu0 0.0
    %517 = vmatpush1.msra.mxu0 %v436
    %518 = vmatprep.subr.mxu0 0.0
    %519 = vmatpush1.msra.mxu0 %v437
    %520 = vmatprep.subr.mxu0 0.0
    %521 = vmatpush1.msra.mxu0 0.0
    %522 = vmatprep.subr.mxu0 0.0
    %523 = vmatpush1.msra.mxu0 0.0
    %524 = vmatprep.subr.mxu0 0.0
    %525 = vmatpush1.msra.mxu0 0.0
    %526 = vmatprep.subr.mxu0 0.0
    %527 = vmatpush1.msra.mxu0 0.0
    %528 = vmatprep.subr.mxu0 0.0
    %529 = vmatpush1.msra.mxu0 0.0
    %530 = vmatprep.subr.mxu0 0.0
    %531 = vmatpush1.msra.mxu0 0.0
    %532 = vmatprep.subr.mxu0 0.0
    %533 = vmatpush1.msra.mxu0 0.0
    %534 = vmatprep.subr.mxu0 0.0
    %535 = vmatpush1.msra.mxu0 0.0
    %536 = vmatprep.subr.mxu0 0.0
    %537 = vmatpush1.msra.mxu0 0.0
    %538 = vmatprep.subr.mxu0 0.0
    %539 = vmatpush1.msra.mxu0 0.0
    %540 = vmatprep.subr.mxu0 0.0
    %541 = vmatpush1.msra.mxu0 0.0
    %542 = vmatprep.subr.mxu0 0.0
    %543 = vmatpush1.msra.mxu0 0.0
    %544 = vmatprep.subr.mxu0 0.0
    %545 = vmatpush1.msra.mxu0 0.0
    %546 = vmatprep.subr.mxu0 0.0
    %547 = vmatpush1.msra.mxu0 0.0
    %548 = vmatprep.subr.mxu0 0.0
    %549 = vmatpush1.msra.mxu0 0.0
    %550 = vmatprep.subr.mxu0 0.0
    %551 = vmatpush1.msra.mxu0 0.0
    %552 = vmatprep.subr.mxu0 0.0
    %553 = vmatpush1.msra.mxu0 0.0
    %554 = vmatprep.subr.mxu0 0.0
    %555 = vmatpush1.msra.mxu0 0.0
    %556 = vmatprep.subr.mxu0 0.0
    %557 = vmatpush1.msra.mxu0 0.0
    %558 = vmatprep.subr.mxu0 0.0
    %559 = vmatpush1.msra.mxu0 0.0
    %560 = vmatprep.subr.mxu0 0.0
    %561 = vmatpush1.msra.mxu0 0.0
    %562 = vmatprep.subr.mxu0 0.0
    %563 = vmatpush1.msra.mxu0 0.0
    %564 = vmatprep.subr.mxu0 0.0
    %565 = vmatpush1.msra.mxu0 0.0
    %566 = vmatprep.subr.mxu0 0.0
    %567 = vmatpush1.msra.mxu0 0.0
    %568 = vmatprep.subr.mxu0 0.0
    %569 = vmatpush1.msra.mxu0 0.0
    %570 = vmatprep.subr.mxu0 0.0
    %571 = vmatpush1.msra.mxu0 0.0
    %572 = vmatprep.subr.mxu0 0.0
    %573 = vmatpush1.msra.mxu0 0.0
    %574 = vmatprep.subr.mxu0 0.0
    %575 = vmatpush1.msra.mxu0 0.0
    %576 = vmatprep.mubr.f32.mxu0 0.0
    %577 = vmatmul.mubr.f32.gmra.mrb[0].mxu0 %v336
    %v578 = vpop.f32.mrb[0].mxu0
    %v579 = vadd.f32 %v509, %v578
    %v580 = vpop.f32.mrb[0].mxu0
    %581 = vdwg.mxu0
    %v582 = vld [vmem:[%s6] sm:$0x1]
    %v584 = vlaneseq
    %v585 = vshrl.u32 %v584, 7
    %v586 = vsub.s32 0, %v585
    %v587 = vrot.slane %v582, %v586
    %v589 = vadd.f32 %v579, %v587
    %v590 = vxor.u32 %v589, 2147483648
    %v591 = vmul.f32 %v590, 1.442695
    %v592 = vpow.pop %v591
    %v593 = vadd.f32 %v592, 1.0
    %v594 = vrcp.pop %v593
    %v595 = vmul.f32 1.0, %v594
    %v596 = vtanh.pop %v589
    %v597 = vsel %vm70, %v595, %v596
    %v598 = vmul.f32 %v597, 0.0
    %600 = vrot.lane.b32.xlu0 %v597, 32
    %v601 = vpop.permute.xlu0 %600
    %v603 = vmul.f32 %v597, %v601
    %605 = vrot.lane.b32.xlu0 %v603, 32
    %v606 = vpop.permute.xlu0 %605
    %v608 = vadd.f32 %v598, %v606
    %v609 = vtanh.pop %v608
    %611 = vrot.lane.b32.xlu0 %v609, 32
    %v612 = vpop.permute.xlu0 %611
    %v614 = vmul.f32 %v597, %v612
    %616 = vrot.lane.b32.xlu0 %v614, 64
    %v617 = vpop.permute.xlu0 %616
    %619 = vst.msk [vmem:[#allocation3] sm:$0xff] %vm90, %v617
    %v620 = vld [vmem:[#allocation2 + $0x10] sm:$0xff]
    %v621 = vld [vmem:[%s2] sm:$0xff]
    %v622 = vld [vmem:[%s2 + $0x8] sm:$0xff]
    %v623 = vld [vmem:[%s2 + $0x10] sm:$0xff]
    %v624 = vld [vmem:[%s2 + $0x18] sm:$0xff]
    %626 = vrot.lane.b32.xlu0 %v433, 64
    %v627 = vpop.permute.xlu0 %626
    %v628 = vsel %vm90, %v627, 0
    %630 = vmatprep.subr.mxu0 0.0
    %631 = vmatpush1.msra.mxu0 %v621
    %632 = vmatprep.subr.mxu0 0.0
    %633 = vmatpush1.msra.mxu0 %v622
    %634 = vmatprep.subr.mxu0 0.0
    %635 = vmatpush1.msra.mxu0 %v623
    %636 = vmatprep.subr.mxu0 0.0
    %637 = vmatpush1.msra.mxu0 %v624
    %638 = vmatprep.subr.mxu0 0.0
    %639 = vmatpush1.msra.mxu0 0.0
    %640 = vmatprep.subr.mxu0 0.0
    %641 = vmatpush1.msra.mxu0 0.0
    %642 = vmatprep.subr.mxu0 0.0
    %643 = vmatpush1.msra.mxu0 0.0
    %644 = vmatprep.subr.mxu0 0.0
    %645 = vmatpush1.msra.mxu0 0.0
    %646 = vmatprep.subr.mxu0 0.0
    %647 = vmatpush1.msra.mxu0 0.0
    %648 = vmatprep.subr.mxu0 0.0
    %649 = vmatpush1.msra.mxu0 0.0
    %650 = vmatprep.subr.mxu0 0.0
    %651 = vmatpush1.msra.mxu0 0.0
    %652 = vmatprep.subr.mxu0 0.0
    %653 = vmatpush1.msra.mxu0 0.0
    %654 = vmatprep.subr.mxu0 0.0
    %655 = vmatpush1.msra.mxu0 0.0
    %656 = vmatprep.subr.mxu0 0.0
    %657 = vmatpush1.msra.mxu0 0.0
    %658 = vmatprep.subr.mxu0 0.0
    %659 = vmatpush1.msra.mxu0 0.0
    %660 = vmatprep.subr.mxu0 0.0
    %661 = vmatpush1.msra.mxu0 0.0
    %662 = vmatprep.subr.mxu0 0.0
    %663 = vmatpush1.msra.mxu0 0.0
    %664 = vmatprep.subr.mxu0 0.0
    %665 = vmatpush1.msra.mxu0 0.0
    %666 = vmatprep.subr.mxu0 0.0
    %667 = vmatpush1.msra.mxu0 0.0
    %668 = vmatprep.subr.mxu0 0.0
    %669 = vmatpush1.msra.mxu0 0.0
    %670 = vmatprep.subr.mxu0 0.0
    %671 = vmatpush1.msra.mxu0 0.0
    %672 = vmatprep.subr.mxu0 0.0
    %673 = vmatpush1.msra.mxu0 0.0
    %674 = vmatprep.subr.mxu0 0.0
    %675 = vmatpush1.msra.mxu0 0.0
    %676 = vmatprep.subr.mxu0 0.0
    %677 = vmatpush1.msra.mxu0 0.0
    %678 = vmatprep.subr.mxu0 0.0
    %679 = vmatpush1.msra.mxu0 0.0
    %680 = vmatprep.subr.mxu0 0.0
    %681 = vmatpush1.msra.mxu0 0.0
    %682 = vmatprep.subr.mxu0 0.0
    %683 = vmatpush1.msra.mxu0 0.0
    %684 = vmatprep.subr.mxu0 0.0
    %685 = vmatpush1.msra.mxu0 0.0
    %686 = vmatprep.subr.mxu0 0.0
    %687 = vmatpush1.msra.mxu0 0.0
    %688 = vmatprep.subr.mxu0 0.0
    %689 = vmatpush1.msra.mxu0 0.0
    %690 = vmatprep.subr.mxu0 0.0
    %691 = vmatpush1.msra.mxu0 0.0
    %692 = vmatprep.subr.mxu0 0.0
    %693 = vmatpush1.msra.mxu0 0.0
    %694 = vmatprep.mubr.f32.mxu0 0.0
    %695 = vmatmul.mubr.f32.gmra.mrb[0].mxu0 %v628
    %v696 = vpop.f32.mrb[0].mxu0
    %v697 = vadd.f32 0.0, %v696
    %v698 = vpop.f32.mrb[0].mxu0
    %699 = vdwg.mxu0
    %v700 = vadd.f32 %v620, %v697
    %v701 = vxor.u32 %v700, 2147483648
    %v702 = vmul.f32 %v701, 1.442695
    %v703 = vpow.pop %v702
    %v704 = vadd.f32 %v703, 1.0
    %v705 = vrcp.pop %v704
    %v706 = vmul.f32 1.0, %v705
    %v707 = vtanh.pop %v700
    %v708 = vsel %vm70, %v706, %v707
    %v709 = vmul.f32 %v708, %v427
    %711 = vrot.lane.b32.xlu0 %v708, 32
    %v712 = vpop.permute.xlu0 %711
    %v714 = vmul.f32 %v708, %v712
    %716 = vrot.lane.b32.xlu0 %v714, 32
    %v717 = vpop.permute.xlu0 %716
    %v719 = vadd.f32 %v709, %v717
    %v720 = vtanh.pop %v719
    %722 = vrot.lane.b32.xlu0 %v720, 32
    %v723 = vpop.permute.xlu0 %722
    %v725 = vmul.f32 %v708, %v723
    %v726 = vld [vmem:[%s4] sm:$0xff]
    %v727 = vld [vmem:[%s4 + $0x8] sm:$0xff]
    %v728 = vld [vmem:[%s4 + $0x10] sm:$0xff]
    %v729 = vld [vmem:[%s4 + $0x18] sm:$0xff]
    %v730 = vld [vmem:[%s5] sm:$0xff]
    %v731 = vld [vmem:[%s5 + $0x8] sm:$0xff]
    %v732 = vld [vmem:[%s5 + $0x10] sm:$0xff]
    %v733 = vld [vmem:[%s5 + $0x18] sm:$0xff]
    %v734 = vsel %vm90, %v617, 0
    %736 = vmatprep.subr.mxu0 0.0
    %737 = vmatpush1.msra.mxu0 %v730
    %738 = vmatprep.subr.mxu0 0.0
    %739 = vmatpush1.msra.mxu0 %v731
    %740 = vmatprep.subr.mxu0 0.0
    %741 = vmatpush1.msra.mxu0 %v732
    %742 = vmatprep.subr.mxu0 0.0
    %743 = vmatpush1.msra.mxu0 %v733
    %744 = vmatprep.subr.mxu0 0.0
    %745 = vmatpush1.msra.mxu0 0.0
    %746 = vmatprep.subr.mxu0 0.0
    %747 = vmatpush1.msra.mxu0 0.0
    %748 = vmatprep.subr.mxu0 0.0
    %749 = vmatpush1.msra.mxu0 0.0
    %750 = vmatprep.subr.mxu0 0.0
    %751 = vmatpush1.msra.mxu0 0.0
    %752 = vmatprep.subr.mxu0 0.0
    %753 = vmatpush1.msra.mxu0 0.0
    %754 = vmatprep.subr.mxu0 0.0
    %755 = vmatpush1.msra.mxu0 0.0
    %756 = vmatprep.subr.mxu0 0.0
    %757 = vmatpush1.msra.mxu0 0.0
    %758 = vmatprep.subr.mxu0 0.0
    %759 = vmatpush1.msra.mxu0 0.0
    %760 = vmatprep.subr.mxu0 0.0
    %761 = vmatpush1.msra.mxu0 0.0
    %762 = vmatprep.subr.mxu0 0.0
    %763 = vmatpush1.msra.mxu0 0.0
    %764 = vmatprep.subr.mxu0 0.0
    %765 = vmatpush1.msra.mxu0 0.0
    %766 = vmatprep.subr.mxu0 0.0
    %767 = vmatpush1.msra.mxu0 0.0
    %768 = vmatprep.subr.mxu0 0.0
    %769 = vmatpush1.msra.mxu0 0.0
    %770 = vmatprep.subr.mxu0 0.0
    %771 = vmatpush1.msra.mxu0 0.0
    %772 = vmatprep.subr.mxu0 0.0
    %773 = vmatpush1.msra.mxu0 0.0
    %774 = vmatprep.subr.mxu0 0.0
    %775 = vmatpush1.msra.mxu0 0.0
    %776 = vmatprep.subr.mxu0 0.0
    %777 = vmatpush1.msra.mxu0 0.0
    %778 = vmatprep.subr.mxu0 0.0
    %779 = vmatpush1.msra.mxu0 0.0
    %780 = vmatprep.subr.mxu0 0.0
    %781 = vmatpush1.msra.mxu0 0.0
    %782 = vmatprep.subr.mxu0 0.0
    %783 = vmatpush1.msra.mxu0 0.0
    %784 = vmatprep.subr.mxu0 0.0
    %785 = vmatpush1.msra.mxu0 0.0
    %786 = vmatprep.subr.mxu0 0.0
    %787 = vmatpush1.msra.mxu0 0.0
    %788 = vmatprep.subr.mxu0 0.0
    %789 = vmatpush1.msra.mxu0 0.0
    %790 = vmatprep.subr.mxu0 0.0
    %791 = vmatpush1.msra.mxu0 0.0
    %792 = vmatprep.subr.mxu0 0.0
    %793 = vmatpush1.msra.mxu0 0.0
    %794 = vmatprep.subr.mxu0 0.0
    %795 = vmatpush1.msra.mxu0 0.0
    %796 = vmatprep.subr.mxu0 0.0
    %797 = vmatpush1.msra.mxu0 0.0
    %798 = vmatprep.subr.mxu0 0.0
    %799 = vmatpush1.msra.mxu0 0.0
    %800 = vmatprep.mubr.f32.mxu0 0.0
    %801 = vmatmul.mubr.f32.gmra.mrb[0].mxu0 %v734
    %v802 = vpop.f32.mrb[0].mxu0
    %v803 = vadd.f32 0.0, %v802
    %v804 = vpop.f32.mrb[0].mxu0
    %805 = vdwg.mxu0
    %806 = vmatprep.subr.mxu0 0.0
    %807 = vmatpush1.msra.mxu0 %v726
    %808 = vmatprep.subr.mxu0 0.0
    %809 = vmatpush1.msra.mxu0 %v727
    %810 = vmatprep.subr.mxu0 0.0
    %811 = vmatpush1.msra.mxu0 %v728
    %812 = vmatprep.subr.mxu0 0.0
    %813 = vmatpush1.msra.mxu0 %v729
    %814 = vmatprep.subr.mxu0 0.0
    %815 = vmatpush1.msra.mxu0 0.0
    %816 = vmatprep.subr.mxu0 0.0
    %817 = vmatpush1.msra.mxu0 0.0
    %818 = vmatprep.subr.mxu0 0.0
    %819 = vmatpush1.msra.mxu0 0.0
    %820 = vmatprep.subr.mxu0 0.0
    %821 = vmatpush1.msra.mxu0 0.0
    %822 = vmatprep.subr.mxu0 0.0
    %823 = vmatpush1.msra.mxu0 0.0
    %824 = vmatprep.subr.mxu0 0.0
    %825 = vmatpush1.msra.mxu0 0.0
    %826 = vmatprep.subr.mxu0 0.0
    %827 = vmatpush1.msra.mxu0 0.0
    %828 = vmatprep.subr.mxu0 0.0
    %829 = vmatpush1.msra.mxu0 0.0
    %830 = vmatprep.subr.mxu0 0.0
    %831 = vmatpush1.msra.mxu0 0.0
    %832 = vmatprep.subr.mxu0 0.0
    %833 = vmatpush1.msra.mxu0 0.0
    %834 = vmatprep.subr.mxu0 0.0
    %835 = vmatpush1.msra.mxu0 0.0
    %836 = vmatprep.subr.mxu0 0.0
    %837 = vmatpush1.msra.mxu0 0.0
    %838 = vmatprep.subr.mxu0 0.0
    %839 = vmatpush1.msra.mxu0 0.0
    %840 = vmatprep.subr.mxu0 0.0
    %841 = vmatpush1.msra.mxu0 0.0
    %842 = vmatprep.subr.mxu0 0.0
    %843 = vmatpush1.msra.mxu0 0.0
    %844 = vmatprep.subr.mxu0 0.0
    %845 = vmatpush1.msra.mxu0 0.0
    %846 = vmatprep.subr.mxu0 0.0
    %847 = vmatpush1.msra.mxu0 0.0
    %848 = vmatprep.subr.mxu0 0.0
    %849 = vmatpush1.msra.mxu0 0.0
    %850 = vmatprep.subr.mxu0 0.0
    %851 = vmatpush1.msra.mxu0 0.0
    %852 = vmatprep.subr.mxu0 0.0
    %853 = vmatpush1.msra.mxu0 0.0
    %854 = vmatprep.subr.mxu0 0.0
    %855 = vmatpush1.msra.mxu0 0.0
    %856 = vmatprep.subr.mxu0 0.0
    %857 = vmatpush1.msra.mxu0 0.0
    %858 = vmatprep.subr.mxu0 0.0
    %859 = vmatpush1.msra.mxu0 0.0
    %860 = vmatprep.subr.mxu0 0.0
    %861 = vmatpush1.msra.mxu0 0.0
    %862 = vmatprep.subr.mxu0 0.0
    %863 = vmatpush1.msra.mxu0 0.0
    %864 = vmatprep.subr.mxu0 0.0
    %865 = vmatpush1.msra.mxu0 0.0
    %866 = vmatprep.subr.mxu0 0.0
    %867 = vmatpush1.msra.mxu0 0.0
    %868 = vmatprep.subr.mxu0 0.0
    %869 = vmatpush1.msra.mxu0 0.0
    %870 = vmatprep.mubr.f32.mxu0 0.0
    %871 = vmatmul.mubr.f32.gmra.mrb[0].mxu0 %v628
    %v872 = vpop.f32.mrb[0].mxu0
    %v873 = vadd.f32 %v803, %v872
    %v874 = vpop.f32.mrb[0].mxu0
    %875 = vdwg.mxu0
    %v876 = vld [vmem:[%s6] sm:$0x1]
    %v878 = vlaneseq
    %v879 = vshrl.u32 %v878, 7
    %v880 = vsub.s32 0, %v879
    %v881 = vrot.slane %v876, %v880
    %v883 = vadd.f32 %v873, %v881
    %v884 = vxor.u32 %v883, 2147483648
    %v885 = vmul.f32 %v884, 1.442695
    %v886 = vpow.pop %v885
    %v887 = vadd.f32 %v886, 1.0
    %v888 = vrcp.pop %v887
    %v889 = vmul.f32 1.0, %v888
    %v890 = vtanh.pop %v883
    %v891 = vsel %vm70, %v889, %v890
    %v892 = vmul.f32 %v891, %v608
    %894 = vrot.lane.b32.xlu0 %v891, 32
    %v895 = vpop.permute.xlu0 %894
    %v897 = vmul.f32 %v891, %v895
    %899 = vrot.lane.b32.xlu0 %v897, 32
    %v900 = vpop.permute.xlu0 %899
    %v902 = vadd.f32 %v892, %v900
    %v903 = vtanh.pop %v902
    %905 = vrot.lane.b32.xlu0 %v903, 32
    %v906 = vpop.permute.xlu0 %905
    %v908 = vmul.f32 %v891, %v906
    %910 = vrot.lane.b32.xlu0 %v908, 64
    %v911 = vpop.permute.xlu0 %910
    %913 = vst.msk [vmem:[#allocation3 + $0x8] sm:$0xff] %vm90, %v911
    %v914 = vld [vmem:[#allocation2 + $0x18] sm:$0xff]
    %v915 = vld [vmem:[%s2] sm:$0xff]
    %v916 = vld [vmem:[%s2 + $0x8] sm:$0xff]
    %v917 = vld [vmem:[%s2 + $0x10] sm:$0xff]
    %v918 = vld [vmem:[%s2 + $0x18] sm:$0xff]
    %920 = vrot.lane.b32.xlu0 %v725, 64
    %v921 = vpop.permute.xlu0 %920
    %v922 = vsel %vm90, %v921, 0
    %924 = vmatprep.subr.mxu0 0.0
    %925 = vmatpush1.msra.mxu0 %v915
    %926 = vmatprep.subr.mxu0 0.0
    %927 = vmatpush1.msra.mxu0 %v916
    %928 = vmatprep.subr.mxu0 0.0
    %929 = vmatpush1.msra.mxu0 %v917
    %930 = vmatprep.subr.mxu0 0.0
    %931 = vmatpush1.msra.mxu0 %v918
    %932 = vmatprep.subr.mxu0 0.0
    %933 = vmatpush1.msra.mxu0 0.0
    %934 = vmatprep.subr.mxu0 0.0
    %935 = vmatpush1.msra.mxu0 0.0
    %936 = vmatprep.subr.mxu0 0.0
    %937 = vmatpush1.msra.mxu0 0.0
    %938 = vmatprep.subr.mxu0 0.0
    %939 = vmatpush1.msra.mxu0 0.0
    %940 = vmatprep.subr.mxu0 0.0
    %941 = vmatpush1.msra.mxu0 0.0
    %942 = vmatprep.subr.mxu0 0.0
    %943 = vmatpush1.msra.mxu0 0.0
    %944 = vmatprep.subr.mxu0 0.0
    %945 = vmatpush1.msra.mxu0 0.0
    %946 = vmatprep.subr.mxu0 0.0
    %947 = vmatpush1.msra.mxu0 0.0
    %948 = vmatprep.subr.mxu0 0.0
    %949 = vmatpush1.msra.mxu0 0.0
    %950 = vmatprep.subr.mxu0 0.0
    %951 = vmatpush1.msra.mxu0 0.0
    %952 = vmatprep.subr.mxu0 0.0
    %953 = vmatpush1.msra.mxu0 0.0
    %954 = vmatprep.subr.mxu0 0.0
    %955 = vmatpush1.msra.mxu0 0.0
    %956 = vmatprep.subr.mxu0 0.0
    %957 = vmatpush1.msra.mxu0 0.0
    %958 = vmatprep.subr.mxu0 0.0
    %959 = vmatpush1.msra.mxu0 0.0
    %960 = vmatprep.subr.mxu0 0.0
    %961 = vmatpush1.msra.mxu0 0.0
    %962 = vmatprep.subr.mxu0 0.0
    %963 = vmatpush1.msra.mxu0 0.0
    %964 = vmatprep.subr.mxu0 0.0
    %965 = vmatpush1.msra.mxu0 0.0
    %966 = vmatprep.subr.mxu0 0.0
    %967 = vmatpush1.msra.mxu0 0.0
    %968 = vmatprep.subr.mxu0 0.0
    %969 = vmatpush1.msra.mxu0 0.0
    %970 = vmatprep.subr.mxu0 0.0
    %971 = vmatpush1.msra.mxu0 0.0
    %972 = vmatprep.subr.mxu0 0.0
    %973 = vmatpush1.msra.mxu0 0.0
    %974 = vmatprep.subr.mxu0 0.0
    %975 = vmatpush1.msra.mxu0 0.0
    %976 = vmatprep.subr.mxu0 0.0
    %977 = vmatpush1.msra.mxu0 0.0
    %978 = vmatprep.subr.mxu0 0.0
    %979 = vmatpush1.msra.mxu0 0.0
    %980 = vmatprep.subr.mxu0 0.0
    %981 = vmatpush1.msra.mxu0 0.0
    %982 = vmatprep.subr.mxu0 0.0
    %983 = vmatpush1.msra.mxu0 0.0
    %984 = vmatprep.subr.mxu0 0.0
    %985 = vmatpush1.msra.mxu0 0.0
    %986 = vmatprep.subr.mxu0 0.0
    %987 = vmatpush1.msra.mxu0 0.0
    %988 = vmatprep.mubr.f32.mxu0 0.0
    %989 = vmatmul.mubr.f32.gmra.mrb[0].mxu0 %v922
    %v990 = vpop.f32.mrb[0].mxu0
    %v991 = vadd.f32 0.0, %v990
    %v992 = vpop.f32.mrb[0].mxu0
    %993 = vdwg.mxu0
    %v994 = vadd.f32 %v914, %v991
    %v995 = vxor.u32 %v994, 2147483648
    %v996 = vmul.f32 %v995, 1.442695
    %v997 = vpow.pop %v996
    %v998 = vadd.f32 %v997, 1.0
    %v999 = vrcp.pop %v998
    %v1000 = vmul.f32 1.0, %v999
    %v1001 = vtanh.pop %v994
    %v1002 = vsel %vm70, %v1000, %v1001
    %v1003 = vmul.f32 %v1002, %v719
    %1005 = vrot.lane.b32.xlu0 %v1002, 32
    %v1006 = vpop.permute.xlu0 %1005
    %v1008 = vmul.f32 %v1002, %v1006
    %1010 = vrot.lane.b32.xlu0 %v1008, 32
    %v1011 = vpop.permute.xlu0 %1010
    %v1013 = vadd.f32 %v1003, %v1011
    %v1014 = vtanh.pop %v1013
    %1016 = vrot.lane.b32.xlu0 %v1014, 32
    %v1017 = vpop.permute.xlu0 %1016
    %v1019 = vmul.f32 %v1002, %v1017
    %v1020 = vld [vmem:[%s4] sm:$0xff]
    %v1021 = vld [vmem:[%s4 + $0x8] sm:$0xff]
    %v1022 = vld [vmem:[%s4 + $0x10] sm:$0xff]
    %v1023 = vld [vmem:[%s4 + $0x18] sm:$0xff]
    %v1024 = vld [vmem:[%s5] sm:$0xff]
    %v1025 = vld [vmem:[%s5 + $0x8] sm:$0xff]
    %v1026 = vld [vmem:[%s5 + $0x10] sm:$0xff]
    %v1027 = vld [vmem:[%s5 + $0x18] sm:$0xff]
    %v1028 = vsel %vm90, %v911, 0
    %1030 = vmatprep.subr.mxu0 0.0
    %1031 = vmatpush1.msra.mxu0 %v1024
    %1032 = vmatprep.subr.mxu0 0.0
    %1033 = vmatpush1.msra.mxu0 %v1025
    %1034 = vmatprep.subr.mxu0 0.0
    %1035 = vmatpush1.msra.mxu0 %v1026
    %1036 = vmatprep.subr.mxu0 0.0
    %1037 = vmatpush1.msra.mxu0 %v1027
    %1038 = vmatprep.subr.mxu0 0.0
    %1039 = vmatpush1.msra.mxu0 0.0
    %1040 = vmatprep.subr.mxu0 0.0
    %1041 = vmatpush1.msra.mxu0 0.0
    %1042 = vmatprep.subr.mxu0 0.0
    %1043 = vmatpush1.msra.mxu0 0.0
    %1044 = vmatprep.subr.mxu0 0.0
    %1045 = vmatpush1.msra.mxu0 0.0
    %1046 = vmatprep.subr.mxu0 0.0
    %1047 = vmatpush1.msra.mxu0 0.0
    %1048 = vmatprep.subr.mxu0 0.0
    %1049 = vmatpush1.msra.mxu0 0.0
    %1050 = vmatprep.subr.mxu0 0.0
    %1051 = vmatpush1.msra.mxu0 0.0
    %1052 = vmatprep.subr.mxu0 0.0
    %1053 = vmatpush1.msra.mxu0 0.0
    %1054 = vmatprep.subr.mxu0 0.0
    %1055 = vmatpush1.msra.mxu0 0.0
    %1056 = vmatprep.subr.mxu0 0.0
    %1057 = vmatpush1.msra.mxu0 0.0
    %1058 = vmatprep.subr.mxu0 0.0
    %1059 = vmatpush1.msra.mxu0 0.0
    %1060 = vmatprep.subr.mxu0 0.0
    %1061 = vmatpush1.msra.mxu0 0.0
    %1062 = vmatprep.subr.mxu0 0.0
    %1063 = vmatpush1.msra.mxu0 0.0
    %1064 = vmatprep.subr.mxu0 0.0
    %1065 = vmatpush1.msra.mxu0 0.0
    %1066 = vmatprep.subr.mxu0 0.0
    %1067 = vmatpush1.msra.mxu0 0.0
    %1068 = vmatprep.subr.mxu0 0.0
    %1069 = vmatpush1.msra.mxu0 0.0
    %1070 = vmatprep.subr.mxu0 0.0
    %1071 = vmatpush1.msra.mxu0 0.0
    %1072 = vmatprep.subr.mxu0 0.0
    %1073 = vmatpush1.msra.mxu0 0.0
    %1074 = vmatprep.subr.mxu0 0.0
    %1075 = vmatpush1.msra.mxu0 0.0
    %1076 = vmatprep.subr.mxu0 0.0
    %1077 = vmatpush1.msra.mxu0 0.0
    %1078 = vmatprep.subr.mxu0 0.0
    %1079 = vmatpush1.msra.mxu0 0.0
    %1080 = vmatprep.subr.mxu0 0.0
    %1081 = vmatpush1.msra.mxu0 0.0
    %1082 = vmatprep.subr.mxu0 0.0
    %1083 = vmatpush1.msra.mxu0 0.0
    %1084 = vmatprep.subr.mxu0 0.0
    %1085 = vmatpush1.msra.mxu0 0.0
    %1086 = vmatprep.subr.mxu0 0.0
    %1087 = vmatpush1.msra.mxu0 0.0
    %1088 = vmatprep.subr.mxu0 0.0
    %1089 = vmatpush1.msra.mxu0 0.0
    %1090 = vmatprep.subr.mxu0 0.0
    %1091 = vmatpush1.msra.mxu0 0.0
    %1092 = vmatprep.subr.mxu0 0.0
    %1093 = vmatpush1.msra.mxu0 0.0
    %1094 = vmatprep.mubr.f32.mxu0 0.0
    %1095 = vmatmul.mubr.f32.gmra.mrb[0].mxu0 %v1028
    %v1096 = vpop.f32.mrb[0].mxu0
    %v1097 = vadd.f32 0.0, %v1096
    %v1098 = vpop.f32.mrb[0].mxu0
    %1099 = vdwg.mxu0
    %1100 = vmatprep.subr.mxu0 0.0
    %1101 = vmatpush1.msra.mxu0 %v1020
    %1102 = vmatprep.subr.mxu0 0.0
    %1103 = vmatpush1.msra.mxu0 %v1021
    %1104 = vmatprep.subr.mxu0 0.0
    %1105 = vmatpush1.msra.mxu0 %v1022
    %1106 = vmatprep.subr.mxu0 0.0
    %1107 = vmatpush1.msra.mxu0 %v1023
    %1108 = vmatprep.subr.mxu0 0.0
    %1109 = vmatpush1.msra.mxu0 0.0
    %1110 = vmatprep.subr.mxu0 0.0
    %1111 = vmatpush1.msra.mxu0 0.0
    %1112 = vmatprep.subr.mxu0 0.0
    %1113 = vmatpush1.msra.mxu0 0.0
    %1114 = vmatprep.subr.mxu0 0.0
    %1115 = vmatpush1.msra.mxu0 0.0
    %1116 = vmatprep.subr.mxu0 0.0
    %1117 = vmatpush1.msra.mxu0 0.0
    %1118 = vmatprep.subr.mxu0 0.0
    %1119 = vmatpush1.msra.mxu0 0.0
    %1120 = vmatprep.subr.mxu0 0.0
    %1121 = vmatpush1.msra.mxu0 0.0
    %1122 = vmatprep.subr.mxu0 0.0
    %1123 = vmatpush1.msra.mxu0 0.0
    %1124 = vmatprep.subr.mxu0 0.0
    %1125 = vmatpush1.msra.mxu0 0.0
    %1126 = vmatprep.subr.mxu0 0.0
    %1127 = vmatpush1.msra.mxu0 0.0
    %1128 = vmatprep.subr.mxu0 0.0
    %1129 = vmatpush1.msra.mxu0 0.0
    %1130 = vmatprep.subr.mxu0 0.0
    %1131 = vmatpush1.msra.mxu0 0.0
    %1132 = vmatprep.subr.mxu0 0.0
    %1133 = vmatpush1.msra.mxu0 0.0
    %1134 = vmatprep.subr.mxu0 0.0
    %1135 = vmatpush1.msra.mxu0 0.0
    %1136 = vmatprep.subr.mxu0 0.0
    %1137 = vmatpush1.msra.mxu0 0.0
    %1138 = vmatprep.subr.mxu0 0.0
    %1139 = vmatpush1.msra.mxu0 0.0
    %1140 = vmatprep.subr.mxu0 0.0
    %1141 = vmatpush1.msra.mxu0 0.0
    %1142 = vmatprep.subr.mxu0 0.0
    %1143 = vmatpush1.msra.mxu0 0.0
    %1144 = vmatprep.subr.mxu0 0.0
    %1145 = vmatpush1.msra.mxu0 0.0
    %1146 = vmatprep.subr.mxu0 0.0
    %1147 = vmatpush1.msra.mxu0 0.0
    %1148 = vmatprep.subr.mxu0 0.0
    %1149 = vmatpush1.msra.mxu0 0.0
    %1150 = vmatprep.subr.mxu0 0.0
    %1151 = vmatpush1.msra.mxu0 0.0
    %1152 = vmatprep.subr.mxu0 0.0
    %1153 = vmatpush1.msra.mxu0 0.0
    %1154 = vmatprep.subr.mxu0 0.0
    %1155 = vmatpush1.msra.mxu0 0.0
    %1156 = vmatprep.subr.mxu0 0.0
    %1157 = vmatpush1.msra.mxu0 0.0
    %1158 = vmatprep.subr.mxu0 0.0
    %1159 = vmatpush1.msra.mxu0 0.0
    %1160 = vmatprep.subr.mxu0 0.0
    %1161 = vmatpush1.msra.mxu0 0.0
    %1162 = vmatprep.subr.mxu0 0.0
    %1163 = vmatpush1.msra.mxu0 0.0
    %1164 = vmatprep.mubr.f32.mxu0 0.0
    %1165 = vmatmul.mubr.f32.gmra.mrb[0].mxu0 %v922
    %v1166 = vpop.f32.mrb[0].mxu0
    %v1167 = vadd.f32 %v1097, %v1166
    %v1168 = vpop.f32.mrb[0].mxu0
    %1169 = vdwg.mxu0
    %v1170 = vld [vmem:[%s6] sm:$0x1]
    %v1172 = vlaneseq
    %v1173 = vshrl.u32 %v1172, 7
    %v1174 = vsub.s32 0, %v1173
    %v1175 = vrot.slane %v1170, %v1174
    %v1177 = vadd.f32 %v1167, %v1175
    %v1178 = vxor.u32 %v1177, 2147483648
    %v1179 = vmul.f32 %v1178, 1.442695
    %v1180 = vpow.pop %v1179
    %v1181 = vadd.f32 %v1180, 1.0
    %v1182 = vrcp.pop %v1181
    %v1183 = vmul.f32 1.0, %v1182
    %v1184 = vtanh.pop %v1177
    %v1185 = vsel %vm70, %v1183, %v1184
    %v1186 = vmul.f32 %v1185, %v902
    %1188 = vrot.lane.b32.xlu0 %v1185, 32
    %v1189 = vpop.permute.xlu0 %1188
    %v1191 = vmul.f32 %v1185, %v1189
    %1193 = vrot.lane.b32.xlu0 %v1191, 32
    %v1194 = vpop.permute.xlu0 %1193
    %v1196 = vadd.f32 %v1186, %v1194
    %v1197 = vtanh.pop %v1196
    %1199 = vrot.lane.b32.xlu0 %v1197, 32
    %v1200 = vpop.permute.xlu0 %1199
    %v1202 = vmul.f32 %v1185, %v1200
    %1204 = vrot.lane.b32.xlu0 %v1202, 64
    %v1205 = vpop.permute.xlu0 %1204
    %1207 = vst.msk [vmem:[#allocation3 + $0x10] sm:$0xff] %vm90, %v1205
    %v1208 = vld [vmem:[#allocation2 + $0x20] sm:$0xff]
    %v1209 = vld [vmem:[%s2] sm:$0xff]
    %v1210 = vld [vmem:[%s2 + $0x8] sm:$0xff]
    %v1211 = vld [vmem:[%s2 + $0x10] sm:$0xff]
    %v1212 = vld [vmem:[%s2 + $0x18] sm:$0xff]
    %1214 = vrot.lane.b32.xlu0 %v1019, 64
    %v1215 = vpop.permute.xlu0 %1214
    %v1216 = vsel %vm90, %v1215, 0
    %1218 = vmatprep.subr.mxu0 0.0
    %1219 = vmatpush1.msra.mxu0 %v1209
    %1220 = vmatprep.subr.mxu0 0.0
    %1221 = vmatpush1.msra.mxu0 %v1210
    %1222 = vmatprep.subr.mxu0 0.0
    %1223 = vmatpush1.msra.mxu0 %v1211
    %1224 = vmatprep.subr.mxu0 0.0
    %1225 = vmatpush1.msra.mxu0 %v1212
    %1226 = vmatprep.subr.mxu0 0.0
    %1227 = vmatpush1.msra.mxu0 0.0
    %1228 = vmatprep.subr.mxu0 0.0
    %1229 = vmatpush1.msra.mxu0 0.0
    %1230 = vmatprep.subr.mxu0 0.0
    %1231 = vmatpush1.msra.mxu0 0.0
    %1232 = vmatprep.subr.mxu0 0.0
    %1233 = vmatpush1.msra.mxu0 0.0
    %1234 = vmatprep.subr.mxu0 0.0
    %1235 = vmatpush1.msra.mxu0 0.0
    %1236 = vmatprep.subr.mxu0 0.0
    %1237 = vmatpush1.msra.mxu0 0.0
    %1238 = vmatprep.subr.mxu0 0.0
    %1239 = vmatpush1.msra.mxu0 0.0
    %1240 = vmatprep.subr.mxu0 0.0
    %1241 = vmatpush1.msra.mxu0 0.0
    %1242 = vmatprep.subr.mxu0 0.0
    %1243 = vmatpush1.msra.mxu0 0.0
    %1244 = vmatprep.subr.mxu0 0.0
    %1245 = vmatpush1.msra.mxu0 0.0
    %1246 = vmatprep.subr.mxu0 0.0
    %1247 = vmatpush1.msra.mxu0 0.0
    %1248 = vmatprep.subr.mxu0 0.0
    %1249 = vmatpush1.msra.mxu0 0.0
    %1250 = vmatprep.subr.mxu0 0.0
    %1251 = vmatpush1.msra.mxu0 0.0
    %1252 = vmatprep.subr.mxu0 0.0
    %1253 = vmatpush1.msra.mxu0 0.0
    %1254 = vmatprep.subr.mxu0 0.0
    %1255 = vmatpush1.msra.mxu0 0.0
    %1256 = vmatprep.subr.mxu0 0.0
    %1257 = vmatpush1.msra.mxu0 0.0
    %1258 = vmatprep.subr.mxu0 0.0
    %1259 = vmatpush1.msra.mxu0 0.0
    %1260 = vmatprep.subr.mxu0 0.0
    %1261 = vmatpush1.msra.mxu0 0.0
    %1262 = vmatprep.subr.mxu0 0.0
    %1263 = vmatpush1.msra.mxu0 0.0
    %1264 = vmatprep.subr.mxu0 0.0
    %1265 = vmatpush1.msra.mxu0 0.0
    %1266 = vmatprep.subr.mxu0 0.0
    %1267 = vmatpush1.msra.mxu0 0.0
    %1268 = vmatprep.subr.mxu0 0.0
    %1269 = vmatpush1.msra.mxu0 0.0
    %1270 = vmatprep.subr.mxu0 0.0
    %1271 = vmatpush1.msra.mxu0 0.0
    %1272 = vmatprep.subr.mxu0 0.0
    %1273 = vmatpush1.msra.mxu0 0.0
    %1274 = vmatprep.subr.mxu0 0.0
    %1275 = vmatpush1.msra.mxu0 0.0
    %1276 = vmatprep.subr.mxu0 0.0
    %1277 = vmatpush1.msra.mxu0 0.0
    %1278 = vmatprep.subr.mxu0 0.0
    %1279 = vmatpush1.msra.mxu0 0.0
    %1280 = vmatprep.subr.mxu0 0.0
    %1281 = vmatpush1.msra.mxu0 0.0
    %1282 = vmatprep.mubr.f32.mxu0 0.0
    %1283 = vmatmul.mubr.f32.gmra.mrb[0].mxu0 %v1216
    %v1284 = vpop.f32.mrb[0].mxu0
    %v1285 = vadd.f32 0.0, %v1284
    %v1286 = vpop.f32.mrb[0].mxu0
    %1287 = vdwg.mxu0
    %v1288 = vadd.f32 %v1208, %v1285
    %v1289 = vxor.u32 %v1288, 2147483648
    %v1290 = vmul.f32 %v1289, 1.442695
    %v1291 = vpow.pop %v1290
    %v1292 = vadd.f32 %v1291, 1.0
    %v1293 = vrcp.pop %v1292
    %v1294 = vmul.f32 1.0, %v1293
    %v1295 = vtanh.pop %v1288
    %v1296 = vsel %vm70, %v1294, %v1295
    %v1297 = vmul.f32 %v1296, %v1013
    %1299 = vrot.lane.b32.xlu0 %v1296, 32
    %v1300 = vpop.permute.xlu0 %1299
    %v1302 = vmul.f32 %v1296, %v1300
    %1304 = vrot.lane.b32.xlu0 %v1302, 32
    %v1305 = vpop.permute.xlu0 %1304
    %v1307 = vadd.f32 %v1297, %v1305
    %v1308 = vtanh.pop %v1307
    %1310 = vrot.lane.b32.xlu0 %v1308, 32
    %v1311 = vpop.permute.xlu0 %1310
    %v1313 = vmul.f32 %v1296, %v1311
    %v1314 = vld [vmem:[%s4] sm:$0xff]
    %v1315 = vld [vmem:[%s4 + $0x8] sm:$0xff]
    %v1316 = vld [vmem:[%s4 + $0x10] sm:$0xff]
    %v1317 = vld [vmem:[%s4 + $0x18] sm:$0xff]
    %v1318 = vld [vmem:[%s5] sm:$0xff]
    %v1319 = vld [vmem:[%s5 + $0x8] sm:$0xff]
    %v1320 = vld [vmem:[%s5 + $0x10] sm:$0xff]
    %v1321 = vld [vmem:[%s5 + $0x18] sm:$0xff]
    %v1322 = vsel %vm90, %v1205, 0
    %1324 = vmatprep.subr.mxu0 0.0
    %1325 = vmatpush1.msra.mxu0 %v1318
    %1326 = vmatprep.subr.mxu0 0.0
    %1327 = vmatpush1.msra.mxu0 %v1319
    %1328 = vmatprep.subr.mxu0 0.0
    %1329 = vmatpush1.msra.mxu0 %v1320
    %1330 = vmatprep.subr.mxu0 0.0
    %1331 = vmatpush1.msra.mxu0 %v1321
    %1332 = vmatprep.subr.mxu0 0.0
    %1333 = vmatpush1.msra.mxu0 0.0
    %1334 = vmatprep.subr.mxu0 0.0
    %1335 = vmatpush1.msra.mxu0 0.0
    %1336 = vmatprep.subr.mxu0 0.0
    %1337 = vmatpush1.msra.mxu0 0.0
    %1338 = vmatprep.subr.mxu0 0.0
    %1339 = vmatpush1.msra.mxu0 0.0
    %1340 = vmatprep.subr.mxu0 0.0
    %1341 = vmatpush1.msra.mxu0 0.0
    %1342 = vmatprep.subr.mxu0 0.0
    %1343 = vmatpush1.msra.mxu0 0.0
    %1344 = vmatprep.subr.mxu0 0.0
    %1345 = vmatpush1.msra.mxu0 0.0
    %1346 = vmatprep.subr.mxu0 0.0
    %1347 = vmatpush1.msra.mxu0 0.0
    %1348 = vmatprep.subr.mxu0 0.0
    %1349 = vmatpush1.msra.mxu0 0.0
    %1350 = vmatprep.subr.mxu0 0.0
    %1351 = vmatpush1.msra.mxu0 0.0
    %1352 = vmatprep.subr.mxu0 0.0
    %1353 = vmatpush1.msra.mxu0 0.0
    %1354 = vmatprep.subr.mxu0 0.0
    %1355 = vmatpush1.msra.mxu0 0.0
    %1356 = vmatprep.subr.mxu0 0.0
    %1357 = vmatpush1.msra.mxu0 0.0
    %1358 = vmatprep.subr.mxu0 0.0
    %1359 = vmatpush1.msra.mxu0 0.0
    %1360 = vmatprep.subr.mxu0 0.0
    %1361 = vmatpush1.msra.mxu0 0.0
    %1362 = vmatprep.subr.mxu0 0.0
    %1363 = vmatpush1.msra.mxu0 0.0
    %1364 = vmatprep.subr.mxu0 0.0
    %1365 = vmatpush1.msra.mxu0 0.0
    %1366 = vmatprep.subr.mxu0 0.0
    %1367 = vmatpush1.msra.mxu0 0.0
    %1368 = vmatprep.subr.mxu0 0.0
    %1369 = vmatpush1.msra.mxu0 0.0
    %1370 = vmatprep.subr.mxu0 0.0
    %1371 = vmatpush1.msra.mxu0 0.0
    %1372 = vmatprep.subr.mxu0 0.0
    %1373 = vmatpush1.msra.mxu0 0.0
    %1374 = vmatprep.subr.mxu0 0.0
    %1375 = vmatpush1.msra.mxu0 0.0
    %1376 = vmatprep.subr.mxu0 0.0
    %1377 = vmatpush1.msra.mxu0 0.0
    %1378 = vmatprep.subr.mxu0 0.0
    %1379 = vmatpush1.msra.mxu0 0.0
    %1380 = vmatprep.subr.mxu0 0.0
    %1381 = vmatpush1.msra.mxu0 0.0
    %1382 = vmatprep.subr.mxu0 0.0
    %1383 = vmatpush1.msra.mxu0 0.0
    %1384 = vmatprep.subr.mxu0 0.0
    %1385 = vmatpush1.msra.mxu0 0.0
    %1386 = vmatprep.subr.mxu0 0.0
    %1387 = vmatpush1.msra.mxu0 0.0
    %1388 = vmatprep.mubr.f32.mxu0 0.0
    %1389 = vmatmul.mubr.f32.gmra.mrb[0].mxu0 %v1322
    %v1390 = vpop.f32.mrb[0].mxu0
    %v1391 = vadd.f32 0.0, %v1390
    %v1392 = vpop.f32.mrb[0].mxu0
    %1393 = vdwg.mxu0
    %1394 = vmatprep.subr.mxu0 0.0
    %1395 = vmatpush1.msra.mxu0 %v1314
    %1396 = vmatprep.subr.mxu0 0.0
    %1397 = vmatpush1.msra.mxu0 %v1315
    %1398 = vmatprep.subr.mxu0 0.0
    %1399 = vmatpush1.msra.mxu0 %v1316
    %1400 = vmatprep.subr.mxu0 0.0
    %1401 = vmatpush1.msra.mxu0 %v1317
    %1402 = vmatprep.subr.mxu0 0.0
    %1403 = vmatpush1.msra.mxu0 0.0
    %1404 = vmatprep.subr.mxu0 0.0
    %1405 = vmatpush1.msra.mxu0 0.0
    %1406 = vmatprep.subr.mxu0 0.0
    %1407 = vmatpush1.msra.mxu0 0.0
    %1408 = vmatprep.subr.mxu0 0.0
    %1409 = vmatpush1.msra.mxu0 0.0
    %1410 = vmatprep.subr.mxu0 0.0
    %1411 = vmatpush1.msra.mxu0 0.0
    %1412 = vmatprep.subr.mxu0 0.0
    %1413 = vmatpush1.msra.mxu0 0.0
    %1414 = vmatprep.subr.mxu0 0.0
    %1415 = vmatpush1.msra.mxu0 0.0
    %1416 = vmatprep.subr.mxu0 0.0
    %1417 = vmatpush1.msra.mxu0 0.0
    %1418 = vmatprep.subr.mxu0 0.0
    %1419 = vmatpush1.msra.mxu0 0.0
    %1420 = vmatprep.subr.mxu0 0.0
    %1421 = vmatpush1.msra.mxu0 0.0
    %1422 = vmatprep.subr.mxu0 0.0
    %1423 = vmatpush1.msra.mxu0 0.0
    %1424 = vmatprep.subr.mxu0 0.0
    %1425 = vmatpush1.msra.mxu0 0.0
    %1426 = vmatprep.subr.mxu0 0.0
    %1427 = vmatpush1.msra.mxu0 0.0
    %1428 = vmatprep.subr.mxu0 0.0
    %1429 = vmatpush1.msra.mxu0 0.0
    %1430 = vmatprep.subr.mxu0 0.0
    %1431 = vmatpush1.msra.mxu0 0.0
    %1432 = vmatprep.subr.mxu0 0.0
    %1433 = vmatpush1.msra.mxu0 0.0
    %1434 = vmatprep.subr.mxu0 0.0
    %1435 = vmatpush1.msra.mxu0 0.0
    %1436 = vmatprep.subr.mxu0 0.0
    %1437 = vmatpush1.msra.mxu0 0.0
    %1438 = vmatprep.subr.mxu0 0.0
    %1439 = vmatpush1.msra.mxu0 0.0
    %1440 = vmatprep.subr.mxu0 0.0
    %1441 = vmatpush1.msra.mxu0 0.0
    %1442 = vmatprep.subr.mxu0 0.0
    %1443 = vmatpush1.msra.mxu0 0.0
    %1444 = vmatprep.subr.mxu0 0.0
    %1445 = vmatpush1.msra.mxu0 0.0
    %1446 = vmatprep.subr.mxu0 0.0
    %1447 = vmatpush1.msra.mxu0 0.0
    %1448 = vmatprep.subr.mxu0 0.0
    %1449 = vmatpush1.msra.mxu0 0.0
    %1450 = vmatprep.subr.mxu0 0.0
    %1451 = vmatpush1.msra.mxu0 0.0
    %1452 = vmatprep.subr.mxu0 0.0
    %1453 = vmatpush1.msra.mxu0 0.0
    %1454 = vmatprep.subr.mxu0 0.0
    %1455 = vmatpush1.msra.mxu0 0.0
    %1456 = vmatprep.subr.mxu0 0.0
    %1457 = vmatpush1.msra.mxu0 0.0
    %1458 = vmatprep.mubr.f32.mxu0 0.0
    %1459 = vmatmul.mubr.f32.gmra.mrb[0].mxu0 %v1216
    %v1460 = vpop.f32.mrb[0].mxu0
    %v1461 = vadd.f32 %v1391, %v1460
    %v1462 = vpop.f32.mrb[0].mxu0
    %1463 = vdwg.mxu0
    %v1464 = vld [vmem:[%s6] sm:$0x1]
    %v1466 = vlaneseq
    %v1467 = vshrl.u32 %v1466, 7
    %v1468 = vsub.s32 0, %v1467
    %v1469 = vrot.slane %v1464, %v1468
    %v1471 = vadd.f32 %v1461, %v1469
    %v1472 = vxor.u32 %v1471, 2147483648
    %v1473 = vmul.f32 %v1472, 1.442695
    %v1474 = vpow.pop %v1473
    %v1475 = vadd.f32 %v1474, 1.0
    %v1476 = vrcp.pop %v1475
    %v1477 = vmul.f32 1.0, %v1476
    %v1478 = vtanh.pop %v1471
    %v1479 = vsel %vm70, %v1477, %v1478
    %v1480 = vmul.f32 %v1479, %v1196
    %1482 = vrot.lane.b32.xlu0 %v1479, 32
    %v1483 = vpop.permute.xlu0 %1482
    %v1485 = vmul.f32 %v1479, %v1483
    %1487 = vrot.lane.b32.xlu0 %v1485, 32
    %v1488 = vpop.permute.xlu0 %1487
    %v1490 = vadd.f32 %v1480, %v1488
    %v1491 = vtanh.pop %v1490
    %1493 = vrot.lane.b32.xlu0 %v1491, 32
    %v1494 = vpop.permute.xlu0 %1493
    %v1496 = vmul.f32 %v1479, %v1494
    %1498 = vrot.lane.b32.xlu0 %v1496, 64
    %v1499 = vpop.permute.xlu0 %1498
    %1501 = vst.msk [vmem:[#allocation3 + $0x18] sm:$0xff] %vm90, %v1499
    %v1502 = vld [vmem:[#allocation2 + $0x28] sm:$0xff]
    %v1503 = vld [vmem:[%s2] sm:$0xff]
    %v1504 = vld [vmem:[%s2 + $0x8] sm:$0xff]
    %v1505 = vld [vmem:[%s2 + $0x10] sm:$0xff]
    %v1506 = vld [vmem:[%s2 + $0x18] sm:$0xff]
    %1508 = vrot.lane.b32.xlu0 %v1313, 64
    %v1509 = vpop.permute.xlu0 %1508
    %v1510 = vsel %vm90, %v1509, 0
    %1512 = vmatprep.subr.mxu0 0.0
    %1513 = vmatpush1.msra.mxu0 %v1503
    %1514 = vmatprep.subr.mxu0 0.0
    %1515 = vmatpush1.msra.mxu0 %v1504
    %1516 = vmatprep.subr.mxu0 0.0
    %1517 = vmatpush1.msra.mxu0 %v1505
    %1518 = vmatprep.subr.mxu0 0.0
    %1519 = vmatpush1.msra.mxu0 %v1506
    %1520 = vmatprep.subr.mxu0 0.0
    %1521 = vmatpush1.msra.mxu0 0.0
    %1522 = vmatprep.subr.mxu0 0.0
    %1523 = vmatpush1.msra.mxu0 0.0
    %1524 = vmatprep.subr.mxu0 0.0
    %1525 = vmatpush1.msra.mxu0 0.0
    %1526 = vmatprep.subr.mxu0 0.0
    %1527 = vmatpush1.msra.mxu0 0.0
    %1528 = vmatprep.subr.mxu0 0.0
    %1529 = vmatpush1.msra.mxu0 0.0
    %1530 = vmatprep.subr.mxu0 0.0
    %1531 = vmatpush1.msra.mxu0 0.0
    %1532 = vmatprep.subr.mxu0 0.0
    %1533 = vmatpush1.msra.mxu0 0.0
    %1534 = vmatprep.subr.mxu0 0.0
    %1535 = vmatpush1.msra.mxu0 0.0
    %1536 = vmatprep.subr.mxu0 0.0
    %1537 = vmatpush1.msra.mxu0 0.0
    %1538 = vmatprep.subr.mxu0 0.0
    %1539 = vmatpush1.msra.mxu0 0.0
    %1540 = vmatprep.subr.mxu0 0.0
    %1541 = vmatpush1.msra.mxu0 0.0
    %1542 = vmatprep.subr.mxu0 0.0
    %1543 = vmatpush1.msra.mxu0 0.0
    %1544 = vmatprep.subr.mxu0 0.0
    %1545 = vmatpush1.msra.mxu0 0.0
    %1546 = vmatprep.subr.mxu0 0.0
    %1547 = vmatpush1.msra.mxu0 0.0
    %1548 = vmatprep.subr.mxu0 0.0
    %1549 = vmatpush1.msra.mxu0 0.0
    %1550 = vmatprep.subr.mxu0 0.0
    %1551 = vmatpush1.msra.mxu0 0.0
    %1552 = vmatprep.subr.mxu0 0.0
    %1553 = vmatpush1.msra.mxu0 0.0
    %1554 = vmatprep.subr.mxu0 0.0
    %1555 = vmatpush1.msra.mxu0 0.0
    %1556 = vmatprep.subr.mxu0 0.0
    %1557 = vmatpush1.msra.mxu0 0.0
    %1558 = vmatprep.subr.mxu0 0.0
    %1559 = vmatpush1.msra.mxu0 0.0
    %1560 = vmatprep.subr.mxu0 0.0
    %1561 = vmatpush1.msra.mxu0 0.0
    %1562 = vmatprep.subr.mxu0 0.0
    %1563 = vmatpush1.msra.mxu0 0.0
    %1564 = vmatprep.subr.mxu0 0.0
    %1565 = vmatpush1.msra.mxu0 0.0
    %1566 = vmatprep.subr.mxu0 0.0
    %1567 = vmatpush1.msra.mxu0 0.0
    %1568 = vmatprep.subr.mxu0 0.0
    %1569 = vmatpush1.msra.mxu0 0.0
    %1570 = vmatprep.subr.mxu0 0.0
    %1571 = vmatpush1.msra.mxu0 0.0
    %1572 = vmatprep.subr.mxu0 0.0
    %1573 = vmatpush1.msra.mxu0 0.0
    %1574 = vmatprep.subr.mxu0 0.0
    %1575 = vmatpush1.msra.mxu0 0.0
    %1576 = vmatprep.mubr.f32.mxu0 0.0
    %1577 = vmatmul.mubr.f32.gmra.mrb[0].mxu0 %v1510
    %v1578 = vpop.f32.mrb[0].mxu0
    %v1579 = vadd.f32 0.0, %v1578
    %v1580 = vpop.f32.mrb[0].mxu0
    %1581 = vdwg.mxu0
    %v1582 = vadd.f32 %v1502, %v1579
    %v1583 = vxor.u32 %v1582, 2147483648
    %v1584 = vmul.f32 %v1583, 1.442695
    %v1585 = vpow.pop %v1584
    %v1586 = vadd.f32 %v1585, 1.0
    %v1587 = vrcp.pop %v1586
    %v1588 = vmul.f32 1.0, %v1587
    %v1589 = vtanh.pop %v1582
    %v1590 = vsel %vm70, %v1588, %v1589
    %v1591 = vmul.f32 %v1590, %v1307
    %1593 = vrot.lane.b32.xlu0 %v1590, 32
    %v1594 = vpop.permute.xlu0 %1593
    %v1596 = vmul.f32 %v1590, %v1594
    %1598 = vrot.lane.b32.xlu0 %v1596, 32
    %v1599 = vpop.permute.xlu0 %1598
    %v1601 = vadd.f32 %v1591, %v1599
    %v1602 = vtanh.pop %v1601
    %1604 = vrot.lane.b32.xlu0 %v1602, 32
    %v1605 = vpop.permute.xlu0 %1604
    %v1607 = vmul.f32 %v1590, %v1605
    %v1608 = vld [vmem:[%s4] sm:$0xff]
    %v1609 = vld [vmem:[%s4 + $0x8] sm:$0xff]
    %v1610 = vld [vmem:[%s4 + $0x10] sm:$0xff]
    %v1611 = vld [vmem:[%s4 + $0x18] sm:$0xff]
    %v1612 = vld [vmem:[%s5] sm:$0xff]
    %v1613 = vld [vmem:[%s5 + $0x8] sm:$0xff]
    %v1614 = vld [vmem:[%s5 + $0x10] sm:$0xff]
    %v1615 = vld [vmem:[%s5 + $0x18] sm:$0xff]
    %v1616 = vsel %vm90, %v1499, 0
    %1618 = vmatprep.subr.mxu0 0.0
    %1619 = vmatpush1.msra.mxu0 %v1612
    %1620 = vmatprep.subr.mxu0 0.0
    %1621 = vmatpush1.msra.mxu0 %v1613
    %1622 = vmatprep.subr.mxu0 0.0
    %1623 = vmatpush1.msra.mxu0 %v1614
    %1624 = vmatprep.subr.mxu0 0.0
    %1625 = vmatpush1.msra.mxu0 %v1615
    %1626 = vmatprep.subr.mxu0 0.0
    %1627 = vmatpush1.msra.mxu0 0.0
    %1628 = vmatprep.subr.mxu0 0.0
    %1629 = vmatpush1.msra.mxu0 0.0
    %1630 = vmatprep.subr.mxu0 0.0
    %1631 = vmatpush1.msra.mxu0 0.0
    %1632 = vmatprep.subr.mxu0 0.0
    %1633 = vmatpush1.msra.mxu0 0.0
    %1634 = vmatprep.subr.mxu0 0.0
    %1635 = vmatpush1.msra.mxu0 0.0
    %1636 = vmatprep.subr.mxu0 0.0
    %1637 = vmatpush1.msra.mxu0 0.0
    %1638 = vmatprep.subr.mxu0 0.0
    %1639 = vmatpush1.msra.mxu0 0.0
    %1640 = vmatprep.subr.mxu0 0.0
    %1641 = vmatpush1.msra.mxu0 0.0
    %1642 = vmatprep.subr.mxu0 0.0
    %1643 = vmatpush1.msra.mxu0 0.0
    %1644 = vmatprep.subr.mxu0 0.0
    %1645 = vmatpush1.msra.mxu0 0.0
    %1646 = vmatprep.subr.mxu0 0.0
    %1647 = vmatpush1.msra.mxu0 0.0
    %1648 = vmatprep.subr.mxu0 0.0
    %1649 = vmatpush1.msra.mxu0 0.0
    %1650 = vmatprep.subr.mxu0 0.0
    %1651 = vmatpush1.msra.mxu0 0.0
    %1652 = vmatprep.subr.mxu0 0.0
    %1653 = vmatpush1.msra.mxu0 0.0
    %1654 = vmatprep.subr.mxu0 0.0
    %1655 = vmatpush1.msra.mxu0 0.0
    %1656 = vmatprep.subr.mxu0 0.0
    %1657 = vmatpush1.msra.mxu0 0.0
    %1658 = vmatprep.subr.mxu0 0.0
    %1659 = vmatpush1.msra.mxu0 0.0
    %1660 = vmatprep.subr.mxu0 0.0
    %1661 = vmatpush1.msra.mxu0 0.0
    %1662 = vmatprep.subr.mxu0 0.0
    %1663 = vmatpush1.msra.mxu0 0.0
    %1664 = vmatprep.subr.mxu0 0.0
    %1665 = vmatpush1.msra.mxu0 0.0
    %1666 = vmatprep.subr.mxu0 0.0
    %1667 = vmatpush1.msra.mxu0 0.0
    %1668 = vmatprep.subr.mxu0 0.0
    %1669 = vmatpush1.msra.mxu0 0.0
    %1670 = vmatprep.subr.mxu0 0.0
    %1671 = vmatpush1.msra.mxu0 0.0
    %1672 = vmatprep.subr.mxu0 0.0
    %1673 = vmatpush1.msra.mxu0 0.0
    %1674 = vmatprep.subr.mxu0 0.0
    %1675 = vmatpush1.msra.mxu0 0.0
    %1676 = vmatprep.subr.mxu0 0.0
    %1677 = vmatpush1.msra.mxu0 0.0
    %1678 = vmatprep.subr.mxu0 0.0
    %1679 = vmatpush1.msra.mxu0 0.0
    %1680 = vmatprep.subr.mxu0 0.0
    %1681 = vmatpush1.msra.mxu0 0.0
    %1682 = vmatprep.mubr.f32.mxu0 0.0
    %1683 = vmatmul.mubr.f32.gmra.mrb[0].mxu0 %v1616
    %v1684 = vpop.f32.mrb[0].mxu0
    %v1685 = vadd.f32 0.0, %v1684
    %v1686 = vpop.f32.mrb[0].mxu0
    %1687 = vdwg.mxu0
    %1688 = vmatprep.subr.mxu0 0.0
    %1689 = vmatpush1.msra.mxu0 %v1608
    %1690 = vmatprep.subr.mxu0 0.0
    %1691 = vmatpush1.msra.mxu0 %v1609
    %1692 = vmatprep.subr.mxu0 0.0
    %1693 = vmatpush1.msra.mxu0 %v1610
    %1694 = vmatprep.subr.mxu0 0.0
    %1695 = vmatpush1.msra.mxu0 %v1611
    %1696 = vmatprep.subr.mxu0 0.0
    %1697 = vmatpush1.msra.mxu0 0.0
    %1698 = vmatprep.subr.mxu0 0.0
    %1699 = vmatpush1.msra.mxu0 0.0
    %1700 = vmatprep.subr.mxu0 0.0
    %1701 = vmatpush1.msra.mxu0 0.0
    %1702 = vmatprep.subr.mxu0 0.0
    %1703 = vmatpush1.msra.mxu0 0.0
    %1704 = vmatprep.subr.mxu0 0.0
    %1705 = vmatpush1.msra.mxu0 0.0
    %1706 = vmatprep.subr.mxu0 0.0
    %1707 = vmatpush1.msra.mxu0 0.0
    %1708 = vmatprep.subr.mxu0 0.0
    %1709 = vmatpush1.msra.mxu0 0.0
    %1710 = vmatprep.subr.mxu0 0.0
    %1711 = vmatpush1.msra.mxu0 0.0
    %1712 = vmatprep.subr.mxu0 0.0
    %1713 = vmatpush1.msra.mxu0 0.0
    %1714 = vmatprep.subr.mxu0 0.0
    %1715 = vmatpush1.msra.mxu0 0.0
    %1716 = vmatprep.subr.mxu0 0.0
    %1717 = vmatpush1.msra.mxu0 0.0
    %1718 = vmatprep.subr.mxu0 0.0
    %1719 = vmatpush1.msra.mxu0 0.0
    %1720 = vmatprep.subr.mxu0 0.0
    %1721 = vmatpush1.msra.mxu0 0.0
    %1722 = vmatprep.subr.mxu0 0.0
    %1723 = vmatpush1.msra.mxu0 0.0
    %1724 = vmatprep.subr.mxu0 0.0
    %1725 = vmatpush1.msra.mxu0 0.0
    %1726 = vmatprep.subr.mxu0 0.0
    %1727 = vmatpush1.msra.mxu0 0.0
    %1728 = vmatprep.subr.mxu0 0.0
    %1729 = vmatpush1.msra.mxu0 0.0
    %1730 = vmatprep.subr.mxu0 0.0
    %1731 = vmatpush1.msra.mxu0 0.0
    %1732 = vmatprep.subr.mxu0 0.0
    %1733 = vmatpush1.msra.mxu0 0.0
    %1734 = vmatprep.subr.mxu0 0.0
    %1735 = vmatpush1.msra.mxu0 0.0
    %1736 = vmatprep.subr.mxu0 0.0
    %1737 = vmatpush1.msra.mxu0 0.0
    %1738 = vmatprep.subr.mxu0 0.0
    %1739 = vmatpush1.msra.mxu0 0.0
    %1740 = vmatprep.subr.mxu0 0.0
    %1741 = vmatpush1.msra.mxu0 0.0
    %1742 = vmatprep.subr.mxu0 0.0
    %1743 = vmatpush1.msra.mxu0 0.0
    %1744 = vmatprep.subr.mxu0 0.0
    %1745 = vmatpush1.msra.mxu0 0.0
    %1746 = vmatprep.subr.mxu0 0.0
    %1747 = vmatpush1.msra.mxu0 0.0
    %1748 = vmatprep.subr.mxu0 0.0
    %1749 = vmatpush1.msra.mxu0 0.0
    %1750 = vmatprep.subr.mxu0 0.0
    %1751 = vmatpush1.msra.mxu0 0.0
    %1752 = vmatprep.mubr.f32.mxu0 0.0
    %1753 = vmatmul.mubr.f32.gmra.mrb[0].mxu0 %v1510
    %v1754 = vpop.f32.mrb[0].mxu0
    %v1755 = vadd.f32 %v1685, %v1754
    %v1756 = vpop.f32.mrb[0].mxu0
    %1757 = vdwg.mxu0
    %v1758 = vld [vmem:[%s6] sm:$0x1]
    %v1760 = vlaneseq
    %v1761 = vshrl.u32 %v1760, 7
    %v1762 = vsub.s32 0, %v1761
    %v1763 = vrot.slane %v1758, %v1762
    %v1765 = vadd.f32 %v1755, %v1763
    %v1766 = vxor.u32 %v1765, 2147483648
    %v1767 = vmul.f32 %v1766, 1.442695
    %v1768 = vpow.pop %v1767
    %v1769 = vadd.f32 %v1768, 1.0
    %v1770 = vrcp.pop %v1769
    %v1771 = vmul.f32 1.0, %v1770
    %v1772 = vtanh.pop %v1765
    %v1773 = vsel %vm70, %v1771, %v1772
    %v1774 = vmul.f32 %v1773, %v1490
    %1776 = vrot.lane.b32.xlu0 %v1773, 32
    %v1777 = vpop.permute.xlu0 %1776
    %v1779 = vmul.f32 %v1773, %v1777
    %1781 = vrot.lane.b32.xlu0 %v1779, 32
    %v1782 = vpop.permute.xlu0 %1781
    %v1784 = vadd.f32 %v1774, %v1782
    %v1785 = vtanh.pop %v1784
    %1787 = vrot.lane.b32.xlu0 %v1785, 32
    %v1788 = vpop.permute.xlu0 %1787
    %v1790 = vmul.f32 %v1773, %v1788
    %1792 = vrot.lane.b32.xlu0 %v1790, 64
    %v1793 = vpop.permute.xlu0 %1792
    %1795 = vst.msk [vmem:[#allocation3 + $0x20] sm:$0xff] %vm90, %v1793
    %v1796 = vld [vmem:[#allocation2 + $0x30] sm:$0xff]
    %v1797 = vld [vmem:[%s2] sm:$0xff]
    %v1798 = vld [vmem:[%s2 + $0x8] sm:$0xff]
    %v1799 = vld [vmem:[%s2 + $0x10] sm:$0xff]
    %v1800 = vld [vmem:[%s2 + $0x18] sm:$0xff]
    %1802 = vrot.lane.b32.xlu0 %v1607, 64
    %v1803 = vpop.permute.xlu0 %1802
    %v1804 = vsel %vm90, %v1803, 0
    %1806 = vmatprep.subr.mxu0 0.0
    %1807 = vmatpush1.msra.mxu0 %v1797
    %1808 = vmatprep.subr.mxu0 0.0
    %1809 = vmatpush1.msra.mxu0 %v1798
    %1810 = vmatprep.subr.mxu0 0.0
    %1811 = vmatpush1.msra.mxu0 %v1799
    %1812 = vmatprep.subr.mxu0 0.0
    %1813 = vmatpush1.msra.mxu0 %v1800
    %1814 = vmatprep.subr.mxu0 0.0
    %1815 = vmatpush1.msra.mxu0 0.0
    %1816 = vmatprep.subr.mxu0 0.0
    %1817 = vmatpush1.msra.mxu0 0.0
    %1818 = vmatprep.subr.mxu0 0.0
    %1819 = vmatpush1.msra.mxu0 0.0
    %1820 = vmatprep.subr.mxu0 0.0
    %1821 = vmatpush1.msra.mxu0 0.0
    %1822 = vmatprep.subr.mxu0 0.0
    %1823 = vmatpush1.msra.mxu0 0.0
    %1824 = vmatprep.subr.mxu0 0.0
    %1825 = vmatpush1.msra.mxu0 0.0
    %1826 = vmatprep.subr.mxu0 0.0
    %1827 = vmatpush1.msra.mxu0 0.0
    %1828 = vmatprep.subr.mxu0 0.0
    %1829 = vmatpush1.msra.mxu0 0.0
    %1830 = vmatprep.subr.mxu0 0.0
    %1831 = vmatpush1.msra.mxu0 0.0
    %1832 = vmatprep.subr.mxu0 0.0
    %1833 = vmatpush1.msra.mxu0 0.0
    %1834 = vmatprep.subr.mxu0 0.0
    %1835 = vmatpush1.msra.mxu0 0.0
    %1836 = vmatprep.subr.mxu0 0.0
    %1837 = vmatpush1.msra.mxu0 0.0
    %1838 = vmatprep.subr.mxu0 0.0
    %1839 = vmatpush1.msra.mxu0 0.0
    %1840 = vmatprep.subr.mxu0 0.0
    %1841 = vmatpush1.msra.mxu0 0.0
    %1842 = vmatprep.subr.mxu0 0.0
    %1843 = vmatpush1.msra.mxu0 0.0
    %1844 = vmatprep.subr.mxu0 0.0
    %1845 = vmatpush1.msra.mxu0 0.0
    %1846 = vmatprep.subr.mxu0 0.0
    %1847 = vmatpush1.msra.mxu0 0.0
    %1848 = vmatprep.subr.mxu0 0.0
    %1849 = vmatpush1.msra.mxu0 0.0
    %1850 = vmatprep.subr.mxu0 0.0
    %1851 = vmatpush1.msra.mxu0 0.0
    %1852 = vmatprep.subr.mxu0 0.0
    %1853 = vmatpush1.msra.mxu0 0.0
    %1854 = vmatprep.subr.mxu0 0.0
    %1855 = vmatpush1.msra.mxu0 0.0
    %1856 = vmatprep.subr.mxu0 0.0
    %1857 = vmatpush1.msra.mxu0 0.0
    %1858 = vmatprep.subr.mxu0 0.0
    %1859 = vmatpush1.msra.mxu0 0.0
    %1860 = vmatprep.subr.mxu0 0.0
    %1861 = vmatpush1.msra.mxu0 0.0
    %1862 = vmatprep.subr.mxu0 0.0
    %1863 = vmatpush1.msra.mxu0 0.0
    %1864 = vmatprep.subr.mxu0 0.0
    %1865 = vmatpush1.msra.mxu0 0.0
    %1866 = vmatprep.subr.mxu0 0.0
    %1867 = vmatpush1.msra.mxu0 0.0
    %1868 = vmatprep.subr.mxu0 0.0
    %1869 = vmatpush1.msra.mxu0 0.0
    %1870 = vmatprep.mubr.f32.mxu0 0.0
    %1871 = vmatmul.mubr.f32.gmra.mrb[0].mxu0 %v1804
    %v1872 = vpop.f32.mrb[0].mxu0
    %v1873 = vadd.f32 0.0, %v1872
    %v1874 = vpop.f32.mrb[0].mxu0
    %1875 = vdwg.mxu0
    %v1876 = vadd.f32 %v1796, %v1873
    %v1877 = vxor.u32 %v1876, 2147483648
    %v1878 = vmul.f32 %v1877, 1.442695
    %v1879 = vpow.pop %v1878
    %v1880 = vadd.f32 %v1879, 1.0
    %v1881 = vrcp.pop %v1880
    %v1882 = vmul.f32 1.0, %v1881
    %v1883 = vtanh.pop %v1876
    %v1884 = vsel %vm70, %v1882, %v1883
    %v1885 = vmul.f32 %v1884, %v1601
    %1887 = vrot.lane.b32.xlu0 %v1884, 32
    %v1888 = vpop.permute.xlu0 %1887
    %v1890 = vmul.f32 %v1884, %v1888
    %1892 = vrot.lane.b32.xlu0 %v1890, 32
    %v1893 = vpop.permute.xlu0 %1892
    %v1895 = vadd.f32 %v1885, %v1893
    %v1896 = vtanh.pop %v1895
    %1898 = vrot.lane.b32.xlu0 %v1896, 32
    %v1899 = vpop.permute.xlu0 %1898
    %v1901 = vmul.f32 %v1884, %v1899
    %v1902 = vld [vmem:[%s4] sm:$0xff]
    %v1903 = vld [vmem:[%s4 + $0x8] sm:$0xff]
    %v1904 = vld [vmem:[%s4 + $0x10] sm:$0xff]
    %v1905 = vld [vmem:[%s4 + $0x18] sm:$0xff]
    %v1906 = vld [vmem:[%s5] sm:$0xff]
    %v1907 = vld [vmem:[%s5 + $0x8] sm:$0xff]
    %v1908 = vld [vmem:[%s5 + $0x10] sm:$0xff]
    %v1909 = vld [vmem:[%s5 + $0x18] sm:$0xff]
    %v1910 = vsel %vm90, %v1793, 0
    %1912 = vmatprep.subr.mxu0 0.0
    %1913 = vmatpush1.msra.mxu0 %v1906
    %1914 = vmatprep.subr.mxu0 0.0
    %1915 = vmatpush1.msra.mxu0 %v1907
    %1916 = vmatprep.subr.mxu0 0.0
    %1917 = vmatpush1.msra.mxu0 %v1908
    %1918 = vmatprep.subr.mxu0 0.0
    %1919 = vmatpush1.msra.mxu0 %v1909
    %1920 = vmatprep.subr.mxu0 0.0
    %1921 = vmatpush1.msra.mxu0 0.0
    %1922 = vmatprep.subr.mxu0 0.0
    %1923 = vmatpush1.msra.mxu0 0.0
    %1924 = vmatprep.subr.mxu0 0.0
    %1925 = vmatpush1.msra.mxu0 0.0
    %1926 = vmatprep.subr.mxu0 0.0
    %1927 = vmatpush1.msra.mxu0 0.0
    %1928 = vmatprep.subr.mxu0 0.0
    %1929 = vmatpush1.msra.mxu0 0.0
    %1930 = vmatprep.subr.mxu0 0.0
    %1931 = vmatpush1.msra.mxu0 0.0
    %1932 = vmatprep.subr.mxu0 0.0
    %1933 = vmatpush1.msra.mxu0 0.0
    %1934 = vmatprep.subr.mxu0 0.0
    %1935 = vmatpush1.msra.mxu0 0.0
    %1936 = vmatprep.subr.mxu0 0.0
    %1937 = vmatpush1.msra.mxu0 0.0
    %1938 = vmatprep.subr.mxu0 0.0
    %1939 = vmatpush1.msra.mxu0 0.0
    %1940 = vmatprep.subr.mxu0 0.0
    %1941 = vmatpush1.msra.mxu0 0.0
    %1942 = vmatprep.subr.mxu0 0.0
    %1943 = vmatpush1.msra.mxu0 0.0
    %1944 = vmatprep.subr.mxu0 0.0
    %1945 = vmatpush1.msra.mxu0 0.0
    %1946 = vmatprep.subr.mxu0 0.0
    %1947 = vmatpush1.msra.mxu0 0.0
    %1948 = vmatprep.subr.mxu0 0.0
    %1949 = vmatpush1.msra.mxu0 0.0
    %1950 = vmatprep.subr.mxu0 0.0
    %1951 = vmatpush1.msra.mxu0 0.0
    %1952 = vmatprep.subr.mxu0 0.0
    %1953 = vmatpush1.msra.mxu0 0.0
    %1954 = vmatprep.subr.mxu0 0.0
    %1955 = vmatpush1.msra.mxu0 0.0
    %1956 = vmatprep.subr.mxu0 0.0
    %1957 = vmatpush1.msra.mxu0 0.0
    %1958 = vmatprep.subr.mxu0 0.0
    %1959 = vmatpush1.msra.mxu0 0.0
    %1960 = vmatprep.subr.mxu0 0.0
    %1961 = vmatpush1.msra.mxu0 0.0
    %1962 = vmatprep.subr.mxu0 0.0
    %1963 = vmatpush1.msra.mxu0 0.0
    %1964 = vmatprep.subr.mxu0 0.0
    %1965 = vmatpush1.msra.mxu0 0.0
    %1966 = vmatprep.subr.mxu0 0.0
    %1967 = vmatpush1.msra.mxu0 0.0
    %1968 = vmatprep.subr.mxu0 0.0
    %1969 = vmatpush1.msra.mxu0 0.0
    %1970 = vmatprep.subr.mxu0 0.0
    %1971 = vmatpush1.msra.mxu0 0.0
    %1972 = vmatprep.subr.mxu0 0.0
    %1973 = vmatpush1.msra.mxu0 0.0
    %1974 = vmatprep.subr.mxu0 0.0
    %1975 = vmatpush1.msra.mxu0 0.0
    %1976 = vmatprep.mubr.f32.mxu0 0.0
    %1977 = vmatmul.mubr.f32.gmra.mrb[0].mxu0 %v1910
    %v1978 = vpop.f32.mrb[0].mxu0
    %v1979 = vadd.f32 0.0, %v1978
    %v1980 = vpop.f32.mrb[0].mxu0
    %1981 = vdwg.mxu0
    %1982 = vmatprep.subr.mxu0 0.0
    %1983 = vmatpush1.msra.mxu0 %v1902
    %1984 = vmatprep.subr.mxu0 0.0
    %1985 = vmatpush1.msra.mxu0 %v1903
    %1986 = vmatprep.subr.mxu0 0.0
    %1987 = vmatpush1.msra.mxu0 %v1904
    %1988 = vmatprep.subr.mxu0 0.0
    %1989 = vmatpush1.msra.mxu0 %v1905
    %1990 = vmatprep.subr.mxu0 0.0
    %1991 = vmatpush1.msra.mxu0 0.0
    %1992 = vmatprep.subr.mxu0 0.0
    %1993 = vmatpush1.msra.mxu0 0.0
    %1994 = vmatprep.subr.mxu0 0.0
    %1995 = vmatpush1.msra.mxu0 0.0
    %1996 = vmatprep.subr.mxu0 0.0
    %1997 = vmatpush1.msra.mxu0 0.0
    %1998 = vmatprep.subr.mxu0 0.0
    %1999 = vmatpush1.msra.mxu0 0.0
    %2000 = vmatprep.subr.mxu0 0.0
    %2001 = vmatpush1.msra.mxu0 0.0
    %2002 = vmatprep.subr.mxu0 0.0
    %2003 = vmatpush1.msra.mxu0 0.0
    %2004 = vmatprep.subr.mxu0 0.0
    %2005 = vmatpush1.msra.mxu0 0.0
    %2006 = vmatprep.subr.mxu0 0.0
    %2007 = vmatpush1.msra.mxu0 0.0
    %2008 = vmatprep.subr.mxu0 0.0
    %2009 = vmatpush1.msra.mxu0 0.0
    %2010 = vmatprep.subr.mxu0 0.0
    %2011 = vmatpush1.msra.mxu0 0.0
    %2012 = vmatprep.subr.mxu0 0.0
    %2013 = vmatpush1.msra.mxu0 0.0
    %2014 = vmatprep.subr.mxu0 0.0
    %2015 = vmatpush1.msra.mxu0 0.0
    %2016 = vmatprep.subr.mxu0 0.0
    %2017 = vmatpush1.msra.mxu0 0.0
    %2018 = vmatprep.subr.mxu0 0.0
    %2019 = vmatpush1.msra.mxu0 0.0
    %2020 = vmatprep.subr.mxu0 0.0
    %2021 = vmatpush1.msra.mxu0 0.0
    %2022 = vmatprep.subr.mxu0 0.0
    %2023 = vmatpush1.msra.mxu0 0.0
    %2024 = vmatprep.subr.mxu0 0.0
    %2025 = vmatpush1.msra.mxu0 0.0
    %2026 = vmatprep.subr.mxu0 0.0
    %2027 = vmatpush1.msra.mxu0 0.0
    %2028 = vmatprep.subr.mxu0 0.0
    %2029 = vmatpush1.msra.mxu0 0.0
    %2030 = vmatprep.subr.mxu0 0.0
    %2031 = vmatpush1.msra.mxu0 0.0
    %2032 = vmatprep.subr.mxu0 0.0
    %2033 = vmatpush1.msra.mxu0 0.0
    %2034 = vmatprep.subr.mxu0 0.0
    %2035 = vmatpush1.msra.mxu0 0.0
    %2036 = vmatprep.subr.mxu0 0.0
    %2037 = vmatpush1.msra.mxu0 0.0
    %2038 = vmatprep.subr.mxu0 0.0
    %2039 = vmatpush1.msra.mxu0 0.0
    %2040 = vmatprep.subr.mxu0 0.0
    %2041 = vmatpush1.msra.mxu0 0.0
    %2042 = vmatprep.subr.mxu0 0.0
    %2043 = vmatpush1.msra.mxu0 0.0
    %2044 = vmatprep.subr.mxu0 0.0
    %2045 = vmatpush1.msra.mxu0 0.0
    %2046 = vmatprep.mubr.f32.mxu0 0.0
    %2047 = vmatmul.mubr.f32.gmra.mrb[0].mxu0 %v1804
    %v2048 = vpop.f32.mrb[0].mxu0
    %v2049 = vadd.f32 %v1979, %v2048
    %v2050 = vpop.f32.mrb[0].mxu0
    %2051 = vdwg.mxu0
    %v2052 = vld [vmem:[%s6] sm:$0x1]
    %v2054 = vlaneseq
    %v2055 = vshrl.u32 %v2054, 7
    %v2056 = vsub.s32 0, %v2055
    %v2057 = vrot.slane %v2052, %v2056
    %v2059 = vadd.f32 %v2049, %v2057
    %v2060 = vxor.u32 %v2059, 2147483648
    %v2061 = vmul.f32 %v2060, 1.442695
    %v2062 = vpow.pop %v2061
    %v2063 = vadd.f32 %v2062, 1.0
    %v2064 = vrcp.pop %v2063
    %v2065 = vmul.f32 1.0, %v2064
    %v2066 = vtanh.pop %v2059
    %v2067 = vsel %vm70, %v2065, %v2066
    %v2068 = vmul.f32 %v2067, %v1784
    %2070 = vrot.lane.b32.xlu0 %v2067, 32
    %v2071 = vpop.permute.xlu0 %2070
    %v2073 = vmul.f32 %v2067, %v2071
    %2075 = vrot.lane.b32.xlu0 %v2073, 32
    %v2076 = vpop.permute.xlu0 %2075
    %v2078 = vadd.f32 %v2068, %v2076
    %v2079 = vtanh.pop %v2078
    %2081 = vrot.lane.b32.xlu0 %v2079, 32
    %v2082 = vpop.permute.xlu0 %2081
    %v2084 = vmul.f32 %v2067, %v2082
    %2086 = vrot.lane.b32.xlu0 %v2084, 64
    %v2087 = vpop.permute.xlu0 %2086
    %2089 = vst.msk [vmem:[#allocation3 + $0x28] sm:$0xff] %vm90, %v2087
    %v2090 = vld [vmem:[#allocation2 + $0x38] sm:$0xff]
    %v2091 = vld [vmem:[%s2] sm:$0xff]
    %v2092 = vld [vmem:[%s2 + $0x8] sm:$0xff]
    %v2093 = vld [vmem:[%s2 + $0x10] sm:$0xff]
    %v2094 = vld [vmem:[%s2 + $0x18] sm:$0xff]
    %2096 = vrot.lane.b32.xlu0 %v1901, 64
    %v2097 = vpop.permute.xlu0 %2096
    %v2098 = vsel %vm90, %v2097, 0
    %2100 = vmatprep.subr.mxu0 0.0
    %2101 = vmatpush1.msra.mxu0 %v2091
    %2102 = vmatprep.subr.mxu0 0.0
    %2103 = vmatpush1.msra.mxu0 %v2092
    %2104 = vmatprep.subr.mxu0 0.0
    %2105 = vmatpush1.msra.mxu0 %v2093
    %2106 = vmatprep.subr.mxu0 0.0
    %2107 = vmatpush1.msra.mxu0 %v2094
    %2108 = vmatprep.subr.mxu0 0.0
    %2109 = vmatpush1.msra.mxu0 0.0
    %2110 = vmatprep.subr.mxu0 0.0
    %2111 = vmatpush1.msra.mxu0 0.0
    %2112 = vmatprep.subr.mxu0 0.0
    %2113 = vmatpush1.msra.mxu0 0.0
    %2114 = vmatprep.subr.mxu0 0.0
    %2115 = vmatpush1.msra.mxu0 0.0
    %2116 = vmatprep.subr.mxu0 0.0
    %2117 = vmatpush1.msra.mxu0 0.0
    %2118 = vmatprep.subr.mxu0 0.0
    %2119 = vmatpush1.msra.mxu0 0.0
    %2120 = vmatprep.subr.mxu0 0.0
    %2121 = vmatpush1.msra.mxu0 0.0
    %2122 = vmatprep.subr.mxu0 0.0
    %2123 = vmatpush1.msra.mxu0 0.0
    %2124 = vmatprep.subr.mxu0 0.0
    %2125 = vmatpush1.msra.mxu0 0.0
    %2126 = vmatprep.subr.mxu0 0.0
    %2127 = vmatpush1.msra.mxu0 0.0
    %2128 = vmatprep.subr.mxu0 0.0
    %2129 = vmatpush1.msra.mxu0 0.0
    %2130 = vmatprep.subr.mxu0 0.0
    %2131 = vmatpush1.msra.mxu0 0.0
    %2132 = vmatprep.subr.mxu0 0.0
    %2133 = vmatpush1.msra.mxu0 0.0
    %2134 = vmatprep.subr.mxu0 0.0
    %2135 = vmatpush1.msra.mxu0 0.0
    %2136 = vmatprep.subr.mxu0 0.0
    %2137 = vmatpush1.msra.mxu0 0.0
    %2138 = vmatprep.subr.mxu0 0.0
    %2139 = vmatpush1.msra.mxu0 0.0
    %2140 = vmatprep.subr.mxu0 0.0
    %2141 = vmatpush1.msra.mxu0 0.0
    %2142 = vmatprep.subr.mxu0 0.0
    %2143 = vmatpush1.msra.mxu0 0.0
    %2144 = vmatprep.subr.mxu0 0.0
    %2145 = vmatpush1.msra.mxu0 0.0
    %2146 = vmatprep.subr.mxu0 0.0
    %2147 = vmatpush1.msra.mxu0 0.0
    %2148 = vmatprep.subr.mxu0 0.0
    %2149 = vmatpush1.msra.mxu0 0.0
    %2150 = vmatprep.subr.mxu0 0.0
    %2151 = vmatpush1.msra.mxu0 0.0
    %2152 = vmatprep.subr.mxu0 0.0
    %2153 = vmatpush1.msra.mxu0 0.0
    %2154 = vmatprep.subr.mxu0 0.0
    %2155 = vmatpush1.msra.mxu0 0.0
    %2156 = vmatprep.subr.mxu0 0.0
    %2157 = vmatpush1.msra.mxu0 0.0
    %2158 = vmatprep.subr.mxu0 0.0
    %2159 = vmatpush1.msra.mxu0 0.0
    %2160 = vmatprep.subr.mxu0 0.0
    %2161 = vmatpush1.msra.mxu0 0.0
    %2162 = vmatprep.subr.mxu0 0.0
    %2163 = vmatpush1.msra.mxu0 0.0
    %2164 = vmatprep.mubr.f32.mxu0 0.0
    %2165 = vmatmul.mubr.f32.gmra.mrb[0].mxu0 %v2098
    %v2166 = vpop.f32.mrb[0].mxu0
    %v2167 = vadd.f32 0.0, %v2166
    %v2168 = vpop.f32.mrb[0].mxu0
    %2169 = vdwg.mxu0
    %v2170 = vadd.f32 %v2090, %v2167
    %v2171 = vxor.u32 %v2170, 2147483648
    %v2172 = vmul.f32 %v2171, 1.442695
    %v2173 = vpow.pop %v2172
    %v2174 = vadd.f32 %v2173, 1.0
    %v2175 = vrcp.pop %v2174
    %v2176 = vmul.f32 1.0, %v2175
    %v2177 = vtanh.pop %v2170
    %v2178 = vsel %vm70, %v2176, %v2177
    %v2179 = vmul.f32 %v2178, %v1895
    %2181 = vrot.lane.b32.xlu0 %v2178, 32
    %v2182 = vpop.permute.xlu0 %2181
    %v2184 = vmul.f32 %v2178, %v2182
    %2186 = vrot.lane.b32.xlu0 %v2184, 32
    %v2187 = vpop.permute.xlu0 %2186
    %v2189 = vadd.f32 %v2179, %v2187
    %v2190 = vtanh.pop %v2189
    %2192 = vrot.lane.b32.xlu0 %v2190, 32
    %v2193 = vpop.permute.xlu0 %2192
    %v2195 = vmul.f32 %v2178, %v2193
    %v2196 = vld [vmem:[%s4] sm:$0xff]
    %v2197 = vld [vmem:[%s4 + $0x8] sm:$0xff]
    %v2198 = vld [vmem:[%s4 + $0x10] sm:$0xff]
    %v2199 = vld [vmem:[%s4 + $0x18] sm:$0xff]
    %v2200 = vld [vmem:[%s5] sm:$0xff]
    %v2201 = vld [vmem:[%s5 + $0x8] sm:$0xff]
    %v2202 = vld [vmem:[%s5 + $0x10] sm:$0xff]
    %v2203 = vld [vmem:[%s5 + $0x18] sm:$0xff]
    %v2204 = vsel %vm90, %v2087, 0
    %2206 = vmatprep.subr.mxu0 0.0
    %2207 = vmatpush1.msra.mxu0 %v2200
    %2208 = vmatprep.subr.mxu0 0.0
    %2209 = vmatpush1.msra.mxu0 %v2201
    %2210 = vmatprep.subr.mxu0 0.0
    %2211 = vmatpush1.msra.mxu0 %v2202
    %2212 = vmatprep.subr.mxu0 0.0
    %2213 = vmatpush1.msra.mxu0 %v2203
    %2214 = vmatprep.subr.mxu0 0.0
    %2215 = vmatpush1.msra.mxu0 0.0
    %2216 = vmatprep.subr.mxu0 0.0
    %2217 = vmatpush1.msra.mxu0 0.0
    %2218 = vmatprep.subr.mxu0 0.0
    %2219 = vmatpush1.msra.mxu0 0.0
    %2220 = vmatprep.subr.mxu0 0.0
    %2221 = vmatpush1.msra.mxu0 0.0
    %2222 = vmatprep.subr.mxu0 0.0
    %2223 = vmatpush1.msra.mxu0 0.0
    %2224 = vmatprep.subr.mxu0 0.0
    %2225 = vmatpush1.msra.mxu0 0.0
    %2226 = vmatprep.subr.mxu0 0.0
    %2227 = vmatpush1.msra.mxu0 0.0
    %2228 = vmatprep.subr.mxu0 0.0
    %2229 = vmatpush1.msra.mxu0 0.0
    %2230 = vmatprep.subr.mxu0 0.0
    %2231 = vmatpush1.msra.mxu0 0.0
    %2232 = vmatprep.subr.mxu0 0.0
    %2233 = vmatpush1.msra.mxu0 0.0
    %2234 = vmatprep.subr.mxu0 0.0
    %2235 = vmatpush1.msra.mxu0 0.0
    %2236 = vmatprep.subr.mxu0 0.0
    %2237 = vmatpush1.msra.mxu0 0.0
    %2238 = vmatprep.subr.mxu0 0.0
    %2239 = vmatpush1.msra.mxu0 0.0
    %2240 = vmatprep.subr.mxu0 0.0
    %2241 = vmatpush1.msra.mxu0 0.0
    %2242 = vmatprep.subr.mxu0 0.0
    %2243 = vmatpush1.msra.mxu0 0.0
    %2244 = vmatprep.subr.mxu0 0.0
    %2245 = vmatpush1.msra.mxu0 0.0
    %2246 = vmatprep.subr.mxu0 0.0
    %2247 = vmatpush1.msra.mxu0 0.0
    %2248 = vmatprep.subr.mxu0 0.0
    %2249 = vmatpush1.msra.mxu0 0.0
    %2250 = vmatprep.subr.mxu0 0.0
    %2251 = vmatpush1.msra.mxu0 0.0
    %2252 = vmatprep.subr.mxu0 0.0
    %2253 = vmatpush1.msra.mxu0 0.0
    %2254 = vmatprep.subr.mxu0 0.0
    %2255 = vmatpush1.msra.mxu0 0.0
    %2256 = vmatprep.subr.mxu0 0.0
    %2257 = vmatpush1.msra.mxu0 0.0
    %2258 = vmatprep.subr.mxu0 0.0
    %2259 = vmatpush1.msra.mxu0 0.0
    %2260 = vmatprep.subr.mxu0 0.0
    %2261 = vmatpush1.msra.mxu0 0.0
    %2262 = vmatprep.subr.mxu0 0.0
    %2263 = vmatpush1.msra.mxu0 0.0
    %2264 = vmatprep.subr.mxu0 0.0
    %2265 = vmatpush1.msra.mxu0 0.0
    %2266 = vmatprep.subr.mxu0 0.0
    %2267 = vmatpush1.msra.mxu0 0.0
    %2268 = vmatprep.subr.mxu0 0.0
    %2269 = vmatpush1.msra.mxu0 0.0
    %2270 = vmatprep.mubr.f32.mxu0 0.0
    %2271 = vmatmul.mubr.f32.gmra.mrb[0].mxu0 %v2204
    %v2272 = vpop.f32.mrb[0].mxu0
    %v2273 = vadd.f32 0.0, %v2272
    %v2274 = vpop.f32.mrb[0].mxu0
    %2275 = vdwg.mxu0
    %2276 = vmatprep.subr.mxu0 0.0
    %2277 = vmatpush1.msra.mxu0 %v2196
    %2278 = vmatprep.subr.mxu0 0.0
    %2279 = vmatpush1.msra.mxu0 %v2197
    %2280 = vmatprep.subr.mxu0 0.0
    %2281 = vmatpush1.msra.mxu0 %v2198
    %2282 = vmatprep.subr.mxu0 0.0
    %2283 = vmatpush1.msra.mxu0 %v2199
    %2284 = vmatprep.subr.mxu0 0.0
    %2285 = vmatpush1.msra.mxu0 0.0
    %2286 = vmatprep.subr.mxu0 0.0
    %2287 = vmatpush1.msra.mxu0 0.0
    %2288 = vmatprep.subr.mxu0 0.0
    %2289 = vmatpush1.msra.mxu0 0.0
    %2290 = vmatprep.subr.mxu0 0.0
    %2291 = vmatpush1.msra.mxu0 0.0
    %2292 = vmatprep.subr.mxu0 0.0
    %2293 = vmatpush1.msra.mxu0 0.0
    %2294 = vmatprep.subr.mxu0 0.0
    %2295 = vmatpush1.msra.mxu0 0.0
    %2296 = vmatprep.subr.mxu0 0.0
    %2297 = vmatpush1.msra.mxu0 0.0
    %2298 = vmatprep.subr.mxu0 0.0
    %2299 = vmatpush1.msra.mxu0 0.0
    %2300 = vmatprep.subr.mxu0 0.0
    %2301 = vmatpush1.msra.mxu0 0.0
    %2302 = vmatprep.subr.mxu0 0.0
    %2303 = vmatpush1.msra.mxu0 0.0
    %2304 = vmatprep.subr.mxu0 0.0
    %2305 = vmatpush1.msra.mxu0 0.0
    %2306 = vmatprep.subr.mxu0 0.0
    %2307 = vmatpush1.msra.mxu0 0.0
    %2308 = vmatprep.subr.mxu0 0.0
    %2309 = vmatpush1.msra.mxu0 0.0
    %2310 = vmatprep.subr.mxu0 0.0
    %2311 = vmatpush1.msra.mxu0 0.0
    %2312 = vmatprep.subr.mxu0 0.0
    %2313 = vmatpush1.msra.mxu0 0.0
    %2314 = vmatprep.subr.mxu0 0.0
    %2315 = vmatpush1.msra.mxu0 0.0
    %2316 = vmatprep.subr.mxu0 0.0
    %2317 = vmatpush1.msra.mxu0 0.0
    %2318 = vmatprep.subr.mxu0 0.0
    %2319 = vmatpush1.msra.mxu0 0.0
    %2320 = vmatprep.subr.mxu0 0.0
    %2321 = vmatpush1.msra.mxu0 0.0
    %2322 = vmatprep.subr.mxu0 0.0
    %2323 = vmatpush1.msra.mxu0 0.0
    %2324 = vmatprep.subr.mxu0 0.0
    %2325 = vmatpush1.msra.mxu0 0.0
    %2326 = vmatprep.subr.mxu0 0.0
    %2327 = vmatpush1.msra.mxu0 0.0
    %2328 = vmatprep.subr.mxu0 0.0
    %2329 = vmatpush1.msra.mxu0 0.0
    %2330 = vmatprep.subr.mxu0 0.0
    %2331 = vmatpush1.msra.mxu0 0.0
    %2332 = vmatprep.subr.mxu0 0.0
    %2333 = vmatpush1.msra.mxu0 0.0
    %2334 = vmatprep.subr.mxu0 0.0
    %2335 = vmatpush1.msra.mxu0 0.0
    %2336 = vmatprep.subr.mxu0 0.0
    %2337 = vmatpush1.msra.mxu0 0.0
    %2338 = vmatprep.subr.mxu0 0.0
    %2339 = vmatpush1.msra.mxu0 0.0
    %2340 = vmatprep.mubr.f32.mxu0 0.0
    %2341 = vmatmul.mubr.f32.gmra.mrb[0].mxu0 %v2098
    %v2342 = vpop.f32.mrb[0].mxu0
    %v2343 = vadd.f32 %v2273, %v2342
    %v2344 = vpop.f32.mrb[0].mxu0
    %2345 = vdwg.mxu0
    %v2346 = vld [vmem:[%s6] sm:$0x1]
    %v2348 = vlaneseq
    %v2349 = vshrl.u32 %v2348, 7
    %v2350 = vsub.s32 0, %v2349
    %v2351 = vrot.slane %v2346, %v2350
    %v2353 = vadd.f32 %v2343, %v2351
    %v2354 = vxor.u32 %v2353, 2147483648
    %v2355 = vmul.f32 %v2354, 1.442695
    %v2356 = vpow.pop %v2355
    %v2357 = vadd.f32 %v2356, 1.0
    %v2358 = vrcp.pop %v2357
    %v2359 = vmul.f32 1.0, %v2358
    %v2360 = vtanh.pop %v2353
    %v2361 = vsel %vm70, %v2359, %v2360
    %v2362 = vmul.f32 %v2361, %v2078
    %2364 = vrot.lane.b32.xlu0 %v2361, 32
    %v2365 = vpop.permute.xlu0 %2364
    %v2367 = vmul.f32 %v2361, %v2365
    %2369 = vrot.lane.b32.xlu0 %v2367, 32
    %v2370 = vpop.permute.xlu0 %2369
    %v2372 = vadd.f32 %v2362, %v2370
    %v2373 = vtanh.pop %v2372
    %2375 = vrot.lane.b32.xlu0 %v2373, 32
    %v2376 = vpop.permute.xlu0 %2375
    %v2378 = vmul.f32 %v2361, %v2376
    %2380 = vrot.lane.b32.xlu0 %v2378, 64
    %v2381 = vpop.permute.xlu0 %2380
    %2383 = vst.msk [vmem:[#allocation3 + $0x30] sm:$0xff] %vm90, %v2381
    %v2384 = vld [vmem:[%s4] sm:$0xff]
    %v2385 = vld [vmem:[%s4 + $0x8] sm:$0xff]
    %v2386 = vld [vmem:[%s4 + $0x10] sm:$0xff]
    %v2387 = vld [vmem:[%s4 + $0x18] sm:$0xff]
    %v2388 = vld [vmem:[%s5] sm:$0xff]
    %v2389 = vld [vmem:[%s5 + $0x8] sm:$0xff]
    %v2390 = vld [vmem:[%s5 + $0x10] sm:$0xff]
    %v2391 = vld [vmem:[%s5 + $0x18] sm:$0xff]
    %v2392 = vsel %vm90, %v2381, 0
    %2394 = vmatprep.subr.mxu0 0.0
    %2395 = vmatpush1.msra.mxu0 %v2388
    %2396 = vmatprep.subr.mxu0 0.0
    %2397 = vmatpush1.msra.mxu0 %v2389
    %2398 = vmatprep.subr.mxu0 0.0
    %2399 = vmatpush1.msra.mxu0 %v2390
    %2400 = vmatprep.subr.mxu0 0.0
    %2401 = vmatpush1.msra.mxu0 %v2391
    %2402 = vmatprep.subr.mxu0 0.0
    %2403 = vmatpush1.msra.mxu0 0.0
    %2404 = vmatprep.subr.mxu0 0.0
    %2405 = vmatpush1.msra.mxu0 0.0
    %2406 = vmatprep.subr.mxu0 0.0
    %2407 = vmatpush1.msra.mxu0 0.0
    %2408 = vmatprep.subr.mxu0 0.0
    %2409 = vmatpush1.msra.mxu0 0.0
    %2410 = vmatprep.subr.mxu0 0.0
    %2411 = vmatpush1.msra.mxu0 0.0
    %2412 = vmatprep.subr.mxu0 0.0
    %2413 = vmatpush1.msra.mxu0 0.0
    %2414 = vmatprep.subr.mxu0 0.0
    %2415 = vmatpush1.msra.mxu0 0.0
    %2416 = vmatprep.subr.mxu0 0.0
    %2417 = vmatpush1.msra.mxu0 0.0
    %2418 = vmatprep.subr.mxu0 0.0
    %2419 = vmatpush1.msra.mxu0 0.0
    %2420 = vmatprep.subr.mxu0 0.0
    %2421 = vmatpush1.msra.mxu0 0.0
    %2422 = vmatprep.subr.mxu0 0.0
    %2423 = vmatpush1.msra.mxu0 0.0
    %2424 = vmatprep.subr.mxu0 0.0
    %2425 = vmatpush1.msra.mxu0 0.0
    %2426 = vmatprep.subr.mxu0 0.0
    %2427 = vmatpush1.msra.mxu0 0.0
    %2428 = vmatprep.subr.mxu0 0.0
    %2429 = vmatpush1.msra.mxu0 0.0
    %2430 = vmatprep.subr.mxu0 0.0
    %2431 = vmatpush1.msra.mxu0 0.0
    %2432 = vmatprep.subr.mxu0 0.0
    %2433 = vmatpush1.msra.mxu0 0.0
    %2434 = vmatprep.subr.mxu0 0.0
    %2435 = vmatpush1.msra.mxu0 0.0
    %2436 = vmatprep.subr.mxu0 0.0
    %2437 = vmatpush1.msra.mxu0 0.0
    %2438 = vmatprep.subr.mxu0 0.0
    %2439 = vmatpush1.msra.mxu0 0.0
    %2440 = vmatprep.subr.mxu0 0.0
    %2441 = vmatpush1.msra.mxu0 0.0
    %2442 = vmatprep.subr.mxu0 0.0
    %2443 = vmatpush1.msra.mxu0 0.0
    %2444 = vmatprep.subr.mxu0 0.0
    %2445 = vmatpush1.msra.mxu0 0.0
    %2446 = vmatprep.subr.mxu0 0.0
    %2447 = vmatpush1.msra.mxu0 0.0
    %2448 = vmatprep.subr.mxu0 0.0
    %2449 = vmatpush1.msra.mxu0 0.0
    %2450 = vmatprep.subr.mxu0 0.0
    %2451 = vmatpush1.msra.mxu0 0.0
    %2452 = vmatprep.subr.mxu0 0.0
    %2453 = vmatpush1.msra.mxu0 0.0
    %2454 = vmatprep.subr.mxu0 0.0
    %2455 = vmatpush1.msra.mxu0 0.0
    %2456 = vmatprep.subr.mxu0 0.0
    %2457 = vmatpush1.msra.mxu0 0.0
    %2458 = vmatprep.mubr.f32.mxu0 0.0
    %2459 = vmatmul.mubr.f32.gmra.mrb[0].mxu0 %v2392
    %v2460 = vpop.f32.mrb[0].mxu0
    %v2461 = vadd.f32 0.0, %v2460
    %v2462 = vpop.f32.mrb[0].mxu0
    %2463 = vdwg.mxu0
    %2465 = vrot.lane.b32.xlu0 %v2195, 64
    %v2466 = vpop.permute.xlu0 %2465
    %v2467 = vsel %vm90, %v2466, 0
    %2469 = vmatprep.subr.mxu0 0.0
    %2470 = vmatpush1.msra.mxu0 %v2384
    %2471 = vmatprep.subr.mxu0 0.0
    %2472 = vmatpush1.msra.mxu0 %v2385
    %2473 = vmatprep.subr.mxu0 0.0
    %2474 = vmatpush1.msra.mxu0 %v2386
    %2475 = vmatprep.subr.mxu0 0.0
    %2476 = vmatpush1.msra.mxu0 %v2387
    %2477 = vmatprep.subr.mxu0 0.0
    %2478 = vmatpush1.msra.mxu0 0.0
    %2479 = vmatprep.subr.mxu0 0.0
    %2480 = vmatpush1.msra.mxu0 0.0
    %2481 = vmatprep.subr.mxu0 0.0
    %2482 = vmatpush1.msra.mxu0 0.0
    %2483 = vmatprep.subr.mxu0 0.0
    %2484 = vmatpush1.msra.mxu0 0.0
    %2485 = vmatprep.subr.mxu0 0.0
    %2486 = vmatpush1.msra.mxu0 0.0
    %2487 = vmatprep.subr.mxu0 0.0
    %2488 = vmatpush1.msra.mxu0 0.0
    %2489 = vmatprep.subr.mxu0 0.0
    %2490 = vmatpush1.msra.mxu0 0.0
    %2491 = vmatprep.subr.mxu0 0.0
    %2492 = vmatpush1.msra.mxu0 0.0
    %2493 = vmatprep.subr.mxu0 0.0
    %2494 = vmatpush1.msra.mxu0 0.0
    %2495 = vmatprep.subr.mxu0 0.0
    %2496 = vmatpush1.msra.mxu0 0.0
    %2497 = vmatprep.subr.mxu0 0.0
    %2498 = vmatpush1.msra.mxu0 0.0
    %2499 = vmatprep.subr.mxu0 0.0
    %2500 = vmatpush1.msra.mxu0 0.0
    %2501 = vmatprep.subr.mxu0 0.0
    %2502 = vmatpush1.msra.mxu0 0.0
    %2503 = vmatprep.subr.mxu0 0.0
    %2504 = vmatpush1.msra.mxu0 0.0
    %2505 = vmatprep.subr.mxu0 0.0
    %2506 = vmatpush1.msra.mxu0 0.0
    %2507 = vmatprep.subr.mxu0 0.0
    %2508 = vmatpush1.msra.mxu0 0.0
    %2509 = vmatprep.subr.mxu0 0.0
    %2510 = vmatpush1.msra.mxu0 0.0
    %2511 = vmatprep.subr.mxu0 0.0
    %2512 = vmatpush1.msra.mxu0 0.0
    %2513 = vmatprep.subr.mxu0 0.0
    %2514 = vmatpush1.msra.mxu0 0.0
    %2515 = vmatprep.subr.mxu0 0.0
    %2516 = vmatpush1.msra.mxu0 0.0
    %2517 = vmatprep.subr.mxu0 0.0
    %2518 = vmatpush1.msra.mxu0 0.0
    %2519 = vmatprep.subr.mxu0 0.0
    %2520 = vmatpush1.msra.mxu0 0.0
    %2521 = vmatprep.subr.mxu0 0.0
    %2522 = vmatpush1.msra.mxu0 0.0
    %2523 = vmatprep.subr.mxu0 0.0
    %2524 = vmatpush1.msra.mxu0 0.0
    %2525 = vmatprep.subr.mxu0 0.0
    %2526 = vmatpush1.msra.mxu0 0.0
    %2527 = vmatprep.subr.mxu0 0.0
    %2528 = vmatpush1.msra.mxu0 0.0
    %2529 = vmatprep.subr.mxu0 0.0
    %2530 = vmatpush1.msra.mxu0 0.0
    %2531 = vmatprep.subr.mxu0 0.0
    %2532 = vmatpush1.msra.mxu0 0.0
    %2533 = vmatprep.mubr.f32.mxu0 0.0
    %2534 = vmatmul.mubr.f32.gmra.mrb[0].mxu0 %v2467
    %v2535 = vpop.f32.mrb[0].mxu0
    %v2536 = vadd.f32 %v2461, %v2535
    %v2537 = vpop.f32.mrb[0].mxu0
    %2538 = vdwg.mxu0
    %v2539 = vld [vmem:[%s6] sm:$0x1]
    %v2541 = vlaneseq
    %v2542 = vshrl.u32 %v2541, 7
    %v2543 = vsub.s32 0, %v2542
    %v2544 = vrot.slane %v2539, %v2543
    %v2546 = vadd.f32 %v2536, %v2544
    %v2547 = vxor.u32 %v2546, 2147483648
    %v2548 = vmul.f32 %v2547, 1.442695
    %v2549 = vpow.pop %v2548
    %v2550 = vadd.f32 %v2549, 1.0
    %v2551 = vrcp.pop %v2550
    %v2552 = vmul.f32 1.0, %v2551
    %v2553 = vtanh.pop %v2546
    %v2554 = vsel %vm70, %v2552, %v2553
    %v2555 = vmul.f32 %v2554, %v2372
    %2557 = vrot.lane.b32.xlu0 %v2554, 32
    %v2558 = vpop.permute.xlu0 %2557
    %v2560 = vmul.f32 %v2554, %v2558
    %2562 = vrot.lane.b32.xlu0 %v2560, 32
    %v2563 = vpop.permute.xlu0 %2562
    %v2565 = vadd.f32 %v2555, %v2563
    %v2566 = vtanh.pop %v2565
    %2568 = vrot.lane.b32.xlu0 %v2566, 32
    %v2569 = vpop.permute.xlu0 %2568
    %v2571 = vmul.f32 %v2554, %v2569
    %2573 = vrot.lane.b32.xlu0 %v2571, 64
    %v2574 = vpop.permute.xlu0 %2573
    %2576 = vst.msk [vmem:[#allocation3 + $0x38] sm:$0xff] %vm90, %v2574
    %v2577 = vld [vmem:[#allocation3] sm:$0xff]
    %v2578 = vld [vmem:[#allocation3 + $0x8] sm:$0xff]
    %v2579 = vld [vmem:[#allocation3 + $0x10] sm:$0xff]
    %v2580 = vld [vmem:[#allocation3 + $0x18] sm:$0xff]
    %v2581 = vld [vmem:[#allocation3 + $0x20] sm:$0xff]
    %v2582 = vld [vmem:[#allocation3 + $0x28] sm:$0xff]
    %v2583 = vld [vmem:[#allocation3 + $0x30] sm:$0xff]
    %v2584 = vld [vmem:[#allocation3 + $0x38] sm:$0xff]
    %v2585 = vld [vmem:[%s7] sm:$0xff]
    %v2586 = vld [vmem:[%s7 + $0x8] sm:$0xff]
    %v2587 = vld [vmem:[%s7 + $0x10] sm:$0xff]
    %v2588 = vld [vmem:[%s7 + $0x18] sm:$0xff]
    %v2589 = vld [vmem:[#allocation4] sm:$0x1]
    %v2591 = vlaneseq
    %v2592 = vshrl.u32 %v2591, 7
    %v2593 = vsub.s32 0, %v2592
    %v2594 = vrot.slane %v2589, %v2593
    %v2597 = vsel %vm90, %v2577, 0
    %v2600 = vsel %vm90, %v2578, 0
    %v2603 = vsel %vm90, %v2579, 0
    %v2606 = vsel %vm90, %v2580, 0
    %v2609 = vsel %vm90, %v2581, 0
    %v2612 = vsel %vm90, %v2582, 0
    %v2615 = vsel %vm90, %v2583, 0
    %v2618 = vsel %vm90, %v2584, 0
    %2620 = vmatprep.subr.mxu0 0.0
    %2621 = vmatpush1.msra.mxu0 %v2585
    %2622 = vmatprep.subr.mxu0 0.0
    %2623 = vmatpush1.msra.mxu0 %v2586
    %2624 = vmatprep.subr.mxu0 0.0
    %2625 = vmatpush1.msra.mxu0 %v2587
    %2626 = vmatprep.subr.mxu0 0.0
    %2627 = vmatpush1.msra.mxu0 %v2588
    %2628 = vmatprep.subr.mxu0 0.0
    %2629 = vmatpush1.msra.mxu0 0.0
    %2630 = vmatprep.subr.mxu0 0.0
    %2631 = vmatpush1.msra.mxu0 0.0
    %2632 = vmatprep.subr.mxu0 0.0
    %2633 = vmatpush1.msra.mxu0 0.0
    %2634 = vmatprep.subr.mxu0 0.0
    %2635 = vmatpush1.msra.mxu0 0.0
    %2636 = vmatprep.subr.mxu0 0.0
    %2637 = vmatpush1.msra.mxu0 0.0
    %2638 = vmatprep.subr.mxu0 0.0
    %2639 = vmatpush1.msra.mxu0 0.0
    %2640 = vmatprep.subr.mxu0 0.0
    %2641 = vmatpush1.msra.mxu0 0.0
    %2642 = vmatprep.subr.mxu0 0.0
    %2643 = vmatpush1.msra.mxu0 0.0
    %2644 = vmatprep.subr.mxu0 0.0
    %2645 = vmatpush1.msra.mxu0 0.0
    %2646 = vmatprep.subr.mxu0 0.0
    %2647 = vmatpush1.msra.mxu0 0.0
    %2648 = vmatprep.subr.mxu0 0.0
    %2649 = vmatpush1.msra.mxu0 0.0
    %2650 = vmatprep.subr.mxu0 0.0
    %2651 = vmatpush1.msra.mxu0 0.0
    %2652 = vmatprep.subr.mxu0 0.0
    %2653 = vmatpush1.msra.mxu0 0.0
    %2654 = vmatprep.subr.mxu0 0.0
    %2655 = vmatpush1.msra.mxu0 0.0
    %2656 = vmatprep.subr.mxu0 0.0
    %2657 = vmatpush1.msra.mxu0 0.0
    %2658 = vmatprep.subr.mxu0 0.0
    %2659 = vmatpush1.msra.mxu0 0.0
    %2660 = vmatprep.subr.mxu0 0.0
    %2661 = vmatpush1.msra.mxu0 0.0
    %2662 = vmatprep.subr.mxu0 0.0
    %2663 = vmatpush1.msra.mxu0 0.0
    %2664 = vmatprep.subr.mxu0 0.0
    %2665 = vmatpush1.msra.mxu0 0.0
    %2666 = vmatprep.subr.mxu0 0.0
    %2667 = vmatpush1.msra.mxu0 0.0
    %2668 = vmatprep.subr.mxu0 0.0
    %2669 = vmatpush1.msra.mxu0 0.0
    %2670 = vmatprep.subr.mxu0 0.0
    %2671 = vmatpush1.msra.mxu0 0.0
    %2672 = vmatprep.subr.mxu0 0.0
    %2673 = vmatpush1.msra.mxu0 0.0
    %2674 = vmatprep.subr.mxu0 0.0
    %2675 = vmatpush1.msra.mxu0 0.0
    %2676 = vmatprep.subr.mxu0 0.0
    %2677 = vmatpush1.msra.mxu0 0.0
    %2678 = vmatprep.subr.mxu0 0.0
    %2679 = vmatpush1.msra.mxu0 0.0
    %2680 = vmatprep.subr.mxu0 0.0
    %2681 = vmatpush1.msra.mxu0 0.0
    %2682 = vmatprep.subr.mxu0 0.0
    %2683 = vmatpush1.msra.mxu0 0.0
    %2684 = vmatprep.mubr.f32.mxu0 0.0
    %2685 = vmatmul.mubr.f32.gmra.mrb[0].mxu0 %v2597
    %v2686 = vpop.f32.mrb[0].mxu0
    %v2687 = vadd.f32 %v2594, %v2686
    %v2688 = vpop.f32.mrb[0].mxu0
    %2689 = vmatprep.mubr.f32.mxu0 0.0
    %2690 = vmatmul.mubr.f32.gmra.mrb[0].mxu0 %v2600
    %v2691 = vpop.f32.mrb[0].mxu0
    %v2692 = vadd.f32 %v2594, %v2691
    %v2693 = vpop.f32.mrb[0].mxu0
    %2694 = vmatprep.mubr.f32.mxu0 0.0
    %2695 = vmatmul.mubr.f32.gmra.mrb[0].mxu0 %v2603
    %v2696 = vpop.f32.mrb[0].mxu0
    %v2697 = vadd.f32 %v2594, %v2696
    %v2698 = vpop.f32.mrb[0].mxu0
    %2699 = vmatprep.mubr.f32.mxu0 0.0
    %2700 = vmatmul.mubr.f32.gmra.mrb[0].mxu0 %v2606
    %v2701 = vpop.f32.mrb[0].mxu0
    %v2702 = vadd.f32 %v2594, %v2701
    %v2703 = vpop.f32.mrb[0].mxu0
    %2704 = vmatprep.mubr.f32.mxu0 0.0
    %2705 = vmatmul.mubr.f32.gmra.mrb[0].mxu0 %v2609
    %v2706 = vpop.f32.mrb[0].mxu0
    %v2707 = vadd.f32 %v2594, %v2706
    %v2708 = vpop.f32.mrb[0].mxu0
    %2709 = vmatprep.mubr.f32.mxu0 0.0
    %2710 = vmatmul.mubr.f32.gmra.mrb[0].mxu0 %v2612
    %v2711 = vpop.f32.mrb[0].mxu0
    %v2712 = vadd.f32 %v2594, %v2711
    %v2713 = vpop.f32.mrb[0].mxu0
    %2714 = vmatprep.mubr.f32.mxu0 0.0
    %2715 = vmatmul.mubr.f32.gmra.mrb[0].mxu0 %v2615
    %v2716 = vpop.f32.mrb[0].mxu0
    %v2717 = vadd.f32 %v2594, %v2716
    %v2718 = vpop.f32.mrb[0].mxu0
    %2719 = vmatprep.mubr.f32.mxu0 0.0
    %2720 = vmatmul.mubr.f32.gmra.mrb[0].mxu0 %v2618
    %v2721 = vpop.f32.mrb[0].mxu0
    %v2722 = vadd.f32 %v2594, %v2721
    %v2723 = vpop.f32.mrb[0].mxu0
    %2724 = vdwg.mxu0
    %v2725 = vsel %vm90, %v2687, 0.0
    %2726 = vadd.xlane.f32.xlu0 %v2725
    %v2727 = vpop.xlane.xlu0 %2726
    %v2728 = vsel %vm90, %v2692, 0.0
    %2729 = vadd.xlane.f32.xlu0 %v2728
    %v2730 = vpop.xlane.xlu0 %2729
    %v2731 = vsel %vm90, %v2697, 0.0
    %2732 = vadd.xlane.f32.xlu0 %v2731
    %v2733 = vpop.xlane.xlu0 %2732
    %v2734 = vsel %vm90, %v2702, 0.0
    %2735 = vadd.xlane.f32.xlu0 %v2734
    %v2736 = vpop.xlane.xlu0 %2735
    %v2737 = vsel %vm90, %v2707, 0.0
    %2738 = vadd.xlane.f32.xlu0 %v2737
    %v2739 = vpop.xlane.xlu0 %2738
    %v2740 = vsel %vm90, %v2712, 0.0
    %2741 = vadd.xlane.f32.xlu0 %v2740
    %v2742 = vpop.xlane.xlu0 %2741
    %v2743 = vsel %vm90, %v2717, 0.0
    %2744 = vadd.xlane.f32.xlu0 %v2743
    %v2745 = vpop.xlane.xlu0 %2744
    %v2746 = vsel %vm90, %v2722, 0.0
    %2747 = vadd.xlane.f32.xlu0 %v2746
    %v2748 = vpop.xlane.xlu0 %2747
    %v2749 = vrcp.pop 32.0
    %v2750 = vmul.f32 %v2727, %v2749
    %v2751 = vmul.f32 %v2730, %v2749
    %v2752 = vmul.f32 %v2733, %v2749
    %v2753 = vmul.f32 %v2736, %v2749
    %v2754 = vmul.f32 %v2739, %v2749
    %v2755 = vmul.f32 %v2742, %v2749
    %v2756 = vmul.f32 %v2745, %v2749
    %v2757 = vmul.f32 %v2748, %v2749
    %v2758 = vsub.f32 %v2687, %v2750
    %v2759 = vsub.f32 %v2692, %v2751
    %v2760 = vsub.f32 %v2697, %v2752
    %v2761 = vsub.f32 %v2702, %v2753
    %v2762 = vsub.f32 %v2707, %v2754
    %v2763 = vsub.f32 %v2712, %v2755
    %v2764 = vsub.f32 %v2717, %v2756
    %v2765 = vsub.f32 %v2722, %v2757
    %v2766 = vmul.f32 %v2758, %v2758
    %v2767 = vmul.f32 %v2759, %v2759
    %v2768 = vmul.f32 %v2760, %v2760
    %v2769 = vmul.f32 %v2761, %v2761
    %v2770 = vmul.f32 %v2762, %v2762
    %v2771 = vmul.f32 %v2763, %v2763
    %v2772 = vmul.f32 %v2764, %v2764
    %v2773 = vmul.f32 %v2765, %v2765
    %v2774 = vsel %vm90, %v2766, 0.0
    %2775 = vadd.xlane.f32.xlu0 %v2774
    %v2776 = vpop.xlane.xlu0 %2775
    %v2777 = vsel %vm90, %v2767, 0.0
    %2778 = vadd.xlane.f32.xlu0 %v2777
    %v2779 = vpop.xlane.xlu0 %2778
    %v2780 = vsel %vm90, %v2768, 0.0
    %2781 = vadd.xlane.f32.xlu0 %v2780
    %v2782 = vpop.xlane.xlu0 %2781
    %v2783 = vsel %vm90, %v2769, 0.0
    %2784 = vadd.xlane.f32.xlu0 %v2783
    %v2785 = vpop.xlane.xlu0 %2784
    %v2786 = vsel %vm90, %v2770, 0.0
    %2787 = vadd.xlane.f32.xlu0 %v2786
    %v2788 = vpop.xlane.xlu0 %2787
    %v2789 = vsel %vm90, %v2771, 0.0
    %2790 = vadd.xlane.f32.xlu0 %v2789
    %v2791 = vpop.xlane.xlu0 %2790
    %v2792 = vsel %vm90, %v2772, 0.0
    %2793 = vadd.xlane.f32.xlu0 %v2792
    %v2794 = vpop.xlane.xlu0 %2793
    %v2795 = vsel %vm90, %v2773, 0.0
    %2796 = vadd.xlane.f32.xlu0 %v2795
    %v2797 = vpop.xlane.xlu0 %2796
    %v2798 = vmul.f32 %v2776, %v2749
    %v2799 = vmul.f32 %v2779, %v2749
    %v2800 = vmul.f32 %v2782, %v2749
    %v2801 = vmul.f32 %v2785, %v2749
    %v2802 = vmul.f32 %v2788, %v2749
    %v2803 = vmul.f32 %v2791, %v2749
    %v2804 = vmul.f32 %v2794, %v2749
    %v2805 = vmul.f32 %v2797, %v2749
    %v2806 = vadd.f32 %v2798, 1e-05
    %v2807 = vadd.f32 %v2799, 1e-05
    %v2808 = vadd.f32 %v2800, 1e-05
    %v2809 = vadd.f32 %v2801, 1e-05
    %v2810 = vadd.f32 %v2802, 1e-05
    %v2811 = vadd.f32 %v2803, 1e-05
    %v2812 = vadd.f32 %v2804, 1e-05
    %v2813 = vadd.f32 %v2805, 1e-05
    %v2814 = vrsqrt.pop %v2806
    %v2815 = vrsqrt.pop %v2807
    %v2816 = vrsqrt.pop %v2808
    %v2817 = vrsqrt.pop %v2809
    %v2818 = vrsqrt.pop %v2810
    %v2819 = vrsqrt.pop %v2811
    %v2820 = vrsqrt.pop %v2812
    %v2821 = vrsqrt.pop %v2813
    %v2822 = vmul.f32 %v2758, %v2814
    %v2823 = vmul.f32 %v2759, %v2815
    %v2824 = vmul.f32 %v2760, %v2816
    %v2825 = vmul.f32 %v2761, %v2817
    %v2826 = vmul.f32 %v2762, %v2818
    %v2827 = vmul.f32 %v2763, %v2819
    %v2828 = vmul.f32 %v2764, %v2820
    %v2829 = vmul.f32 %v2765, %v2821
    %v2830 = vld [vmem:[#allocation6] sm:$0x1]
    %v2832 = vlaneseq
    %v2833 = vshrl.u32 %v2832, 7
    %v2834 = vsub.s32 0, %v2833
    %v2835 = vrot.slane %v2830, %v2834
    %v2837 = vmul.f32 %v2822, %v2835
    %v2838 = vmul.f32 %v2823, %v2835
    %v2839 = vmul.f32 %v2824, %v2835
    %v2840 = vmul.f32 %v2825, %v2835
    %v2841 = vmul.f32 %v2826, %v2835
    %v2842 = vmul.f32 %v2827, %v2835
    %v2843 = vmul.f32 %v2828, %v2835
    %v2844 = vmul.f32 %v2829, %v2835
    %v2845 = vld [vmem:[%s10] sm:$0x1]
    %v2847 = vlaneseq
    %v2848 = vshrl.u32 %v2847, 7
    %v2849 = vsub.s32 0, %v2848
    %v2850 = vrot.slane %v2845, %v2849
    %v2852 = vadd.f32 %v2837, %v2850
    %v2853 = vadd.f32 %v2838, %v2850
    %v2854 = vadd.f32 %v2839, %v2850
    %v2855 = vadd.f32 %v2840, %v2850
    %v2856 = vadd.f32 %v2841, %v2850
    %v2857 = vadd.f32 %v2842, %v2850
    %v2858 = vadd.f32 %v2843, %v2850
    %v2859 = vadd.f32 %v2844, %v2850
    %v2860 = vld [vmem:[%s11] sm:$0xff]
    %v2861 = vld [vmem:[%s11 + $0x8] sm:$0xff]
    %v2862 = vld [vmem:[%s11 + $0x10] sm:$0xff]
    %v2863 = vld [vmem:[%s11 + $0x18] sm:$0xff]
    %v2864 = vld [vmem:[%s12] sm:$0x1]
    %v2866 = vlaneseq
    %v2867 = vshrl.u32 %v2866, 7
    %v2868 = vsub.s32 0, %v2867
    %v2869 = vrot.slane %v2864, %v2868
    %v2872 = vsel %vm90, %v2852, 0
    %v2875 = vsel %vm90, %v2853, 0
    %v2878 = vsel %vm90, %v2854, 0
    %v2881 = vsel %vm90, %v2855, 0
    %v2884 = vsel %vm90, %v2856, 0
    %v2887 = vsel %vm90, %v2857, 0
    %v2890 = vsel %vm90, %v2858, 0
    %v2893 = vsel %vm90, %v2859, 0
    %2895 = vmatprep.subr.mxu0 0.0
    %2896 = vmatpush1.msra.mxu0 %v2860
    %2897 = vmatprep.subr.mxu0 0.0
    %2898 = vmatpush1.msra.mxu0 %v2861
    %2899 = vmatprep.subr.mxu0 0.0
    %2900 = vmatpush1.msra.mxu0 %v2862
    %2901 = vmatprep.subr.mxu0 0.0
    %2902 = vmatpush1.msra.mxu0 %v2863
    %2903 = vmatprep.subr.mxu0 0.0
    %2904 = vmatpush1.msra.mxu0 0.0
    %2905 = vmatprep.subr.mxu0 0.0
    %2906 = vmatpush1.msra.mxu0 0.0
    %2907 = vmatprep.subr.mxu0 0.0
    %2908 = vmatpush1.msra.mxu0 0.0
    %2909 = vmatprep.subr.mxu0 0.0
    %2910 = vmatpush1.msra.mxu0 0.0
    %2911 = vmatprep.subr.mxu0 0.0
    %2912 = vmatpush1.msra.mxu0 0.0
    %2913 = vmatprep.subr.mxu0 0.0
    %2914 = vmatpush1.msra.mxu0 0.0
    %2915 = vmatprep.subr.mxu0 0.0
    %2916 = vmatpush1.msra.mxu0 0.0
    %2917 = vmatprep.subr.mxu0 0.0
    %2918 = vmatpush1.msra.mxu0 0.0
    %2919 = vmatprep.subr.mxu0 0.0
    %2920 = vmatpush1.msra.mxu0 0.0
    %2921 = vmatprep.subr.mxu0 0.0
    %2922 = vmatpush1.msra.mxu0 0.0
    %2923 = vmatprep.subr.mxu0 0.0
    %2924 = vmatpush1.msra.mxu0 0.0
    %2925 = vmatprep.subr.mxu0 0.0
    %2926 = vmatpush1.msra.mxu0 0.0
    %2927 = vmatprep.subr.mxu0 0.0
    %2928 = vmatpush1.msra.mxu0 0.0
    %2929 = vmatprep.subr.mxu0 0.0
    %2930 = vmatpush1.msra.mxu0 0.0
    %2931 = vmatprep.subr.mxu0 0.0
    %2932 = vmatpush1.msra.mxu0 0.0
    %2933 = vmatprep.subr.mxu0 0.0
    %2934 = vmatpush1.msra.mxu0 0.0
    %2935 = vmatprep.subr.mxu0 0.0
    %2936 = vmatpush1.msra.mxu0 0.0
    %2937 = vmatprep.subr.mxu0 0.0
    %2938 = vmatpush1.msra.mxu0 0.0
    %2939 = vmatprep.subr.mxu0 0.0
    %2940 = vmatpush1.msra.mxu0 0.0
    %2941 = vmatprep.subr.mxu0 0.0
    %2942 = vmatpush1.msra.mxu0 0.0
    %2943 = vmatprep.subr.mxu0 0.0
    %2944 = vmatpush1.msra.mxu0 0.0
    %2945 = vmatprep.subr.mxu0 0.0
    %2946 = vmatpush1.msra.mxu0 0.0
    %2947 = vmatprep.subr.mxu0 0.0
    %2948 = vmatpush1.msra.mxu0 0.0
    %2949 = vmatprep.subr.mxu0 0.0
    %2950 = vmatpush1.msra.mxu0 0.0
    %2951 = vmatprep.subr.mxu0 0.0
    %2952 = vmatpush1.msra.mxu0 0.0
    %2953 = vmatprep.subr.mxu0 0.0
    %2954 = vmatpush1.msra.mxu0 0.0
    %2955 = vmatprep.subr.mxu0 0.0
    %2956 = vmatpush1.msra.mxu0 0.0
    %2957 = vmatprep.subr.mxu0 0.0
    %2958 = vmatpush1.msra.mxu0 0.0
    %2959 = vmatprep.mubr.f32.mxu0 0.0
    %2960 = vmatmul.mubr.f32.gmra.mrb[0].mxu0 %v2872
    %v2961 = vpop.f32.mrb[0].mxu0
    %v2962 = vadd.f32 %v2869, %v2961
    %v2963 = vpop.f32.mrb[0].mxu0
    %2964 = vmatprep.mubr.f32.mxu0 0.0
    %2965 = vmatmul.mubr.f32.gmra.mrb[0].mxu0 %v2875
    %v2966 = vpop.f32.mrb[0].mxu0
    %v2967 = vadd.f32 %v2869, %v2966
    %v2968 = vpop.f32.mrb[0].mxu0
    %2969 = vmatprep.mubr.f32.mxu0 0.0
    %2970 = vmatmul.mubr.f32.gmra.mrb[0].mxu0 %v2878
    %v2971 = vpop.f32.mrb[0].mxu0
    %v2972 = vadd.f32 %v2869, %v2971
    %v2973 = vpop.f32.mrb[0].mxu0
    %2974 = vmatprep.mubr.f32.mxu0 0.0
    %2975 = vmatmul.mubr.f32.gmra.mrb[0].mxu0 %v2881
    %v2976 = vpop.f32.mrb[0].mxu0
    %v2977 = vadd.f32 %v2869, %v2976
    %v2978 = vpop.f32.mrb[0].mxu0
    %2979 = vmatprep.mubr.f32.mxu0 0.0
    %2980 = vmatmul.mubr.f32.gmra.mrb[0].mxu0 %v2884
    %v2981 = vpop.f32.mrb[0].mxu0
    %v2982 = vadd.f32 %v2869, %v2981
    %v2983 = vpop.f32.mrb[0].mxu0
    %2984 = vmatprep.mubr.f32.mxu0 0.0
    %2985 = vmatmul.mubr.f32.gmra.mrb[0].mxu0 %v2887
    %v2986 = vpop.f32.mrb[0].mxu0
    %v2987 = vadd.f32 %v2869, %v2986
    %v2988 = vpop.f32.mrb[0].mxu0
    %2989 = vmatprep.mubr.f32.mxu0 0.0
    %2990 = vmatmul.mubr.f32.gmra.mrb[0].mxu0 %v2890
    %v2991 = vpop.f32.mrb[0].mxu0
    %v2992 = vadd.f32 %v2869, %v2991
    %v2993 = vpop.f32.mrb[0].mxu0
    %2994 = vmatprep.mubr.f32.mxu0 0.0
    %2995 = vmatmul.mubr.f32.gmra.mrb[0].mxu0 %v2893
    %v2996 = vpop.f32.mrb[0].mxu0
    %v2997 = vadd.f32 %v2869, %v2996
    %v2998 = vpop.f32.mrb[0].mxu0
    %2999 = vdwg.mxu0
    %vm3000 = vcmask 195584
    %3001 = vst.msk [vmem:[%s13] sm:$0xff] %vm3000, %v2962
    %3002 = vst.msk [vmem:[%s13 + $0x8] sm:$0xff] %vm3000, %v2967
    %3003 = vst.msk [vmem:[%s13 + $0x10] sm:$0xff] %vm3000, %v2972
    %3004 = vst.msk [vmem:[%s13 + $0x18] sm:$0xff] %vm3000, %v2977
    %3005 = vst.msk [vmem:[%s13 + $0x20] sm:$0xff] %vm3000, %v2982
    %3006 = vst.msk [vmem:[%s13 + $0x28] sm:$0xff] %vm3000, %v2987
    %3007 = vst.msk [vmem:[%s13 + $0x30] sm:$0xff] %vm3000, %v2992
    %3008 = vst.msk [vmem:[%s13 + $0x38] sm:$0xff] %vm3000, %v2997
    // Predicated region
    $region62: #{decoder_forward.1} parent=1 // pred_check
      _
    $region63: #{decoder_forward.1} parent=1 // pred_check_branch
      %3010 = sbr.rel (0) target = $region65
    $region64: #{decoder_forward.1} parent=1 // pred_region
      _
    $region65: #{decoder_forward.1} parent=1 // pred_fallthru
      _
    // Predicated region
    $region66: #{decoder_forward.1} parent=1 // pred_check
      _
    $region67: #{decoder_forward.1} parent=1 // pred_check_branch
      %3012 = sbr.rel (0) target = $region69
    $region68: #{decoder_forward.1} parent=1 // pred_region
      _
    $region69: #{decoder_forward.1} parent=1 // pred_fallthru
      _
    %3013 = vsyncpa [#allocation5], 1
    %3014 = vsyncpa [#allocation7], 1

</llo_original>
